<compile_context>
chip_gen: v5e
topology: v5e:2x2
jax: 0.10.0
libtpu: 0.0.40
codegen_flags: <defaults>
</compile_context>

<pallas_src>
import numpy as np
import jax
import jax.numpy as jnp
from jax import lax
from jax.experimental import pallas as pl
from jax.experimental.pallas import tpu as pltpu

HID3 = 64      # third hidden width (zero-padded to 128 lanes)
FEAT = 128     # padded feature / lane width
BP = 8         # padded batch (sublane multiple)
MAX_UNROLL_STEPS = 32


# ----------------------------- Pallas kernel ------------------------------ #
def _node_rk4_kernel(x0_ref, cur_ref, scal_ref, b4_ref,
                     w1_ref, b1_ref, w2_ref, b2_ref, w3_ref, b3_ref, w4_ref,
                     out_ref):
    nsteps = scal_ref.shape[0] // 5
    ns_lane = out_ref.shape[1]
    nl_cur = cur_ref.shape[2]

    lane_out = lax.broadcasted_iota(jnp.int32, (BP, ns_lane), 1)
    lane_cur = lax.broadcasted_iota(jnp.int32, (BP, nl_cur), 1)

    # small loop-invariant operands (hoisted once; w2/w3 stay in VMEM refs)
    w1r0 = w1_ref[0:1, :]          # weight row for x
    w1r1 = w1_ref[1:2, :]          # weight row for current_at_t
    w1r2 = w1_ref[2:3, :]          # weight row for t
    b1 = b1_ref[...]
    b2 = b2_ref[...]
    b3 = b3_ref[...]
    w4r = w4_ref[...]              # (1, 128) f32, only first 64 lanes nonzero
    b4 = b4_ref[0]

    x0 = x0_ref[...]               # (BP, 1)

    def f(y, cur, t):
        # layer 1: only 3 nonzero input features -> VPU broadcast-MACs (f32)
        h = jnp.maximum(y * w1r0 + cur * w1r1 + t * w1r2 + b1, 0.0)
        # layers 2/3: bf16 MXU operands, f32 accumulation
        h = jnp.maximum(
            jnp.dot(h.astype(jnp.bfloat16), w2_ref[...],
                    preferred_element_type=jnp.float32) + b2, 0.0)
        h = jnp.maximum(
            jnp.dot(h.astype(jnp.bfloat16), w3_ref[...],
                    preferred_element_type=jnp.float32) + b3, 0.0)
        # layer 4 (64 -> 1): VPU multiply + lane reduction (XLU), MXU bypassed
        return jnp.sum(h * w4r, axis=-1, keepdims=True) + b4      # (BP, 1)

    def rk_step(y, c0, c1, c2, c3, t0, t13, t23, t1, dt):
        # torchdiffeq 'rk4' = 3/8-rule step (rk4_alt_step_func)
        k1 = f(y, c0, t0)
        k2 = f(y + dt * k1 / 3.0, c1, t13)
        k3 = f(y + dt * (k2 - k1 / 3.0), c2, t23)
        k4 = f(y + dt * (k1 - k2 + k3), c3, t1)
        return y + dt * (k1 + 3.0 * (k2 + k3) + k4) * 0.125

    # lane 0 of the trajectory = x0; remaining lanes written per RK step below
    out_ref[...] = jnp.where(lane_out == 0, x0, 0.0)

    if nsteps <= MAX_UNROLL_STEPS:
        # full unroll: static SMEM/VMEM indices, LLO sees across stage bounds
        y = x0
        for i in range(nsteps):
            t0 = scal_ref[5 * i + 0]
            t13 = scal_ref[5 * i + 1]
            t23 = scal_ref[5 * i + 2]
            t1 = scal_ref[5 * i + 3]
            dt = scal_ref[5 * i + 4]
            c0 = cur_ref[0, :, i:i + 1]          # static 1-lane slices
            c1 = cur_ref[1, :, i:i + 1]
            c2 = cur_ref[2, :, i:i + 1]
            c3 = cur_ref[3, :, i:i + 1]
            y = rk_step(y, c0, c1, c2, c3, t0, t13, t23, t1, dt)
            out_ref[:, i + 1:i + 2] = y          # static 1-lane column store
    else:
        def body(i, y):
            t0 = scal_ref[5 * i + 0]
            t13 = scal_ref[5 * i + 1]
            t23 = scal_ref[5 * i + 2]
            t1 = scal_ref[5 * i + 3]
            dt = scal_ref[5 * i + 4]
            # lane-select the stage currents (XLU has slack in this kernel)
            sel = lane_cur == i
            c0 = jnp.sum(jnp.where(sel, cur_ref[0], 0.0), axis=-1, keepdims=True)
            c1 = jnp.sum(jnp.where(sel, cur_ref[1], 0.0), axis=-1, keepdims=True)
            c2 = jnp.sum(jnp.where(sel, cur_ref[2], 0.0), axis=-1, keepdims=True)
            c3 = jnp.sum(jnp.where(sel, cur_ref[3], 0.0), axis=-1, keepdims=True)
            y = rk_step(y, c0, c1, c2, c3, t0, t13, t23, t1, dt)
            out_ref[:, pl.ds(i + 1, 1)] = y      # masked 1-lane store
            return y
        lax.fori_loop(0, nsteps, body, x0, unroll=2)


# ------------------------------- wrapper ----------------------------------- #
def neural_ode_forward(x0, current_profile, t, params):
    """x0: (B,1), current_profile: (B,S,1), t: (S,) -> (B, S, 1)."""
    w1, b1, w2, b2, w3, b3, w4, b4 = params
    B = x0.shape[0]
    S = t.shape[0]
    nsteps = S - 1
    ns_lane = max(128, pl.cdiv(S, 128) * 128)         # time lanes, mult of 128
    nl_steps = max(128, pl.cdiv(nsteps, 128) * 128)   # interval lanes

    # --- glue: per-interval RK stage times, dt, and the nearest-time-index
    #     current values (ODEFunc's argmin gather), precomputed once ---
    t = t.astype(jnp.float32)
    t0s, t1s = t[:-1], t[1:]
    dts = t1s - t0s
    stage_t = jnp.stack([t0s, t0s + dts / 3.0, t0s + 2.0 * dts / 3.0, t1s],
                        axis=1)                                        # (nsteps,4)

    # nearest index via searchsorted (O(n log S) vs O(n*S) argmin); ties break
    # to the lower index, matching jnp.argmin / torch.argmin semantics.
    flat = stage_t.reshape(-1)
    j = jnp.clip(jnp.searchsorted(t, flat, side="left"), 1, S - 1)
    left, right = t[j - 1], t[j]
    idx = jnp.where(jnp.abs(flat - left) <= jnp.abs(right - flat), j - 1, j)
    idx = idx.reshape(nsteps, 4)                                       # (nsteps,4)

    cur_sel = current_profile.astype(jnp.float32)[:, idx, 0]          # (B,nsteps,4)
    # lane-dense stage-current pack: (stage, batch-sublane, interval-lane)
    cur_p = jnp.zeros((4, BP, nl_steps), jnp.float32).at[:, :B, :nsteps].set(
        jnp.transpose(cur_sel, (2, 0, 1)))
    scal = jnp.concatenate([stage_t, dts[:, None]], axis=1).reshape(-1)  # (nsteps*5,)
    scal = scal.astype(jnp.float32)
    x0p = jnp.zeros((BP, 1), jnp.float32).at[:B].set(x0.astype(jnp.float32))

    # --- pad weights (zeros are exact); w2/w3 as bf16 MXU operands ---
    w1p = jnp.zeros((BP, FEAT), jnp.float32).at[:3, :].set(w1.astype(jnp.float32))
    b1p = b1.reshape(1, FEAT).astype(jnp.float32)
    w2p = w2.astype(jnp.bfloat16)
    b2p = b2.reshape(1, FEAT).astype(jnp.float32)
    w3p = jnp.zeros((FEAT, FEAT), jnp.float32).at[:, :HID3].set(
        w3.astype(jnp.float32)).astype(jnp.bfloat16)
    b3p = jnp.zeros((1, FEAT), jnp.float32).at[0, :HID3].set(b3.astype(jnp.float32))
    w4p = jnp.zeros((1, FEAT), jnp.float32).at[0, :HID3].set(w4[:, 0].astype(jnp.float32))
    b4p = jnp.asarray(b4, jnp.float32).reshape(1)

    vm = pl.BlockSpec(memory_space=pltpu.MemorySpace.VMEM)
    sm = pl.BlockSpec(memory_space=pltpu.MemorySpace.SMEM)

    traj = pl.pallas_call(
        _node_rk4_kernel,
        out_shape=jax.ShapeDtypeStruct((BP, ns_lane), jnp.float32),
        in_specs=[vm, vm, sm, sm, vm, vm, vm, vm, vm, vm, vm],
        out_specs=vm,
    )(x0p, cur_p, scal, b4p, w1p, b1p, w2p, b2p, w3p, b3p, w4p)

    # traj rows = batch (sublanes), lanes = time -> (B, S, 1) == odeint().permute(1,0,2)
    return traj[:B, :S][:, :, None]


# --------------------- deterministic parameter init ------------------------ #
def init_params(key):
    dims = [(3, 128), (128, 128), (128, 64), (64, 1)]
    params = []
    for fin, fout in dims:
        key, kw, kb = jax.random.split(key, 3)
        bound = 1.0 / np.sqrt(fin)
        W = jax.random.uniform(kw, (fin, fout), jnp.float32, -bound, bound)
        b = jax.random.uniform(kb, (fout,), jnp.float32, -bound, bound)
        params += [W, b]
    return tuple(params)


# ----------------------- pure-JAX reference (for check) -------------------- #
def neural_ode_reference(x0, current_profile, t, params):
    w1, b1, w2, b2, w3, b3, w4, b4 = params
    B = x0.shape[0]
    S = t.shape[0]

    def mlp(inp):
        h = jax.nn.relu(inp @ w1 + b1)
        h = jax.nn.relu(h @ w2 + b2)
        h = jax.nn.relu(h @ w3 + b3)
        return h @ w4 + b4

    def f(ts, y):
        idx = jnp.argmin(jnp.abs(t - ts))
        c = current_profile[:, idx, :]
        inp = jnp.concatenate([y, c, jnp.full((B, 1), ts, jnp.float32)], axis=-1)
        return mlp(inp)

    ys = [x0]
    y = x0
    for i in range(S - 1):
        t0, t1 = t[i], t[i + 1]
        dt = t1 - t0
        k1 = f(t0, y)
        k2 = f(t0 + dt / 3.0, y + dt * k1 / 3.0)
        k3 = f(t0 + 2.0 * dt / 3.0, y + dt * (k2 - k1 / 3.0))
        k4 = f(t1, y + dt * (k1 - k2 + k3))
        y = y + dt * (k1 + 3.0 * (k2 + k3) + k4) * 0.125
        ys.append(y)
    return jnp.transpose(jnp.stack(ys, axis=0), (1, 0, 2))


if __name__ == "__main__":
    key = jax.random.PRNGKey(0)
    kp, kx, kc = jax.random.split(key, 3)

    B, S = 2, 8                                   # batch=2, seq=8, state_dim=1
    params = init_params(kp)
    x0 = jax.random.normal(kx, (B, 1), jnp.float32)
    current_profile = jax.random.normal(kc, (B, S, 1), jnp.float32)
    t = jnp.linspace(0.0, 1.0, S, dtype=jnp.float32)

    out = neural_ode_forward(x0, current_profile, t, params)
    out = jax.block_until_ready(out)
    assert out.shape == (B, S, 1), out.shape

    ref = neural_ode_reference(x0, current_profile, t, params)
    np.testing.assert_allclose(np.asarray(out), np.asarray(ref), rtol=1e-2, atol=1e-2)

    print("KERNEL_OK")
</pallas_src>

<mosaic_0001>
module attributes {stable_mosaic.version = 11 : i64} {
  func.func @_node_rk4_kernel(%arg0: memref<8x1xf32, #tpu.memory_space<vmem>>, %arg1: memref<4x8x128xf32, #tpu.memory_space<vmem>>, %arg2: memref<35xf32, #tpu.memory_space<smem>>, %arg3: memref<1xf32, #tpu.memory_space<smem>>, %arg4: memref<8x128xf32, #tpu.memory_space<vmem>>, %arg5: memref<1x128xf32, #tpu.memory_space<vmem>>, %arg6: memref<128x128xbf16, #tpu.memory_space<vmem>>, %arg7: memref<1x128xf32, #tpu.memory_space<vmem>>, %arg8: memref<128x128xbf16, #tpu.memory_space<vmem>>, %arg9: memref<1x128xf32, #tpu.memory_space<vmem>>, %arg10: memref<1x128xf32, #tpu.memory_space<vmem>>, %arg11: memref<8x128xf32, #tpu.memory_space<vmem>>) attributes {dimension_semantics = [], scalar_prefetch = 0 : i64, scratch_operands = 0 : i64, tpu.core_type = #tpu.core_type<tc>} {
    %0 = tpu.iota {dimensions = array<i32: 1>} : vector<8x128xi32>
    %c0 = arith.constant 0 : index
    %c0_0 = arith.constant 0 : index
    %1 = vector.load %arg4[%c0, %c0_0] : memref<8x128xf32, #tpu.memory_space<vmem>>, vector<1x128xf32>
    %c1 = arith.constant 1 : index
    %c0_1 = arith.constant 0 : index
    %2 = vector.load %arg4[%c1, %c0_1] : memref<8x128xf32, #tpu.memory_space<vmem>>, vector<1x128xf32>
    %c2 = arith.constant 2 : index
    %c0_2 = arith.constant 0 : index
    %3 = vector.load %arg4[%c2, %c0_2] : memref<8x128xf32, #tpu.memory_space<vmem>>, vector<1x128xf32>
    %c0_3 = arith.constant 0 : index
    %c0_4 = arith.constant 0 : index
    %4 = vector.load %arg5[%c0_3, %c0_4] : memref<1x128xf32, #tpu.memory_space<vmem>>, vector<1x128xf32>
    %c0_5 = arith.constant 0 : index
    %c0_6 = arith.constant 0 : index
    %5 = vector.load %arg7[%c0_5, %c0_6] : memref<1x128xf32, #tpu.memory_space<vmem>>, vector<1x128xf32>
    %c0_7 = arith.constant 0 : index
    %c0_8 = arith.constant 0 : index
    %6 = vector.load %arg9[%c0_7, %c0_8] : memref<1x128xf32, #tpu.memory_space<vmem>>, vector<1x128xf32>
    %c0_9 = arith.constant 0 : index
    %c0_10 = arith.constant 0 : index
    %7 = vector.load %arg10[%c0_9, %c0_10] : memref<1x128xf32, #tpu.memory_space<vmem>>, vector<1x128xf32>
    %c0_11 = arith.constant 0 : index
    %8 = memref.load %arg3[%c0_11] : memref<1xf32, #tpu.memory_space<smem>>
    %c0_12 = arith.constant 0 : index
    %c0_13 = arith.constant 0 : index
    %9 = vector.load %arg0[%c0_12, %c0_13] : memref<8x1xf32, #tpu.memory_space<vmem>>, vector<8x1xf32>
    %c0_i32 = arith.constant 0 : i32
    %10 = vector.broadcast %c0_i32 : i32 to vector<8x128xi32>
    %11 = arith.cmpi eq, %0, %10 : vector<8x128xi32>
    %cst = arith.constant 0.000000e+00 : f32
    %12 = vector.shape_cast %9 : vector<8x1xf32> to vector<8x1xf32>
    %13 = vector.broadcast %12 : vector<8x1xf32> to vector<8x128xf32>
    %14 = vector.broadcast %cst : f32 to vector<8x128xf32>
    %15 = arith.select %11, %13, %14 : vector<8x128xi1>, vector<8x128xf32>
    %c0_14 = arith.constant 0 : index
    %c0_15 = arith.constant 0 : index
    %16 = vector.load %arg11[%c0_14, %c0_15] : memref<8x128xf32, #tpu.memory_space<vmem>>, vector<8x128xf32>
    tpu.vector_store %arg11[%c0_14, %c0_15], %15 {strides = array<i32>} : memref<8x128xf32, #tpu.memory_space<vmem>>, vector<8x128xf32>,
    %c0_16 = arith.constant 0 : index
    %17 = memref.load %arg2[%c0_16] : memref<35xf32, #tpu.memory_space<smem>>
    %c1_17 = arith.constant 1 : index
    %18 = memref.load %arg2[%c1_17] : memref<35xf32, #tpu.memory_space<smem>>
    %c2_18 = arith.constant 2 : index
    %19 = memref.load %arg2[%c2_18] : memref<35xf32, #tpu.memory_space<smem>>
    %c3 = arith.constant 3 : index
    %20 = memref.load %arg2[%c3] : memref<35xf32, #tpu.memory_space<smem>>
    %c4 = arith.constant 4 : index
    %21 = memref.load %arg2[%c4] : memref<35xf32, #tpu.memory_space<smem>>
    %c0_19 = arith.constant 0 : index
    %c0_20 = arith.constant 0 : index
    %c0_21 = arith.constant 0 : index
    %22 = vector.load %arg1[%c0_19, %c0_20, %c0_21] : memref<4x8x128xf32, #tpu.memory_space<vmem>>, vector<1x8x1xf32>
    %23 = vector.shape_cast %22 : vector<1x8x1xf32> to vector<8x1xf32>
    %c1_22 = arith.constant 1 : index
    %c0_23 = arith.constant 0 : index
    %c0_24 = arith.constant 0 : index
    %24 = vector.load %arg1[%c1_22, %c0_23, %c0_24] : memref<4x8x128xf32, #tpu.memory_space<vmem>>, vector<1x8x1xf32>
    %25 = vector.shape_cast %24 : vector<1x8x1xf32> to vector<8x1xf32>
    %c2_25 = arith.constant 2 : index
    %c0_26 = arith.constant 0 : index
    %c0_27 = arith.constant 0 : index
    %26 = vector.load %arg1[%c2_25, %c0_26, %c0_27] : memref<4x8x128xf32, #tpu.memory_space<vmem>>, vector<1x8x1xf32>
    %27 = vector.shape_cast %26 : vector<1x8x1xf32> to vector<8x1xf32>
    %c3_28 = arith.constant 3 : index
    %c0_29 = arith.constant 0 : index
    %c0_30 = arith.constant 0 : index
    %28 = vector.load %arg1[%c3_28, %c0_29, %c0_30] : memref<4x8x128xf32, #tpu.memory_space<vmem>>, vector<1x8x1xf32>
    %29 = vector.shape_cast %28 : vector<1x8x1xf32> to vector<8x1xf32>
    %30 = vector.broadcast %9 : vector<8x1xf32> to vector<8x128xf32>
    %31 = vector.broadcast %1 : vector<1x128xf32> to vector<8x128xf32>
    %32 = arith.mulf %30, %31 : vector<8x128xf32>
    %33 = vector.broadcast %23 : vector<8x1xf32> to vector<8x128xf32>
    %34 = vector.broadcast %2 : vector<1x128xf32> to vector<8x128xf32>
    %35 = arith.mulf %33, %34 : vector<8x128xf32>
    %36 = arith.addf %32, %35 : vector<8x128xf32>
    %37 = vector.broadcast %17 : f32 to vector<1x128xf32>
    %38 = arith.mulf %37, %3 : vector<1x128xf32>
    %39 = vector.broadcast %38 : vector<1x128xf32> to vector<8x128xf32>
    %40 = arith.addf %36, %39 : vector<8x128xf32>
    %41 = vector.broadcast %4 : vector<1x128xf32> to vector<8x128xf32>
    %42 = arith.addf %40, %41 : vector<8x128xf32>
    %cst_31 = arith.constant 0.000000e+00 : f32
    %43 = vector.broadcast %cst_31 : f32 to vector<8x128xf32>
    %44 = arith.maximumf %42, %43 : vector<8x128xf32>
    %45 = arith.truncf %44 : vector<8x128xf32> to vector<8x128xbf16>
    %c0_32 = arith.constant 0 : index
    %c0_33 = arith.constant 0 : index
    %46 = vector.load %arg6[%c0_32, %c0_33] : memref<128x128xbf16, #tpu.memory_space<vmem>>, vector<128x128xbf16>
    %cst_34 = arith.constant dense<0.000000e+00> : vector<8x128xf32>
    %47 = tpu.matmul %45, %46, %cst_34 {dimension_numbers = #tpu.dot_dimension_numbers<[1], [0], [0], [1], [0, 0, 1, 1], [], []>} : vector<8x128xbf16>, vector<128x128xbf16>, vector<8x128xf32> -> vector<8x128xf32>
    %48 = vector.broadcast %5 : vector<1x128xf32> to vector<8x128xf32>
    %49 = arith.addf %47, %48 : vector<8x128xf32>
    %cst_35 = arith.constant 0.000000e+00 : f32
    %50 = vector.broadcast %cst_35 : f32 to vector<8x128xf32>
    %51 = arith.maximumf %49, %50 : vector<8x128xf32>
    %52 = arith.truncf %51 : vector<8x128xf32> to vector<8x128xbf16>
    %c0_36 = arith.constant 0 : index
    %c0_37 = arith.constant 0 : index
    %53 = vector.load %arg8[%c0_36, %c0_37] : memref<128x128xbf16, #tpu.memory_space<vmem>>, vector<128x128xbf16>
    %cst_38 = arith.constant dense<0.000000e+00> : vector<8x128xf32>
    %54 = tpu.matmul %52, %53, %cst_38 {dimension_numbers = #tpu.dot_dimension_numbers<[1], [0], [0], [1], [0, 0, 1, 1], [], []>} : vector<8x128xbf16>, vector<128x128xbf16>, vector<8x128xf32> -> vector<8x128xf32>
    %55 = vector.broadcast %6 : vector<1x128xf32> to vector<8x128xf32>
    %56 = arith.addf %54, %55 : vector<8x128xf32>
    %cst_39 = arith.constant 0.000000e+00 : f32
    %57 = vector.broadcast %cst_39 : f32 to vector<8x128xf32>
    %58 = arith.maximumf %56, %57 : vector<8x128xf32>
    %59 = vector.broadcast %7 : vector<1x128xf32> to vector<8x128xf32>
    %60 = arith.mulf %58, %59 : vector<8x128xf32>
    %cst_40 = arith.constant dense<0.000000e+00> : vector<8xf32>
    %61 = vector.multi_reduction <add>, %60, %cst_40 [1] : vector<8x128xf32> to vector<8xf32>
    %62 = vector.shape_cast %61 : vector<8xf32> to vector<8x1xf32>
    %63 = vector.broadcast %8 : f32 to vector<8x1xf32>
    %64 = arith.addf %62, %63 : vector<8x1xf32>
    %65 = vector.broadcast %21 : f32 to vector<8x1xf32>
    %66 = arith.mulf %65, %64 : vector<8x1xf32>
    %cst_41 = arith.constant 3.000000e+00 : f32
    %67 = vector.broadcast %cst_41 : f32 to vector<8x1xf32>
    %68 = arith.divf %66, %67 : vector<8x1xf32>
    %69 = arith.addf %9, %68 : vector<8x1xf32>
    %70 = vector.broadcast %69 : vector<8x1xf32> to vector<8x128xf32>
    %71 = vector.broadcast %1 : vector<1x128xf32> to vector<8x128xf32>
    %72 = arith.mulf %70, %71 : vector<8x128xf32>
    %73 = vector.broadcast %25 : vector<8x1xf32> to vector<8x128xf32>
    %74 = vector.broadcast %2 : vector<1x128xf32> to vector<8x128xf32>
    %75 = arith.mulf %73, %74 : vector<8x128xf32>
    %76 = arith.addf %72, %75 : vector<8x128xf32>
    %77 = vector.broadcast %18 : f32 to vector<1x128xf32>
    %78 = arith.mulf %77, %3 : vector<1x128xf32>
    %79 = vector.broadcast %78 : vector<1x128xf32> to vector<8x128xf32>
    %80 = arith.addf %76, %79 : vector<8x128xf32>
    %81 = vector.broadcast %4 : vector<1x128xf32> to vector<8x128xf32>
    %82 = arith.addf %80, %81 : vector<8x128xf32>
    %cst_42 = arith.constant 0.000000e+00 : f32
    %83 = vector.broadcast %cst_42 : f32 to vector<8x128xf32>
    %84 = arith.maximumf %82, %83 : vector<8x128xf32>
    %85 = arith.truncf %84 : vector<8x128xf32> to vector<8x128xbf16>
    %c0_43 = arith.constant 0 : index
    %c0_44 = arith.constant 0 : index
    %86 = vector.load %arg6[%c0_43, %c0_44] : memref<128x128xbf16, #tpu.memory_space<vmem>>, vector<128x128xbf16>
    %cst_45 = arith.constant dense<0.000000e+00> : vector<8x128xf32>
    %87 = tpu.matmul %85, %86, %cst_45 {dimension_numbers = #tpu.dot_dimension_numbers<[1], [0], [0], [1], [0, 0, 1, 1], [], []>} : vector<8x128xbf16>, vector<128x128xbf16>, vector<8x128xf32> -> vector<8x128xf32>
    %88 = vector.broadcast %5 : vector<1x128xf32> to vector<8x128xf32>
    %89 = arith.addf %87, %88 : vector<8x128xf32>
    %cst_46 = arith.constant 0.000000e+00 : f32
    %90 = vector.broadcast %cst_46 : f32 to vector<8x128xf32>
    %91 = arith.maximumf %89, %90 : vector<8x128xf32>
    %92 = arith.truncf %91 : vector<8x128xf32> to vector<8x128xbf16>
    %c0_47 = arith.constant 0 : index
    %c0_48 = arith.constant 0 : index
    %93 = vector.load %arg8[%c0_47, %c0_48] : memref<128x128xbf16, #tpu.memory_space<vmem>>, vector<128x128xbf16>
    %cst_49 = arith.constant dense<0.000000e+00> : vector<8x128xf32>
    %94 = tpu.matmul %92, %93, %cst_49 {dimension_numbers = #tpu.dot_dimension_numbers<[1], [0], [0], [1], [0, 0, 1, 1], [], []>} : vector<8x128xbf16>, vector<128x128xbf16>, vector<8x128xf32> -> vector<8x128xf32>
    %95 = vector.broadcast %6 : vector<1x128xf32> to vector<8x128xf32>
    %96 = arith.addf %94, %95 : vector<8x128xf32>
    %cst_50 = arith.constant 0.000000e+00 : f32
    %97 = vector.broadcast %cst_50 : f32 to vector<8x128xf32>
    %98 = arith.maximumf %96, %97 : vector<8x128xf32>
    %99 = vector.broadcast %7 : vector<1x128xf32> to vector<8x128xf32>
    %100 = arith.mulf %98, %99 : vector<8x128xf32>
    %cst_51 = arith.constant dense<0.000000e+00> : vector<8xf32>
    %101 = vector.multi_reduction <add>, %100, %cst_51 [1] : vector<8x128xf32> to vector<8xf32>
    %102 = vector.shape_cast %101 : vector<8xf32> to vector<8x1xf32>
    %103 = vector.broadcast %8 : f32 to vector<8x1xf32>
    %104 = arith.addf %102, %103 : vector<8x1xf32>
    %cst_52 = arith.constant 3.000000e+00 : f32
    %105 = vector.broadcast %cst_52 : f32 to vector<8x1xf32>
    %106 = arith.divf %64, %105 : vector<8x1xf32>
    %107 = arith.subf %104, %106 : vector<8x1xf32>
    %108 = vector.broadcast %21 : f32 to vector<8x1xf32>
    %109 = arith.mulf %108, %107 : vector<8x1xf32>
    %110 = arith.addf %9, %109 : vector<8x1xf32>
    %111 = vector.broadcast %110 : vector<8x1xf32> to vector<8x128xf32>
    %112 = vector.broadcast %1 : vector<1x128xf32> to vector<8x128xf32>
    %113 = arith.mulf %111, %112 : vector<8x128xf32>
    %114 = vector.broadcast %27 : vector<8x1xf32> to vector<8x128xf32>
    %115 = vector.broadcast %2 : vector<1x128xf32> to vector<8x128xf32>
    %116 = arith.mulf %114, %115 : vector<8x128xf32>
    %117 = arith.addf %113, %116 : vector<8x128xf32>
    %118 = vector.broadcast %19 : f32 to vector<1x128xf32>
    %119 = arith.mulf %118, %3 : vector<1x128xf32>
    %120 = vector.broadcast %119 : vector<1x128xf32> to vector<8x128xf32>
    %121 = arith.addf %117, %120 : vector<8x128xf32>
    %122 = vector.broadcast %4 : vector<1x128xf32> to vector<8x128xf32>
    %123 = arith.addf %121, %122 : vector<8x128xf32>
    %cst_53 = arith.constant 0.000000e+00 : f32
    %124 = vector.broadcast %cst_53 : f32 to vector<8x128xf32>
    %125 = arith.maximumf %123, %124 : vector<8x128xf32>
    %126 = arith.truncf %125 : vector<8x128xf32> to vector<8x128xbf16>
    %c0_54 = arith.constant 0 : index
    %c0_55 = arith.constant 0 : index
    %127 = vector.load %arg6[%c0_54, %c0_55] : memref<128x128xbf16, #tpu.memory_space<vmem>>, vector<128x128xbf16>
    %cst_56 = arith.constant dense<0.000000e+00> : vector<8x128xf32>
    %128 = tpu.matmul %126, %127, %cst_56 {dimension_numbers = #tpu.dot_dimension_numbers<[1], [0], [0], [1], [0, 0, 1, 1], [], []>} : vector<8x128xbf16>, vector<128x128xbf16>, vector<8x128xf32> -> vector<8x128xf32>
    %129 = vector.broadcast %5 : vector<1x128xf32> to vector<8x128xf32>
    %130 = arith.addf %128, %129 : vector<8x128xf32>
    %cst_57 = arith.constant 0.000000e+00 : f32
    %131 = vector.broadcast %cst_57 : f32 to vector<8x128xf32>
    %132 = arith.maximumf %130, %131 : vector<8x128xf32>
    %133 = arith.truncf %132 : vector<8x128xf32> to vector<8x128xbf16>
    %c0_58 = arith.constant 0 : index
    %c0_59 = arith.constant 0 : index
    %134 = vector.load %arg8[%c0_58, %c0_59] : memref<128x128xbf16, #tpu.memory_space<vmem>>, vector<128x128xbf16>
    %cst_60 = arith.constant dense<0.000000e+00> : vector<8x128xf32>
    %135 = tpu.matmul %133, %134, %cst_60 {dimension_numbers = #tpu.dot_dimension_numbers<[1], [0], [0], [1], [0, 0, 1, 1], [], []>} : vector<8x128xbf16>, vector<128x128xbf16>, vector<8x128xf32> -> vector<8x128xf32>
    %136 = vector.broadcast %6 : vector<1x128xf32> to vector<8x128xf32>
    %137 = arith.addf %135, %136 : vector<8x128xf32>
    %cst_61 = arith.constant 0.000000e+00 : f32
    %138 = vector.broadcast %cst_61 : f32 to vector<8x128xf32>
    %139 = arith.maximumf %137, %138 : vector<8x128xf32>
    %140 = vector.broadcast %7 : vector<1x128xf32> to vector<8x128xf32>
    %141 = arith.mulf %139, %140 : vector<8x128xf32>
    %cst_62 = arith.constant dense<0.000000e+00> : vector<8xf32>
    %142 = vector.multi_reduction <add>, %141, %cst_62 [1] : vector<8x128xf32> to vector<8xf32>
    %143 = vector.shape_cast %142 : vector<8xf32> to vector<8x1xf32>
    %144 = vector.broadcast %8 : f32 to vector<8x1xf32>
    %145 = arith.addf %143, %144 : vector<8x1xf32>
    %146 = arith.subf %64, %104 : vector<8x1xf32>
    %147 = arith.addf %146, %145 : vector<8x1xf32>
    %148 = vector.broadcast %21 : f32 to vector<8x1xf32>
    %149 = arith.mulf %148, %147 : vector<8x1xf32>
    %150 = arith.addf %9, %149 : vector<8x1xf32>
    %151 = vector.broadcast %150 : vector<8x1xf32> to vector<8x128xf32>
    %152 = vector.broadcast %1 : vector<1x128xf32> to vector<8x128xf32>
    %153 = arith.mulf %151, %152 : vector<8x128xf32>
    %154 = vector.broadcast %29 : vector<8x1xf32> to vector<8x128xf32>
    %155 = vector.broadcast %2 : vector<1x128xf32> to vector<8x128xf32>
    %156 = arith.mulf %154, %155 : vector<8x128xf32>
    %157 = arith.addf %153, %156 : vector<8x128xf32>
    %158 = vector.broadcast %20 : f32 to vector<1x128xf32>
    %159 = arith.mulf %158, %3 : vector<1x128xf32>
    %160 = vector.broadcast %159 : vector<1x128xf32> to vector<8x128xf32>
    %161 = arith.addf %157, %160 : vector<8x128xf32>
    %162 = vector.broadcast %4 : vector<1x128xf32> to vector<8x128xf32>
    %163 = arith.addf %161, %162 : vector<8x128xf32>
    %cst_63 = arith.constant 0.000000e+00 : f32
    %164 = vector.broadcast %cst_63 : f32 to vector<8x128xf32>
    %165 = arith.maximumf %163, %164 : vector<8x128xf32>
    %166 = arith.truncf %165 : vector<8x128xf32> to vector<8x128xbf16>
    %c0_64 = arith.constant 0 : index
    %c0_65 = arith.constant 0 : index
    %167 = vector.load %arg6[%c0_64, %c0_65] : memref<128x128xbf16, #tpu.memory_space<vmem>>, vector<128x128xbf16>
    %cst_66 = arith.constant dense<0.000000e+00> : vector<8x128xf32>
    %168 = tpu.matmul %166, %167, %cst_66 {dimension_numbers = #tpu.dot_dimension_numbers<[1], [0], [0], [1], [0, 0, 1, 1], [], []>} : vector<8x128xbf16>, vector<128x128xbf16>, vector<8x128xf32> -> vector<8x128xf32>
    %169 = vector.broadcast %5 : vector<1x128xf32> to vector<8x128xf32>
    %170 = arith.addf %168, %169 : vector<8x128xf32>
    %cst_67 = arith.constant 0.000000e+00 : f32
    %171 = vector.broadcast %cst_67 : f32 to vector<8x128xf32>
    %172 = arith.maximumf %170, %171 : vector<8x128xf32>
    %173 = arith.truncf %172 : vector<8x128xf32> to vector<8x128xbf16>
    %c0_68 = arith.constant 0 : index
    %c0_69 = arith.constant 0 : index
    %174 = vector.load %arg8[%c0_68, %c0_69] : memref<128x128xbf16, #tpu.memory_space<vmem>>, vector<128x128xbf16>
    %cst_70 = arith.constant dense<0.000000e+00> : vector<8x128xf32>
    %175 = tpu.matmul %173, %174, %cst_70 {dimension_numbers = #tpu.dot_dimension_numbers<[1], [0], [0], [1], [0, 0, 1, 1], [], []>} : vector<8x128xbf16>, vector<128x128xbf16>, vector<8x128xf32> -> vector<8x128xf32>
    %176 = vector.broadcast %6 : vector<1x128xf32> to vector<8x128xf32>
    %177 = arith.addf %175, %176 : vector<8x128xf32>
    %cst_71 = arith.constant 0.000000e+00 : f32
    %178 = vector.broadcast %cst_71 : f32 to vector<8x128xf32>
    %179 = arith.maximumf %177, %178 : vector<8x128xf32>
    %180 = vector.broadcast %7 : vector<1x128xf32> to vector<8x128xf32>
    %181 = arith.mulf %179, %180 : vector<8x128xf32>
    %cst_72 = arith.constant dense<0.000000e+00> : vector<8xf32>
    %182 = vector.multi_reduction <add>, %181, %cst_72 [1] : vector<8x128xf32> to vector<8xf32>
    %183 = vector.shape_cast %182 : vector<8xf32> to vector<8x1xf32>
    %184 = vector.broadcast %8 : f32 to vector<8x1xf32>
    %185 = arith.addf %183, %184 : vector<8x1xf32>
    %186 = arith.addf %104, %145 : vector<8x1xf32>
    %cst_73 = arith.constant 3.000000e+00 : f32
    %187 = vector.broadcast %cst_73 : f32 to vector<8x1xf32>
    %188 = arith.mulf %187, %186 : vector<8x1xf32>
    %189 = arith.addf %64, %188 : vector<8x1xf32>
    %190 = arith.addf %189, %185 : vector<8x1xf32>
    %191 = vector.broadcast %21 : f32 to vector<8x1xf32>
    %192 = arith.mulf %191, %190 : vector<8x1xf32>
    %cst_74 = arith.constant 1.250000e-01 : f32
    %193 = vector.broadcast %cst_74 : f32 to vector<8x1xf32>
    %194 = arith.mulf %192, %193 : vector<8x1xf32>
    %195 = arith.addf %9, %194 : vector<8x1xf32>
    %c0_75 = arith.constant 0 : index
    %c1_76 = arith.constant 1 : index
    %196 = vector.load %arg11[%c0_75, %c1_76] : memref<8x128xf32, #tpu.memory_space<vmem>>, vector<8x1xf32>
    tpu.vector_store %arg11[%c0_75, %c1_76], %195 {strides = array<i32>} : memref<8x128xf32, #tpu.memory_space<vmem>>, vector<8x1xf32>,
    %c5 = arith.constant 5 : index
    %197 = memref.load %arg2[%c5] : memref<35xf32, #tpu.memory_space<smem>>
    %c6 = arith.constant 6 : index
    %198 = memref.load %arg2[%c6] : memref<35xf32, #tpu.memory_space<smem>>
    %c7 = arith.constant 7 : index
    %199 = memref.load %arg2[%c7] : memref<35xf32, #tpu.memory_space<smem>>
    %c8 = arith.constant 8 : index
    %200 = memref.load %arg2[%c8] : memref<35xf32, #tpu.memory_space<smem>>
    %c9 = arith.constant 9 : index
    %201 = memref.load %arg2[%c9] : memref<35xf32, #tpu.memory_space<smem>>
    %c0_77 = arith.constant 0 : index
    %c0_78 = arith.constant 0 : index
    %c1_79 = arith.constant 1 : index
    %202 = vector.load %arg1[%c0_77, %c0_78, %c1_79] : memref<4x8x128xf32, #tpu.memory_space<vmem>>, vector<1x8x1xf32>
    %203 = vector.shape_cast %202 : vector<1x8x1xf32> to vector<8x1xf32>
    %c1_80 = arith.constant 1 : index
    %c0_81 = arith.constant 0 : index
    %c1_82 = arith.constant 1 : index
    %204 = vector.load %arg1[%c1_80, %c0_81, %c1_82] : memref<4x8x128xf32, #tpu.memory_space<vmem>>, vector<1x8x1xf32>
    %205 = vector.shape_cast %204 : vector<1x8x1xf32> to vector<8x1xf32>
    %c2_83 = arith.constant 2 : index
    %c0_84 = arith.constant 0 : index
    %c1_85 = arith.constant 1 : index
    %206 = vector.load %arg1[%c2_83, %c0_84, %c1_85] : memref<4x8x128xf32, #tpu.memory_space<vmem>>, vector<1x8x1xf32>
    %207 = vector.shape_cast %206 : vector<1x8x1xf32> to vector<8x1xf32>
    %c3_86 = arith.constant 3 : index
    %c0_87 = arith.constant 0 : index
    %c1_88 = arith.constant 1 : index
    %208 = vector.load %arg1[%c3_86, %c0_87, %c1_88] : memref<4x8x128xf32, #tpu.memory_space<vmem>>, vector<1x8x1xf32>
    %209 = vector.shape_cast %208 : vector<1x8x1xf32> to vector<8x1xf32>
    %210 = vector.broadcast %195 : vector<8x1xf32> to vector<8x128xf32>
    %211 = vector.broadcast %1 : vector<1x128xf32> to vector<8x128xf32>
    %212 = arith.mulf %210, %211 : vector<8x128xf32>
    %213 = vector.broadcast %203 : vector<8x1xf32> to vector<8x128xf32>
    %214 = vector.broadcast %2 : vector<1x128xf32> to vector<8x128xf32>
    %215 = arith.mulf %213, %214 : vector<8x128xf32>
    %216 = arith.addf %212, %215 : vector<8x128xf32>
    %217 = vector.broadcast %197 : f32 to vector<1x128xf32>
    %218 = arith.mulf %217, %3 : vector<1x128xf32>
    %219 = vector.broadcast %218 : vector<1x128xf32> to vector<8x128xf32>
    %220 = arith.addf %216, %219 : vector<8x128xf32>
    %221 = vector.broadcast %4 : vector<1x128xf32> to vector<8x128xf32>
    %222 = arith.addf %220, %221 : vector<8x128xf32>
    %cst_89 = arith.constant 0.000000e+00 : f32
    %223 = vector.broadcast %cst_89 : f32 to vector<8x128xf32>
    %224 = arith.maximumf %222, %223 : vector<8x128xf32>
    %225 = arith.truncf %224 : vector<8x128xf32> to vector<8x128xbf16>
    %c0_90 = arith.constant 0 : index
    %c0_91 = arith.constant 0 : index
    %226 = vector.load %arg6[%c0_90, %c0_91] : memref<128x128xbf16, #tpu.memory_space<vmem>>, vector<128x128xbf16>
    %cst_92 = arith.constant dense<0.000000e+00> : vector<8x128xf32>
    %227 = tpu.matmul %225, %226, %cst_92 {dimension_numbers = #tpu.dot_dimension_numbers<[1], [0], [0], [1], [0, 0, 1, 1], [], []>} : vector<8x128xbf16>, vector<128x128xbf16>, vector<8x128xf32> -> vector<8x128xf32>
    %228 = vector.broadcast %5 : vector<1x128xf32> to vector<8x128xf32>
    %229 = arith.addf %227, %228 : vector<8x128xf32>
    %cst_93 = arith.constant 0.000000e+00 : f32
    %230 = vector.broadcast %cst_93 : f32 to vector<8x128xf32>
    %231 = arith.maximumf %229, %230 : vector<8x128xf32>
    %232 = arith.truncf %231 : vector<8x128xf32> to vector<8x128xbf16>
    %c0_94 = arith.constant 0 : index
    %c0_95 = arith.constant 0 : index
    %233 = vector.load %arg8[%c0_94, %c0_95] : memref<128x128xbf16, #tpu.memory_space<vmem>>, vector<128x128xbf16>
    %cst_96 = arith.constant dense<0.000000e+00> : vector<8x128xf32>
    %234 = tpu.matmul %232, %233, %cst_96 {dimension_numbers = #tpu.dot_dimension_numbers<[1], [0], [0], [1], [0, 0, 1, 1], [], []>} : vector<8x128xbf16>, vector<128x128xbf16>, vector<8x128xf32> -> vector<8x128xf32>
    %235 = vector.broadcast %6 : vector<1x128xf32> to vector<8x128xf32>
    %236 = arith.addf %234, %235 : vector<8x128xf32>
    %cst_97 = arith.constant 0.000000e+00 : f32
    %237 = vector.broadcast %cst_97 : f32 to vector<8x128xf32>
    %238 = arith.maximumf %236, %237 : vector<8x128xf32>
    %239 = vector.broadcast %7 : vector<1x128xf32> to vector<8x128xf32>
    %240 = arith.mulf %238, %239 : vector<8x128xf32>
    %cst_98 = arith.constant dense<0.000000e+00> : vector<8xf32>
    %241 = vector.multi_reduction <add>, %240, %cst_98 [1] : vector<8x128xf32> to vector<8xf32>
    %242 = vector.shape_cast %241 : vector<8xf32> to vector<8x1xf32>
    %243 = vector.broadcast %8 : f32 to vector<8x1xf32>
    %244 = arith.addf %242, %243 : vector<8x1xf32>
    %245 = vector.broadcast %201 : f32 to vector<8x1xf32>
    %246 = arith.mulf %245, %244 : vector<8x1xf32>
    %cst_99 = arith.constant 3.000000e+00 : f32
    %247 = vector.broadcast %cst_99 : f32 to vector<8x1xf32>
    %248 = arith.divf %246, %247 : vector<8x1xf32>
    %249 = arith.addf %195, %248 : vector<8x1xf32>
    %250 = vector.broadcast %249 : vector<8x1xf32> to vector<8x128xf32>
    %251 = vector.broadcast %1 : vector<1x128xf32> to vector<8x128xf32>
    %252 = arith.mulf %250, %251 : vector<8x128xf32>
    %253 = vector.broadcast %205 : vector<8x1xf32> to vector<8x128xf32>
    %254 = vector.broadcast %2 : vector<1x128xf32> to vector<8x128xf32>
    %255 = arith.mulf %253, %254 : vector<8x128xf32>
    %256 = arith.addf %252, %255 : vector<8x128xf32>
    %257 = vector.broadcast %198 : f32 to vector<1x128xf32>
    %258 = arith.mulf %257, %3 : vector<1x128xf32>
    %259 = vector.broadcast %258 : vector<1x128xf32> to vector<8x128xf32>
    %260 = arith.addf %256, %259 : vector<8x128xf32>
    %261 = vector.broadcast %4 : vector<1x128xf32> to vector<8x128xf32>
    %262 = arith.addf %260, %261 : vector<8x128xf32>
    %cst_100 = arith.constant 0.000000e+00 : f32
    %263 = vector.broadcast %cst_100 : f32 to vector<8x128xf32>
    %264 = arith.maximumf %262, %263 : vector<8x128xf32>
    %265 = arith.truncf %264 : vector<8x128xf32> to vector<8x128xbf16>
    %c0_101 = arith.constant 0 : index
    %c0_102 = arith.constant 0 : index
    %266 = vector.load %arg6[%c0_101, %c0_102] : memref<128x128xbf16, #tpu.memory_space<vmem>>, vector<128x128xbf16>
    %cst_103 = arith.constant dense<0.000000e+00> : vector<8x128xf32>
    %267 = tpu.matmul %265, %266, %cst_103 {dimension_numbers = #tpu.dot_dimension_numbers<[1], [0], [0], [1], [0, 0, 1, 1], [], []>} : vector<8x128xbf16>, vector<128x128xbf16>, vector<8x128xf32> -> vector<8x128xf32>
    %268 = vector.broadcast %5 : vector<1x128xf32> to vector<8x128xf32>
    %269 = arith.addf %267, %268 : vector<8x128xf32>
    %cst_104 = arith.constant 0.000000e+00 : f32
    %270 = vector.broadcast %cst_104 : f32 to vector<8x128xf32>
    %271 = arith.maximumf %269, %270 : vector<8x128xf32>
    %272 = arith.truncf %271 : vector<8x128xf32> to vector<8x128xbf16>
    %c0_105 = arith.constant 0 : index
    %c0_106 = arith.constant 0 : index
    %273 = vector.load %arg8[%c0_105, %c0_106] : memref<128x128xbf16, #tpu.memory_space<vmem>>, vector<128x128xbf16>
    %cst_107 = arith.constant dense<0.000000e+00> : vector<8x128xf32>
    %274 = tpu.matmul %272, %273, %cst_107 {dimension_numbers = #tpu.dot_dimension_numbers<[1], [0], [0], [1], [0, 0, 1, 1], [], []>} : vector<8x128xbf16>, vector<128x128xbf16>, vector<8x128xf32> -> vector<8x128xf32>
    %275 = vector.broadcast %6 : vector<1x128xf32> to vector<8x128xf32>
    %276 = arith.addf %274, %275 : vector<8x128xf32>
    %cst_108 = arith.constant 0.000000e+00 : f32
    %277 = vector.broadcast %cst_108 : f32 to vector<8x128xf32>
    %278 = arith.maximumf %276, %277 : vector<8x128xf32>
    %279 = vector.broadcast %7 : vector<1x128xf32> to vector<8x128xf32>
    %280 = arith.mulf %278, %279 : vector<8x128xf32>
    %cst_109 = arith.constant dense<0.000000e+00> : vector<8xf32>
    %281 = vector.multi_reduction <add>, %280, %cst_109 [1] : vector<8x128xf32> to vector<8xf32>
    %282 = vector.shape_cast %281 : vector<8xf32> to vector<8x1xf32>
    %283 = vector.broadcast %8 : f32 to vector<8x1xf32>
    %284 = arith.addf %282, %283 : vector<8x1xf32>
    %cst_110 = arith.constant 3.000000e+00 : f32
    %285 = vector.broadcast %cst_110 : f32 to vector<8x1xf32>
    %286 = arith.divf %244, %285 : vector<8x1xf32>
    %287 = arith.subf %284, %286 : vector<8x1xf32>
    %288 = vector.broadcast %201 : f32 to vector<8x1xf32>
    %289 = arith.mulf %288, %287 : vector<8x1xf32>
    %290 = arith.addf %195, %289 : vector<8x1xf32>
    %291 = vector.broadcast %290 : vector<8x1xf32> to vector<8x128xf32>
    %292 = vector.broadcast %1 : vector<1x128xf32> to vector<8x128xf32>
    %293 = arith.mulf %291, %292 : vector<8x128xf32>
    %294 = vector.broadcast %207 : vector<8x1xf32> to vector<8x128xf32>
    %295 = vector.broadcast %2 : vector<1x128xf32> to vector<8x128xf32>
    %296 = arith.mulf %294, %295 : vector<8x128xf32>
    %297 = arith.addf %293, %296 : vector<8x128xf32>
    %298 = vector.broadcast %199 : f32 to vector<1x128xf32>
    %299 = arith.mulf %298, %3 : vector<1x128xf32>
    %300 = vector.broadcast %299 : vector<1x128xf32> to vector<8x128xf32>
    %301 = arith.addf %297, %300 : vector<8x128xf32>
    %302 = vector.broadcast %4 : vector<1x128xf32> to vector<8x128xf32>
    %303 = arith.addf %301, %302 : vector<8x128xf32>
    %cst_111 = arith.constant 0.000000e+00 : f32
    %304 = vector.broadcast %cst_111 : f32 to vector<8x128xf32>
    %305 = arith.maximumf %303, %304 : vector<8x128xf32>
    %306 = arith.truncf %305 : vector<8x128xf32> to vector<8x128xbf16>
    %c0_112 = arith.constant 0 : index
    %c0_113 = arith.constant 0 : index
    %307 = vector.load %arg6[%c0_112, %c0_113] : memref<128x128xbf16, #tpu.memory_space<vmem>>, vector<128x128xbf16>
    %cst_114 = arith.constant dense<0.000000e+00> : vector<8x128xf32>
    %308 = tpu.matmul %306, %307, %cst_114 {dimension_numbers = #tpu.dot_dimension_numbers<[1], [0], [0], [1], [0, 0, 1, 1], [], []>} : vector<8x128xbf16>, vector<128x128xbf16>, vector<8x128xf32> -> vector<8x128xf32>
    %309 = vector.broadcast %5 : vector<1x128xf32> to vector<8x128xf32>
    %310 = arith.addf %308, %309 : vector<8x128xf32>
    %cst_115 = arith.constant 0.000000e+00 : f32
    %311 = vector.broadcast %cst_115 : f32 to vector<8x128xf32>
    %312 = arith.maximumf %310, %311 : vector<8x128xf32>
    %313 = arith.truncf %312 : vector<8x128xf32> to vector<8x128xbf16>
    %c0_116 = arith.constant 0 : index
    %c0_117 = arith.constant 0 : index
    %314 = vector.load %arg8[%c0_116, %c0_117] : memref<128x128xbf16, #tpu.memory_space<vmem>>, vector<128x128xbf16>
    %cst_118 = arith.constant dense<0.000000e+00> : vector<8x128xf32>
    %315 = tpu.matmul %313, %314, %cst_118 {dimension_numbers = #tpu.dot_dimension_numbers<[1], [0], [0], [1], [0, 0, 1, 1], [], []>} : vector<8x128xbf16>, vector<128x128xbf16>, vector<8x128xf32> -> vector<8x128xf32>
    %316 = vector.broadcast %6 : vector<1x128xf32> to vector<8x128xf32>
    %317 = arith.addf %315, %316 : vector<8x128xf32>
    %cst_119 = arith.constant 0.000000e+00 : f32
    %318 = vector.broadcast %cst_119 : f32 to vector<8x128xf32>
    %319 = arith.maximumf %317, %318 : vector<8x128xf32>
    %320 = vector.broadcast %7 : vector<1x128xf32> to vector<8x128xf32>
    %321 = arith.mulf %319, %320 : vector<8x128xf32>
    %cst_120 = arith.constant dense<0.000000e+00> : vector<8xf32>
    %322 = vector.multi_reduction <add>, %321, %cst_120 [1] : vector<8x128xf32> to vector<8xf32>
    %323 = vector.shape_cast %322 : vector<8xf32> to vector<8x1xf32>
    %324 = vector.broadcast %8 : f32 to vector<8x1xf32>
    %325 = arith.addf %323, %324 : vector<8x1xf32>
    %326 = arith.subf %244, %284 : vector<8x1xf32>
    %327 = arith.addf %326, %325 : vector<8x1xf32>
    %328 = vector.broadcast %201 : f32 to vector<8x1xf32>
    %329 = arith.mulf %328, %327 : vector<8x1xf32>
    %330 = arith.addf %195, %329 : vector<8x1xf32>
    %331 = vector.broadcast %330 : vector<8x1xf32> to vector<8x128xf32>
    %332 = vector.broadcast %1 : vector<1x128xf32> to vector<8x128xf32>
    %333 = arith.mulf %331, %332 : vector<8x128xf32>
    %334 = vector.broadcast %209 : vector<8x1xf32> to vector<8x128xf32>
    %335 = vector.broadcast %2 : vector<1x128xf32> to vector<8x128xf32>
    %336 = arith.mulf %334, %335 : vector<8x128xf32>
    %337 = arith.addf %333, %336 : vector<8x128xf32>
    %338 = vector.broadcast %200 : f32 to vector<1x128xf32>
    %339 = arith.mulf %338, %3 : vector<1x128xf32>
    %340 = vector.broadcast %339 : vector<1x128xf32> to vector<8x128xf32>
    %341 = arith.addf %337, %340 : vector<8x128xf32>
    %342 = vector.broadcast %4 : vector<1x128xf32> to vector<8x128xf32>
    %343 = arith.addf %341, %342 : vector<8x128xf32>
    %cst_121 = arith.constant 0.000000e+00 : f32
    %344 = vector.broadcast %cst_121 : f32 to vector<8x128xf32>
    %345 = arith.maximumf %343, %344 : vector<8x128xf32>
    %346 = arith.truncf %345 : vector<8x128xf32> to vector<8x128xbf16>
    %c0_122 = arith.constant 0 : index
    %c0_123 = arith.constant 0 : index
    %347 = vector.load %arg6[%c0_122, %c0_123] : memref<128x128xbf16, #tpu.memory_space<vmem>>, vector<128x128xbf16>
    %cst_124 = arith.constant dense<0.000000e+00> : vector<8x128xf32>
    %348 = tpu.matmul %346, %347, %cst_124 {dimension_numbers = #tpu.dot_dimension_numbers<[1], [0], [0], [1], [0, 0, 1, 1], [], []>} : vector<8x128xbf16>, vector<128x128xbf16>, vector<8x128xf32> -> vector<8x128xf32>
    %349 = vector.broadcast %5 : vector<1x128xf32> to vector<8x128xf32>
    %350 = arith.addf %348, %349 : vector<8x128xf32>
    %cst_125 = arith.constant 0.000000e+00 : f32
    %351 = vector.broadcast %cst_125 : f32 to vector<8x128xf32>
    %352 = arith.maximumf %350, %351 : vector<8x128xf32>
    %353 = arith.truncf %352 : vector<8x128xf32> to vector<8x128xbf16>
    %c0_126 = arith.constant 0 : index
    %c0_127 = arith.constant 0 : index
    %354 = vector.load %arg8[%c0_126, %c0_127] : memref<128x128xbf16, #tpu.memory_space<vmem>>, vector<128x128xbf16>
    %cst_128 = arith.constant dense<0.000000e+00> : vector<8x128xf32>
    %355 = tpu.matmul %353, %354, %cst_128 {dimension_numbers = #tpu.dot_dimension_numbers<[1], [0], [0], [1], [0, 0, 1, 1], [], []>} : vector<8x128xbf16>, vector<128x128xbf16>, vector<8x128xf32> -> vector<8x128xf32>
    %356 = vector.broadcast %6 : vector<1x128xf32> to vector<8x128xf32>
    %357 = arith.addf %355, %356 : vector<8x128xf32>
    %cst_129 = arith.constant 0.000000e+00 : f32
    %358 = vector.broadcast %cst_129 : f32 to vector<8x128xf32>
    %359 = arith.maximumf %357, %358 : vector<8x128xf32>
    %360 = vector.broadcast %7 : vector<1x128xf32> to vector<8x128xf32>
    %361 = arith.mulf %359, %360 : vector<8x128xf32>
    %cst_130 = arith.constant dense<0.000000e+00> : vector<8xf32>
    %362 = vector.multi_reduction <add>, %361, %cst_130 [1] : vector<8x128xf32> to vector<8xf32>
    %363 = vector.shape_cast %362 : vector<8xf32> to vector<8x1xf32>
    %364 = vector.broadcast %8 : f32 to vector<8x1xf32>
    %365 = arith.addf %363, %364 : vector<8x1xf32>
    %366 = arith.addf %284, %325 : vector<8x1xf32>
    %cst_131 = arith.constant 3.000000e+00 : f32
    %367 = vector.broadcast %cst_131 : f32 to vector<8x1xf32>
    %368 = arith.mulf %367, %366 : vector<8x1xf32>
    %369 = arith.addf %244, %368 : vector<8x1xf32>
    %370 = arith.addf %369, %365 : vector<8x1xf32>
    %371 = vector.broadcast %201 : f32 to vector<8x1xf32>
    %372 = arith.mulf %371, %370 : vector<8x1xf32>
    %cst_132 = arith.constant 1.250000e-01 : f32
    %373 = vector.broadcast %cst_132 : f32 to vector<8x1xf32>
    %374 = arith.mulf %372, %373 : vector<8x1xf32>
    %375 = arith.addf %195, %374 : vector<8x1xf32>
    %c0_133 = arith.constant 0 : index
    %c2_134 = arith.constant 2 : index
    %376 = vector.load %arg11[%c0_133, %c2_134] : memref<8x128xf32, #tpu.memory_space<vmem>>, vector<8x1xf32>
    tpu.vector_store %arg11[%c0_133, %c2_134], %375 {strides = array<i32>} : memref<8x128xf32, #tpu.memory_space<vmem>>, vector<8x1xf32>,
    %c10 = arith.constant 10 : index
    %377 = memref.load %arg2[%c10] : memref<35xf32, #tpu.memory_space<smem>>
    %c11 = arith.constant 11 : index
    %378 = memref.load %arg2[%c11] : memref<35xf32, #tpu.memory_space<smem>>
    %c12 = arith.constant 12 : index
    %379 = memref.load %arg2[%c12] : memref<35xf32, #tpu.memory_space<smem>>
    %c13 = arith.constant 13 : index
    %380 = memref.load %arg2[%c13] : memref<35xf32, #tpu.memory_space<smem>>
    %c14 = arith.constant 14 : index
    %381 = memref.load %arg2[%c14] : memref<35xf32, #tpu.memory_space<smem>>
    %c0_135 = arith.constant 0 : index
    %c0_136 = arith.constant 0 : index
    %c2_137 = arith.constant 2 : index
    %382 = vector.load %arg1[%c0_135, %c0_136, %c2_137] : memref<4x8x128xf32, #tpu.memory_space<vmem>>, vector<1x8x1xf32>
    %383 = vector.shape_cast %382 : vector<1x8x1xf32> to vector<8x1xf32>
    %c1_138 = arith.constant 1 : index
    %c0_139 = arith.constant 0 : index
    %c2_140 = arith.constant 2 : index
    %384 = vector.load %arg1[%c1_138, %c0_139, %c2_140] : memref<4x8x128xf32, #tpu.memory_space<vmem>>, vector<1x8x1xf32>
    %385 = vector.shape_cast %384 : vector<1x8x1xf32> to vector<8x1xf32>
    %c2_141 = arith.constant 2 : index
    %c0_142 = arith.constant 0 : index
    %c2_143 = arith.constant 2 : index
    %386 = vector.load %arg1[%c2_141, %c0_142, %c2_143] : memref<4x8x128xf32, #tpu.memory_space<vmem>>, vector<1x8x1xf32>
    %387 = vector.shape_cast %386 : vector<1x8x1xf32> to vector<8x1xf32>
    %c3_144 = arith.constant 3 : index
    %c0_145 = arith.constant 0 : index
    %c2_146 = arith.constant 2 : index
    %388 = vector.load %arg1[%c3_144, %c0_145, %c2_146] : memref<4x8x128xf32, #tpu.memory_space<vmem>>, vector<1x8x1xf32>
    %389 = vector.shape_cast %388 : vector<1x8x1xf32> to vector<8x1xf32>
    %390 = vector.broadcast %375 : vector<8x1xf32> to vector<8x128xf32>
    %391 = vector.broadcast %1 : vector<1x128xf32> to vector<8x128xf32>
    %392 = arith.mulf %390, %391 : vector<8x128xf32>
    %393 = vector.broadcast %383 : vector<8x1xf32> to vector<8x128xf32>
    %394 = vector.broadcast %2 : vector<1x128xf32> to vector<8x128xf32>
    %395 = arith.mulf %393, %394 : vector<8x128xf32>
    %396 = arith.addf %392, %395 : vector<8x128xf32>
    %397 = vector.broadcast %377 : f32 to vector<1x128xf32>
    %398 = arith.mulf %397, %3 : vector<1x128xf32>
    %399 = vector.broadcast %398 : vector<1x128xf32> to vector<8x128xf32>
    %400 = arith.addf %396, %399 : vector<8x128xf32>
    %401 = vector.broadcast %4 : vector<1x128xf32> to vector<8x128xf32>
    %402 = arith.addf %400, %401 : vector<8x128xf32>
    %cst_147 = arith.constant 0.000000e+00 : f32
    %403 = vector.broadcast %cst_147 : f32 to vector<8x128xf32>
    %404 = arith.maximumf %402, %403 : vector<8x128xf32>
    %405 = arith.truncf %404 : vector<8x128xf32> to vector<8x128xbf16>
    %c0_148 = arith.constant 0 : index
    %c0_149 = arith.constant 0 : index
    %406 = vector.load %arg6[%c0_148, %c0_149] : memref<128x128xbf16, #tpu.memory_space<vmem>>, vector<128x128xbf16>
    %cst_150 = arith.constant dense<0.000000e+00> : vector<8x128xf32>
    %407 = tpu.matmul %405, %406, %cst_150 {dimension_numbers = #tpu.dot_dimension_numbers<[1], [0], [0], [1], [0, 0, 1, 1], [], []>} : vector<8x128xbf16>, vector<128x128xbf16>, vector<8x128xf32> -> vector<8x128xf32>
    %408 = vector.broadcast %5 : vector<1x128xf32> to vector<8x128xf32>
    %409 = arith.addf %407, %408 : vector<8x128xf32>
    %cst_151 = arith.constant 0.000000e+00 : f32
    %410 = vector.broadcast %cst_151 : f32 to vector<8x128xf32>
    %411 = arith.maximumf %409, %410 : vector<8x128xf32>
    %412 = arith.truncf %411 : vector<8x128xf32> to vector<8x128xbf16>
    %c0_152 = arith.constant 0 : index
    %c0_153 = arith.constant 0 : index
    %413 = vector.load %arg8[%c0_152, %c0_153] : memref<128x128xbf16, #tpu.memory_space<vmem>>, vector<128x128xbf16>
    %cst_154 = arith.constant dense<0.000000e+00> : vector<8x128xf32>
    %414 = tpu.matmul %412, %413, %cst_154 {dimension_numbers = #tpu.dot_dimension_numbers<[1], [0], [0], [1], [0, 0, 1, 1], [], []>} : vector<8x128xbf16>, vector<128x128xbf16>, vector<8x128xf32> -> vector<8x128xf32>
    %415 = vector.broadcast %6 : vector<1x128xf32> to vector<8x128xf32>
    %416 = arith.addf %414, %415 : vector<8x128xf32>
    %cst_155 = arith.constant 0.000000e+00 : f32
    %417 = vector.broadcast %cst_155 : f32 to vector<8x128xf32>
    %418 = arith.maximumf %416, %417 : vector<8x128xf32>
    %419 = vector.broadcast %7 : vector<1x128xf32> to vector<8x128xf32>
    %420 = arith.mulf %418, %419 : vector<8x128xf32>
    %cst_156 = arith.constant dense<0.000000e+00> : vector<8xf32>
    %421 = vector.multi_reduction <add>, %420, %cst_156 [1] : vector<8x128xf32> to vector<8xf32>
    %422 = vector.shape_cast %421 : vector<8xf32> to vector<8x1xf32>
    %423 = vector.broadcast %8 : f32 to vector<8x1xf32>
    %424 = arith.addf %422, %423 : vector<8x1xf32>
    %425 = vector.broadcast %381 : f32 to vector<8x1xf32>
    %426 = arith.mulf %425, %424 : vector<8x1xf32>
    %cst_157 = arith.constant 3.000000e+00 : f32
    %427 = vector.broadcast %cst_157 : f32 to vector<8x1xf32>
    %428 = arith.divf %426, %427 : vector<8x1xf32>
    %429 = arith.addf %375, %428 : vector<8x1xf32>
    %430 = vector.broadcast %429 : vector<8x1xf32> to vector<8x128xf32>
    %431 = vector.broadcast %1 : vector<1x128xf32> to vector<8x128xf32>
    %432 = arith.mulf %430, %431 : vector<8x128xf32>
    %433 = vector.broadcast %385 : vector<8x1xf32> to vector<8x128xf32>
    %434 = vector.broadcast %2 : vector<1x128xf32> to vector<8x128xf32>
    %435 = arith.mulf %433, %434 : vector<8x128xf32>
    %436 = arith.addf %432, %435 : vector<8x128xf32>
    %437 = vector.broadcast %378 : f32 to vector<1x128xf32>
    %438 = arith.mulf %437, %3 : vector<1x128xf32>
    %439 = vector.broadcast %438 : vector<1x128xf32> to vector<8x128xf32>
    %440 = arith.addf %436, %439 : vector<8x128xf32>
    %441 = vector.broadcast %4 : vector<1x128xf32> to vector<8x128xf32>
    %442 = arith.addf %440, %441 : vector<8x128xf32>
    %cst_158 = arith.constant 0.000000e+00 : f32
    %443 = vector.broadcast %cst_158 : f32 to vector<8x128xf32>
    %444 = arith.maximumf %442, %443 : vector<8x128xf32>
    %445 = arith.truncf %444 : vector<8x128xf32> to vector<8x128xbf16>
    %c0_159 = arith.constant 0 : index
    %c0_160 = arith.constant 0 : index
    %446 = vector.load %arg6[%c0_159, %c0_160] : memref<128x128xbf16, #tpu.memory_space<vmem>>, vector<128x128xbf16>
    %cst_161 = arith.constant dense<0.000000e+00> : vector<8x128xf32>
    %447 = tpu.matmul %445, %446, %cst_161 {dimension_numbers = #tpu.dot_dimension_numbers<[1], [0], [0], [1], [0, 0, 1, 1], [], []>} : vector<8x128xbf16>, vector<128x128xbf16>, vector<8x128xf32> -> vector<8x128xf32>
    %448 = vector.broadcast %5 : vector<1x128xf32> to vector<8x128xf32>
    %449 = arith.addf %447, %448 : vector<8x128xf32>
    %cst_162 = arith.constant 0.000000e+00 : f32
    %450 = vector.broadcast %cst_162 : f32 to vector<8x128xf32>
    %451 = arith.maximumf %449, %450 : vector<8x128xf32>
    %452 = arith.truncf %451 : vector<8x128xf32> to vector<8x128xbf16>
    %c0_163 = arith.constant 0 : index
    %c0_164 = arith.constant 0 : index
    %453 = vector.load %arg8[%c0_163, %c0_164] : memref<128x128xbf16, #tpu.memory_space<vmem>>, vector<128x128xbf16>
    %cst_165 = arith.constant dense<0.000000e+00> : vector<8x128xf32>
    %454 = tpu.matmul %452, %453, %cst_165 {dimension_numbers = #tpu.dot_dimension_numbers<[1], [0], [0], [1], [0, 0, 1, 1], [], []>} : vector<8x128xbf16>, vector<128x128xbf16>, vector<8x128xf32> -> vector<8x128xf32>
    %455 = vector.broadcast %6 : vector<1x128xf32> to vector<8x128xf32>
    %456 = arith.addf %454, %455 : vector<8x128xf32>
    %cst_166 = arith.constant 0.000000e+00 : f32
    %457 = vector.broadcast %cst_166 : f32 to vector<8x128xf32>
    %458 = arith.maximumf %456, %457 : vector<8x128xf32>
    %459 = vector.broadcast %7 : vector<1x128xf32> to vector<8x128xf32>
    %460 = arith.mulf %458, %459 : vector<8x128xf32>
    %cst_167 = arith.constant dense<0.000000e+00> : vector<8xf32>
    %461 = vector.multi_reduction <add>, %460, %cst_167 [1] : vector<8x128xf32> to vector<8xf32>
    %462 = vector.shape_cast %461 : vector<8xf32> to vector<8x1xf32>
    %463 = vector.broadcast %8 : f32 to vector<8x1xf32>
    %464 = arith.addf %462, %463 : vector<8x1xf32>
    %cst_168 = arith.constant 3.000000e+00 : f32
    %465 = vector.broadcast %cst_168 : f32 to vector<8x1xf32>
    %466 = arith.divf %424, %465 : vector<8x1xf32>
    %467 = arith.subf %464, %466 : vector<8x1xf32>
    %468 = vector.broadcast %381 : f32 to vector<8x1xf32>
    %469 = arith.mulf %468, %467 : vector<8x1xf32>
    %470 = arith.addf %375, %469 : vector<8x1xf32>
    %471 = vector.broadcast %470 : vector<8x1xf32> to vector<8x128xf32>
    %472 = vector.broadcast %1 : vector<1x128xf32> to vector<8x128xf32>
    %473 = arith.mulf %471, %472 : vector<8x128xf32>
    %474 = vector.broadcast %387 : vector<8x1xf32> to vector<8x128xf32>
    %475 = vector.broadcast %2 : vector<1x128xf32> to vector<8x128xf32>
    %476 = arith.mulf %474, %475 : vector<8x128xf32>
    %477 = arith.addf %473, %476 : vector<8x128xf32>
    %478 = vector.broadcast %379 : f32 to vector<1x128xf32>
    %479 = arith.mulf %478, %3 : vector<1x128xf32>
    %480 = vector.broadcast %479 : vector<1x128xf32> to vector<8x128xf32>
    %481 = arith.addf %477, %480 : vector<8x128xf32>
    %482 = vector.broadcast %4 : vector<1x128xf32> to vector<8x128xf32>
    %483 = arith.addf %481, %482 : vector<8x128xf32>
    %cst_169 = arith.constant 0.000000e+00 : f32
    %484 = vector.broadcast %cst_169 : f32 to vector<8x128xf32>
    %485 = arith.maximumf %483, %484 : vector<8x128xf32>
    %486 = arith.truncf %485 : vector<8x128xf32> to vector<8x128xbf16>
    %c0_170 = arith.constant 0 : index
    %c0_171 = arith.constant 0 : index
    %487 = vector.load %arg6[%c0_170, %c0_171] : memref<128x128xbf16, #tpu.memory_space<vmem>>, vector<128x128xbf16>
    %cst_172 = arith.constant dense<0.000000e+00> : vector<8x128xf32>
    %488 = tpu.matmul %486, %487, %cst_172 {dimension_numbers = #tpu.dot_dimension_numbers<[1], [0], [0], [1], [0, 0, 1, 1], [], []>} : vector<8x128xbf16>, vector<128x128xbf16>, vector<8x128xf32> -> vector<8x128xf32>
    %489 = vector.broadcast %5 : vector<1x128xf32> to vector<8x128xf32>
    %490 = arith.addf %488, %489 : vector<8x128xf32>
    %cst_173 = arith.constant 0.000000e+00 : f32
    %491 = vector.broadcast %cst_173 : f32 to vector<8x128xf32>
    %492 = arith.maximumf %490, %491 : vector<8x128xf32>
    %493 = arith.truncf %492 : vector<8x128xf32> to vector<8x128xbf16>
    %c0_174 = arith.constant 0 : index
    %c0_175 = arith.constant 0 : index
    %494 = vector.load %arg8[%c0_174, %c0_175] : memref<128x128xbf16, #tpu.memory_space<vmem>>, vector<128x128xbf16>
    %cst_176 = arith.constant dense<0.000000e+00> : vector<8x128xf32>
    %495 = tpu.matmul %493, %494, %cst_176 {dimension_numbers = #tpu.dot_dimension_numbers<[1], [0], [0], [1], [0, 0, 1, 1], [], []>} : vector<8x128xbf16>, vector<128x128xbf16>, vector<8x128xf32> -> vector<8x128xf32>
    %496 = vector.broadcast %6 : vector<1x128xf32> to vector<8x128xf32>
    %497 = arith.addf %495, %496 : vector<8x128xf32>
    %cst_177 = arith.constant 0.000000e+00 : f32
    %498 = vector.broadcast %cst_177 : f32 to vector<8x128xf32>
    %499 = arith.maximumf %497, %498 : vector<8x128xf32>
    %500 = vector.broadcast %7 : vector<1x128xf32> to vector<8x128xf32>
    %501 = arith.mulf %499, %500 : vector<8x128xf32>
    %cst_178 = arith.constant dense<0.000000e+00> : vector<8xf32>
    %502 = vector.multi_reduction <add>, %501, %cst_178 [1] : vector<8x128xf32> to vector<8xf32>
    %503 = vector.shape_cast %502 : vector<8xf32> to vector<8x1xf32>
    %504 = vector.broadcast %8 : f32 to vector<8x1xf32>
    %505 = arith.addf %503, %504 : vector<8x1xf32>
    %506 = arith.subf %424, %464 : vector<8x1xf32>
    %507 = arith.addf %506, %505 : vector<8x1xf32>
    %508 = vector.broadcast %381 : f32 to vector<8x1xf32>
    %509 = arith.mulf %508, %507 : vector<8x1xf32>
    %510 = arith.addf %375, %509 : vector<8x1xf32>
    %511 = vector.broadcast %510 : vector<8x1xf32> to vector<8x128xf32>
    %512 = vector.broadcast %1 : vector<1x128xf32> to vector<8x128xf32>
    %513 = arith.mulf %511, %512 : vector<8x128xf32>
    %514 = vector.broadcast %389 : vector<8x1xf32> to vector<8x128xf32>
    %515 = vector.broadcast %2 : vector<1x128xf32> to vector<8x128xf32>
    %516 = arith.mulf %514, %515 : vector<8x128xf32>
    %517 = arith.addf %513, %516 : vector<8x128xf32>
    %518 = vector.broadcast %380 : f32 to vector<1x128xf32>
    %519 = arith.mulf %518, %3 : vector<1x128xf32>
    %520 = vector.broadcast %519 : vector<1x128xf32> to vector<8x128xf32>
    %521 = arith.addf %517, %520 : vector<8x128xf32>
    %522 = vector.broadcast %4 : vector<1x128xf32> to vector<8x128xf32>
    %523 = arith.addf %521, %522 : vector<8x128xf32>
    %cst_179 = arith.constant 0.000000e+00 : f32
    %524 = vector.broadcast %cst_179 : f32 to vector<8x128xf32>
    %525 = arith.maximumf %523, %524 : vector<8x128xf32>
    %526 = arith.truncf %525 : vector<8x128xf32> to vector<8x128xbf16>
    %c0_180 = arith.constant 0 : index
    %c0_181 = arith.constant 0 : index
    %527 = vector.load %arg6[%c0_180, %c0_181] : memref<128x128xbf16, #tpu.memory_space<vmem>>, vector<128x128xbf16>
    %cst_182 = arith.constant dense<0.000000e+00> : vector<8x128xf32>
    %528 = tpu.matmul %526, %527, %cst_182 {dimension_numbers = #tpu.dot_dimension_numbers<[1], [0], [0], [1], [0, 0, 1, 1], [], []>} : vector<8x128xbf16>, vector<128x128xbf16>, vector<8x128xf32> -> vector<8x128xf32>
    %529 = vector.broadcast %5 : vector<1x128xf32> to vector<8x128xf32>
    %530 = arith.addf %528, %529 : vector<8x128xf32>
    %cst_183 = arith.constant 0.000000e+00 : f32
    %531 = vector.broadcast %cst_183 : f32 to vector<8x128xf32>
    %532 = arith.maximumf %530, %531 : vector<8x128xf32>
    %533 = arith.truncf %532 : vector<8x128xf32> to vector<8x128xbf16>
    %c0_184 = arith.constant 0 : index
    %c0_185 = arith.constant 0 : index
    %534 = vector.load %arg8[%c0_184, %c0_185] : memref<128x128xbf16, #tpu.memory_space<vmem>>, vector<128x128xbf16>
    %cst_186 = arith.constant dense<0.000000e+00> : vector<8x128xf32>
    %535 = tpu.matmul %533, %534, %cst_186 {dimension_numbers = #tpu.dot_dimension_numbers<[1], [0], [0], [1], [0, 0, 1, 1], [], []>} : vector<8x128xbf16>, vector<128x128xbf16>, vector<8x128xf32> -> vector<8x128xf32>
    %536 = vector.broadcast %6 : vector<1x128xf32> to vector<8x128xf32>
    %537 = arith.addf %535, %536 : vector<8x128xf32>
    %cst_187 = arith.constant 0.000000e+00 : f32
    %538 = vector.broadcast %cst_187 : f32 to vector<8x128xf32>
    %539 = arith.maximumf %537, %538 : vector<8x128xf32>
    %540 = vector.broadcast %7 : vector<1x128xf32> to vector<8x128xf32>
    %541 = arith.mulf %539, %540 : vector<8x128xf32>
    %cst_188 = arith.constant dense<0.000000e+00> : vector<8xf32>
    %542 = vector.multi_reduction <add>, %541, %cst_188 [1] : vector<8x128xf32> to vector<8xf32>
    %543 = vector.shape_cast %542 : vector<8xf32> to vector<8x1xf32>
    %544 = vector.broadcast %8 : f32 to vector<8x1xf32>
    %545 = arith.addf %543, %544 : vector<8x1xf32>
    %546 = arith.addf %464, %505 : vector<8x1xf32>
    %cst_189 = arith.constant 3.000000e+00 : f32
    %547 = vector.broadcast %cst_189 : f32 to vector<8x1xf32>
    %548 = arith.mulf %547, %546 : vector<8x1xf32>
    %549 = arith.addf %424, %548 : vector<8x1xf32>
    %550 = arith.addf %549, %545 : vector<8x1xf32>
    %551 = vector.broadcast %381 : f32 to vector<8x1xf32>
    %552 = arith.mulf %551, %550 : vector<8x1xf32>
    %cst_190 = arith.constant 1.250000e-01 : f32
    %553 = vector.broadcast %cst_190 : f32 to vector<8x1xf32>
    %554 = arith.mulf %552, %553 : vector<8x1xf32>
    %555 = arith.addf %375, %554 : vector<8x1xf32>
    %c0_191 = arith.constant 0 : index
    %c3_192 = arith.constant 3 : index
    %556 = vector.load %arg11[%c0_191, %c3_192] : memref<8x128xf32, #tpu.memory_space<vmem>>, vector<8x1xf32>
    tpu.vector_store %arg11[%c0_191, %c3_192], %555 {strides = array<i32>} : memref<8x128xf32, #tpu.memory_space<vmem>>, vector<8x1xf32>,
    %c15 = arith.constant 15 : index
    %557 = memref.load %arg2[%c15] : memref<35xf32, #tpu.memory_space<smem>>
    %c16 = arith.constant 16 : index
    %558 = memref.load %arg2[%c16] : memref<35xf32, #tpu.memory_space<smem>>
    %c17 = arith.constant 17 : index
    %559 = memref.load %arg2[%c17] : memref<35xf32, #tpu.memory_space<smem>>
    %c18 = arith.constant 18 : index
    %560 = memref.load %arg2[%c18] : memref<35xf32, #tpu.memory_space<smem>>
    %c19 = arith.constant 19 : index
    %561 = memref.load %arg2[%c19] : memref<35xf32, #tpu.memory_space<smem>>
    %c0_193 = arith.constant 0 : index
    %c0_194 = arith.constant 0 : index
    %c3_195 = arith.constant 3 : index
    %562 = vector.load %arg1[%c0_193, %c0_194, %c3_195] : memref<4x8x128xf32, #tpu.memory_space<vmem>>, vector<1x8x1xf32>
    %563 = vector.shape_cast %562 : vector<1x8x1xf32> to vector<8x1xf32>
    %c1_196 = arith.constant 1 : index
    %c0_197 = arith.constant 0 : index
    %c3_198 = arith.constant 3 : index
    %564 = vector.load %arg1[%c1_196, %c0_197, %c3_198] : memref<4x8x128xf32, #tpu.memory_space<vmem>>, vector<1x8x1xf32>
    %565 = vector.shape_cast %564 : vector<1x8x1xf32> to vector<8x1xf32>
    %c2_199 = arith.constant 2 : index
    %c0_200 = arith.constant 0 : index
    %c3_201 = arith.constant 3 : index
    %566 = vector.load %arg1[%c2_199, %c0_200, %c3_201] : memref<4x8x128xf32, #tpu.memory_space<vmem>>, vector<1x8x1xf32>
    %567 = vector.shape_cast %566 : vector<1x8x1xf32> to vector<8x1xf32>
    %c3_202 = arith.constant 3 : index
    %c0_203 = arith.constant 0 : index
    %c3_204 = arith.constant 3 : index
    %568 = vector.load %arg1[%c3_202, %c0_203, %c3_204] : memref<4x8x128xf32, #tpu.memory_space<vmem>>, vector<1x8x1xf32>
    %569 = vector.shape_cast %568 : vector<1x8x1xf32> to vector<8x1xf32>
    %570 = vector.broadcast %555 : vector<8x1xf32> to vector<8x128xf32>
    %571 = vector.broadcast %1 : vector<1x128xf32> to vector<8x128xf32>
    %572 = arith.mulf %570, %571 : vector<8x128xf32>
    %573 = vector.broadcast %563 : vector<8x1xf32> to vector<8x128xf32>
    %574 = vector.broadcast %2 : vector<1x128xf32> to vector<8x128xf32>
    %575 = arith.mulf %573, %574 : vector<8x128xf32>
    %576 = arith.addf %572, %575 : vector<8x128xf32>
    %577 = vector.broadcast %557 : f32 to vector<1x128xf32>
    %578 = arith.mulf %577, %3 : vector<1x128xf32>
    %579 = vector.broadcast %578 : vector<1x128xf32> to vector<8x128xf32>
    %580 = arith.addf %576, %579 : vector<8x128xf32>
    %581 = vector.broadcast %4 : vector<1x128xf32> to vector<8x128xf32>
    %582 = arith.addf %580, %581 : vector<8x128xf32>
    %cst_205 = arith.constant 0.000000e+00 : f32
    %583 = vector.broadcast %cst_205 : f32 to vector<8x128xf32>
    %584 = arith.maximumf %582, %583 : vector<8x128xf32>
    %585 = arith.truncf %584 : vector<8x128xf32> to vector<8x128xbf16>
    %c0_206 = arith.constant 0 : index
    %c0_207 = arith.constant 0 : index
    %586 = vector.load %arg6[%c0_206, %c0_207] : memref<128x128xbf16, #tpu.memory_space<vmem>>, vector<128x128xbf16>
    %cst_208 = arith.constant dense<0.000000e+00> : vector<8x128xf32>
    %587 = tpu.matmul %585, %586, %cst_208 {dimension_numbers = #tpu.dot_dimension_numbers<[1], [0], [0], [1], [0, 0, 1, 1], [], []>} : vector<8x128xbf16>, vector<128x128xbf16>, vector<8x128xf32> -> vector<8x128xf32>
    %588 = vector.broadcast %5 : vector<1x128xf32> to vector<8x128xf32>
    %589 = arith.addf %587, %588 : vector<8x128xf32>
    %cst_209 = arith.constant 0.000000e+00 : f32
    %590 = vector.broadcast %cst_209 : f32 to vector<8x128xf32>
    %591 = arith.maximumf %589, %590 : vector<8x128xf32>
    %592 = arith.truncf %591 : vector<8x128xf32> to vector<8x128xbf16>
    %c0_210 = arith.constant 0 : index
    %c0_211 = arith.constant 0 : index
    %593 = vector.load %arg8[%c0_210, %c0_211] : memref<128x128xbf16, #tpu.memory_space<vmem>>, vector<128x128xbf16>
    %cst_212 = arith.constant dense<0.000000e+00> : vector<8x128xf32>
    %594 = tpu.matmul %592, %593, %cst_212 {dimension_numbers = #tpu.dot_dimension_numbers<[1], [0], [0], [1], [0, 0, 1, 1], [], []>} : vector<8x128xbf16>, vector<128x128xbf16>, vector<8x128xf32> -> vector<8x128xf32>
    %595 = vector.broadcast %6 : vector<1x128xf32> to vector<8x128xf32>
    %596 = arith.addf %594, %595 : vector<8x128xf32>
    %cst_213 = arith.constant 0.000000e+00 : f32
    %597 = vector.broadcast %cst_213 : f32 to vector<8x128xf32>
    %598 = arith.maximumf %596, %597 : vector<8x128xf32>
    %599 = vector.broadcast %7 : vector<1x128xf32> to vector<8x128xf32>
    %600 = arith.mulf %598, %599 : vector<8x128xf32>
    %cst_214 = arith.constant dense<0.000000e+00> : vector<8xf32>
    %601 = vector.multi_reduction <add>, %600, %cst_214 [1] : vector<8x128xf32> to vector<8xf32>
    %602 = vector.shape_cast %601 : vector<8xf32> to vector<8x1xf32>
    %603 = vector.broadcast %8 : f32 to vector<8x1xf32>
    %604 = arith.addf %602, %603 : vector<8x1xf32>
    %605 = vector.broadcast %561 : f32 to vector<8x1xf32>
    %606 = arith.mulf %605, %604 : vector<8x1xf32>
    %cst_215 = arith.constant 3.000000e+00 : f32
    %607 = vector.broadcast %cst_215 : f32 to vector<8x1xf32>
    %608 = arith.divf %606, %607 : vector<8x1xf32>
    %609 = arith.addf %555, %608 : vector<8x1xf32>
    %610 = vector.broadcast %609 : vector<8x1xf32> to vector<8x128xf32>
    %611 = vector.broadcast %1 : vector<1x128xf32> to vector<8x128xf32>
    %612 = arith.mulf %610, %611 : vector<8x128xf32>
    %613 = vector.broadcast %565 : vector<8x1xf32> to vector<8x128xf32>
    %614 = vector.broadcast %2 : vector<1x128xf32> to vector<8x128xf32>
    %615 = arith.mulf %613, %614 : vector<8x128xf32>
    %616 = arith.addf %612, %615 : vector<8x128xf32>
    %617 = vector.broadcast %558 : f32 to vector<1x128xf32>
    %618 = arith.mulf %617, %3 : vector<1x128xf32>
    %619 = vector.broadcast %618 : vector<1x128xf32> to vector<8x128xf32>
    %620 = arith.addf %616, %619 : vector<8x128xf32>
    %621 = vector.broadcast %4 : vector<1x128xf32> to vector<8x128xf32>
    %622 = arith.addf %620, %621 : vector<8x128xf32>
    %cst_216 = arith.constant 0.000000e+00 : f32
    %623 = vector.broadcast %cst_216 : f32 to vector<8x128xf32>
    %624 = arith.maximumf %622, %623 : vector<8x128xf32>
    %625 = arith.truncf %624 : vector<8x128xf32> to vector<8x128xbf16>
    %c0_217 = arith.constant 0 : index
    %c0_218 = arith.constant 0 : index
    %626 = vector.load %arg6[%c0_217, %c0_218] : memref<128x128xbf16, #tpu.memory_space<vmem>>, vector<128x128xbf16>
    %cst_219 = arith.constant dense<0.000000e+00> : vector<8x128xf32>
    %627 = tpu.matmul %625, %626, %cst_219 {dimension_numbers = #tpu.dot_dimension_numbers<[1], [0], [0], [1], [0, 0, 1, 1], [], []>} : vector<8x128xbf16>, vector<128x128xbf16>, vector<8x128xf32> -> vector<8x128xf32>
    %628 = vector.broadcast %5 : vector<1x128xf32> to vector<8x128xf32>
    %629 = arith.addf %627, %628 : vector<8x128xf32>
    %cst_220 = arith.constant 0.000000e+00 : f32
    %630 = vector.broadcast %cst_220 : f32 to vector<8x128xf32>
    %631 = arith.maximumf %629, %630 : vector<8x128xf32>
    %632 = arith.truncf %631 : vector<8x128xf32> to vector<8x128xbf16>
    %c0_221 = arith.constant 0 : index
    %c0_222 = arith.constant 0 : index
    %633 = vector.load %arg8[%c0_221, %c0_222] : memref<128x128xbf16, #tpu.memory_space<vmem>>, vector<128x128xbf16>
    %cst_223 = arith.constant dense<0.000000e+00> : vector<8x128xf32>
    %634 = tpu.matmul %632, %633, %cst_223 {dimension_numbers = #tpu.dot_dimension_numbers<[1], [0], [0], [1], [0, 0, 1, 1], [], []>} : vector<8x128xbf16>, vector<128x128xbf16>, vector<8x128xf32> -> vector<8x128xf32>
    %635 = vector.broadcast %6 : vector<1x128xf32> to vector<8x128xf32>
    %636 = arith.addf %634, %635 : vector<8x128xf32>
    %cst_224 = arith.constant 0.000000e+00 : f32
    %637 = vector.broadcast %cst_224 : f32 to vector<8x128xf32>
    %638 = arith.maximumf %636, %637 : vector<8x128xf32>
    %639 = vector.broadcast %7 : vector<1x128xf32> to vector<8x128xf32>
    %640 = arith.mulf %638, %639 : vector<8x128xf32>
    %cst_225 = arith.constant dense<0.000000e+00> : vector<8xf32>
    %641 = vector.multi_reduction <add>, %640, %cst_225 [1] : vector<8x128xf32> to vector<8xf32>
    %642 = vector.shape_cast %641 : vector<8xf32> to vector<8x1xf32>
    %643 = vector.broadcast %8 : f32 to vector<8x1xf32>
    %644 = arith.addf %642, %643 : vector<8x1xf32>
    %cst_226 = arith.constant 3.000000e+00 : f32
    %645 = vector.broadcast %cst_226 : f32 to vector<8x1xf32>
    %646 = arith.divf %604, %645 : vector<8x1xf32>
    %647 = arith.subf %644, %646 : vector<8x1xf32>
    %648 = vector.broadcast %561 : f32 to vector<8x1xf32>
    %649 = arith.mulf %648, %647 : vector<8x1xf32>
    %650 = arith.addf %555, %649 : vector<8x1xf32>
    %651 = vector.broadcast %650 : vector<8x1xf32> to vector<8x128xf32>
    %652 = vector.broadcast %1 : vector<1x128xf32> to vector<8x128xf32>
    %653 = arith.mulf %651, %652 : vector<8x128xf32>
    %654 = vector.broadcast %567 : vector<8x1xf32> to vector<8x128xf32>
    %655 = vector.broadcast %2 : vector<1x128xf32> to vector<8x128xf32>
    %656 = arith.mulf %654, %655 : vector<8x128xf32>
    %657 = arith.addf %653, %656 : vector<8x128xf32>
    %658 = vector.broadcast %559 : f32 to vector<1x128xf32>
    %659 = arith.mulf %658, %3 : vector<1x128xf32>
    %660 = vector.broadcast %659 : vector<1x128xf32> to vector<8x128xf32>
    %661 = arith.addf %657, %660 : vector<8x128xf32>
    %662 = vector.broadcast %4 : vector<1x128xf32> to vector<8x128xf32>
    %663 = arith.addf %661, %662 : vector<8x128xf32>
    %cst_227 = arith.constant 0.000000e+00 : f32
    %664 = vector.broadcast %cst_227 : f32 to vector<8x128xf32>
    %665 = arith.maximumf %663, %664 : vector<8x128xf32>
    %666 = arith.truncf %665 : vector<8x128xf32> to vector<8x128xbf16>
    %c0_228 = arith.constant 0 : index
    %c0_229 = arith.constant 0 : index
    %667 = vector.load %arg6[%c0_228, %c0_229] : memref<128x128xbf16, #tpu.memory_space<vmem>>, vector<128x128xbf16>
    %cst_230 = arith.constant dense<0.000000e+00> : vector<8x128xf32>
    %668 = tpu.matmul %666, %667, %cst_230 {dimension_numbers = #tpu.dot_dimension_numbers<[1], [0], [0], [1], [0, 0, 1, 1], [], []>} : vector<8x128xbf16>, vector<128x128xbf16>, vector<8x128xf32> -> vector<8x128xf32>
    %669 = vector.broadcast %5 : vector<1x128xf32> to vector<8x128xf32>
    %670 = arith.addf %668, %669 : vector<8x128xf32>
    %cst_231 = arith.constant 0.000000e+00 : f32
    %671 = vector.broadcast %cst_231 : f32 to vector<8x128xf32>
    %672 = arith.maximumf %670, %671 : vector<8x128xf32>
    %673 = arith.truncf %672 : vector<8x128xf32> to vector<8x128xbf16>
    %c0_232 = arith.constant 0 : index
    %c0_233 = arith.constant 0 : index
    %674 = vector.load %arg8[%c0_232, %c0_233] : memref<128x128xbf16, #tpu.memory_space<vmem>>, vector<128x128xbf16>
    %cst_234 = arith.constant dense<0.000000e+00> : vector<8x128xf32>
    %675 = tpu.matmul %673, %674, %cst_234 {dimension_numbers = #tpu.dot_dimension_numbers<[1], [0], [0], [1], [0, 0, 1, 1], [], []>} : vector<8x128xbf16>, vector<128x128xbf16>, vector<8x128xf32> -> vector<8x128xf32>
    %676 = vector.broadcast %6 : vector<1x128xf32> to vector<8x128xf32>
    %677 = arith.addf %675, %676 : vector<8x128xf32>
    %cst_235 = arith.constant 0.000000e+00 : f32
    %678 = vector.broadcast %cst_235 : f32 to vector<8x128xf32>
    %679 = arith.maximumf %677, %678 : vector<8x128xf32>
    %680 = vector.broadcast %7 : vector<1x128xf32> to vector<8x128xf32>
    %681 = arith.mulf %679, %680 : vector<8x128xf32>
    %cst_236 = arith.constant dense<0.000000e+00> : vector<8xf32>
    %682 = vector.multi_reduction <add>, %681, %cst_236 [1] : vector<8x128xf32> to vector<8xf32>
    %683 = vector.shape_cast %682 : vector<8xf32> to vector<8x1xf32>
    %684 = vector.broadcast %8 : f32 to vector<8x1xf32>
    %685 = arith.addf %683, %684 : vector<8x1xf32>
    %686 = arith.subf %604, %644 : vector<8x1xf32>
    %687 = arith.addf %686, %685 : vector<8x1xf32>
    %688 = vector.broadcast %561 : f32 to vector<8x1xf32>
    %689 = arith.mulf %688, %687 : vector<8x1xf32>
    %690 = arith.addf %555, %689 : vector<8x1xf32>
    %691 = vector.broadcast %690 : vector<8x1xf32> to vector<8x128xf32>
    %692 = vector.broadcast %1 : vector<1x128xf32> to vector<8x128xf32>
    %693 = arith.mulf %691, %692 : vector<8x128xf32>
    %694 = vector.broadcast %569 : vector<8x1xf32> to vector<8x128xf32>
    %695 = vector.broadcast %2 : vector<1x128xf32> to vector<8x128xf32>
    %696 = arith.mulf %694, %695 : vector<8x128xf32>
    %697 = arith.addf %693, %696 : vector<8x128xf32>
    %698 = vector.broadcast %560 : f32 to vector<1x128xf32>
    %699 = arith.mulf %698, %3 : vector<1x128xf32>
    %700 = vector.broadcast %699 : vector<1x128xf32> to vector<8x128xf32>
    %701 = arith.addf %697, %700 : vector<8x128xf32>
    %702 = vector.broadcast %4 : vector<1x128xf32> to vector<8x128xf32>
    %703 = arith.addf %701, %702 : vector<8x128xf32>
    %cst_237 = arith.constant 0.000000e+00 : f32
    %704 = vector.broadcast %cst_237 : f32 to vector<8x128xf32>
    %705 = arith.maximumf %703, %704 : vector<8x128xf32>
    %706 = arith.truncf %705 : vector<8x128xf32> to vector<8x128xbf16>
    %c0_238 = arith.constant 0 : index
    %c0_239 = arith.constant 0 : index
    %707 = vector.load %arg6[%c0_238, %c0_239] : memref<128x128xbf16, #tpu.memory_space<vmem>>, vector<128x128xbf16>
    %cst_240 = arith.constant dense<0.000000e+00> : vector<8x128xf32>
    %708 = tpu.matmul %706, %707, %cst_240 {dimension_numbers = #tpu.dot_dimension_numbers<[1], [0], [0], [1], [0, 0, 1, 1], [], []>} : vector<8x128xbf16>, vector<128x128xbf16>, vector<8x128xf32> -> vector<8x128xf32>
    %709 = vector.broadcast %5 : vector<1x128xf32> to vector<8x128xf32>
    %710 = arith.addf %708, %709 : vector<8x128xf32>
    %cst_241 = arith.constant 0.000000e+00 : f32
    %711 = vector.broadcast %cst_241 : f32 to vector<8x128xf32>
    %712 = arith.maximumf %710, %711 : vector<8x128xf32>
    %713 = arith.truncf %712 : vector<8x128xf32> to vector<8x128xbf16>
    %c0_242 = arith.constant 0 : index
    %c0_243 = arith.constant 0 : index
    %714 = vector.load %arg8[%c0_242, %c0_243] : memref<128x128xbf16, #tpu.memory_space<vmem>>, vector<128x128xbf16>
    %cst_244 = arith.constant dense<0.000000e+00> : vector<8x128xf32>
    %715 = tpu.matmul %713, %714, %cst_244 {dimension_numbers = #tpu.dot_dimension_numbers<[1], [0], [0], [1], [0, 0, 1, 1], [], []>} : vector<8x128xbf16>, vector<128x128xbf16>, vector<8x128xf32> -> vector<8x128xf32>
    %716 = vector.broadcast %6 : vector<1x128xf32> to vector<8x128xf32>
    %717 = arith.addf %715, %716 : vector<8x128xf32>
    %cst_245 = arith.constant 0.000000e+00 : f32
    %718 = vector.broadcast %cst_245 : f32 to vector<8x128xf32>
    %719 = arith.maximumf %717, %718 : vector<8x128xf32>
    %720 = vector.broadcast %7 : vector<1x128xf32> to vector<8x128xf32>
    %721 = arith.mulf %719, %720 : vector<8x128xf32>
    %cst_246 = arith.constant dense<0.000000e+00> : vector<8xf32>
    %722 = vector.multi_reduction <add>, %721, %cst_246 [1] : vector<8x128xf32> to vector<8xf32>
    %723 = vector.shape_cast %722 : vector<8xf32> to vector<8x1xf32>
    %724 = vector.broadcast %8 : f32 to vector<8x1xf32>
    %725 = arith.addf %723, %724 : vector<8x1xf32>
    %726 = arith.addf %644, %685 : vector<8x1xf32>
    %cst_247 = arith.constant 3.000000e+00 : f32
    %727 = vector.broadcast %cst_247 : f32 to vector<8x1xf32>
    %728 = arith.mulf %727, %726 : vector<8x1xf32>
    %729 = arith.addf %604, %728 : vector<8x1xf32>
    %730 = arith.addf %729, %725 : vector<8x1xf32>
    %731 = vector.broadcast %561 : f32 to vector<8x1xf32>
    %732 = arith.mulf %731, %730 : vector<8x1xf32>
    %cst_248 = arith.constant 1.250000e-01 : f32
    %733 = vector.broadcast %cst_248 : f32 to vector<8x1xf32>
    %734 = arith.mulf %732, %733 : vector<8x1xf32>
    %735 = arith.addf %555, %734 : vector<8x1xf32>
    %c0_249 = arith.constant 0 : index
    %c4_250 = arith.constant 4 : index
    %736 = vector.load %arg11[%c0_249, %c4_250] : memref<8x128xf32, #tpu.memory_space<vmem>>, vector<8x1xf32>
    tpu.vector_store %arg11[%c0_249, %c4_250], %735 {strides = array<i32>} : memref<8x128xf32, #tpu.memory_space<vmem>>, vector<8x1xf32>,
    %c20 = arith.constant 20 : index
    %737 = memref.load %arg2[%c20] : memref<35xf32, #tpu.memory_space<smem>>
    %c21 = arith.constant 21 : index
    %738 = memref.load %arg2[%c21] : memref<35xf32, #tpu.memory_space<smem>>
    %c22 = arith.constant 22 : index
    %739 = memref.load %arg2[%c22] : memref<35xf32, #tpu.memory_space<smem>>
    %c23 = arith.constant 23 : index
    %740 = memref.load %arg2[%c23] : memref<35xf32, #tpu.memory_space<smem>>
    %c24 = arith.constant 24 : index
    %741 = memref.load %arg2[%c24] : memref<35xf32, #tpu.memory_space<smem>>
    %c0_251 = arith.constant 0 : index
    %c0_252 = arith.constant 0 : index
    %c4_253 = arith.constant 4 : index
    %742 = vector.load %arg1[%c0_251, %c0_252, %c4_253] : memref<4x8x128xf32, #tpu.memory_space<vmem>>, vector<1x8x1xf32>
    %743 = vector.shape_cast %742 : vector<1x8x1xf32> to vector<8x1xf32>
    %c1_254 = arith.constant 1 : index
    %c0_255 = arith.constant 0 : index
    %c4_256 = arith.constant 4 : index
    %744 = vector.load %arg1[%c1_254, %c0_255, %c4_256] : memref<4x8x128xf32, #tpu.memory_space<vmem>>, vector<1x8x1xf32>
    %745 = vector.shape_cast %744 : vector<1x8x1xf32> to vector<8x1xf32>
    %c2_257 = arith.constant 2 : index
    %c0_258 = arith.constant 0 : index
    %c4_259 = arith.constant 4 : index
    %746 = vector.load %arg1[%c2_257, %c0_258, %c4_259] : memref<4x8x128xf32, #tpu.memory_space<vmem>>, vector<1x8x1xf32>
    %747 = vector.shape_cast %746 : vector<1x8x1xf32> to vector<8x1xf32>
    %c3_260 = arith.constant 3 : index
    %c0_261 = arith.constant 0 : index
    %c4_262 = arith.constant 4 : index
    %748 = vector.load %arg1[%c3_260, %c0_261, %c4_262] : memref<4x8x128xf32, #tpu.memory_space<vmem>>, vector<1x8x1xf32>
    %749 = vector.shape_cast %748 : vector<1x8x1xf32> to vector<8x1xf32>
    %750 = vector.broadcast %735 : vector<8x1xf32> to vector<8x128xf32>
    %751 = vector.broadcast %1 : vector<1x128xf32> to vector<8x128xf32>
    %752 = arith.mulf %750, %751 : vector<8x128xf32>
    %753 = vector.broadcast %743 : vector<8x1xf32> to vector<8x128xf32>
    %754 = vector.broadcast %2 : vector<1x128xf32> to vector<8x128xf32>
    %755 = arith.mulf %753, %754 : vector<8x128xf32>
    %756 = arith.addf %752, %755 : vector<8x128xf32>
    %757 = vector.broadcast %737 : f32 to vector<1x128xf32>
    %758 = arith.mulf %757, %3 : vector<1x128xf32>
    %759 = vector.broadcast %758 : vector<1x128xf32> to vector<8x128xf32>
    %760 = arith.addf %756, %759 : vector<8x128xf32>
    %761 = vector.broadcast %4 : vector<1x128xf32> to vector<8x128xf32>
    %762 = arith.addf %760, %761 : vector<8x128xf32>
    %cst_263 = arith.constant 0.000000e+00 : f32
    %763 = vector.broadcast %cst_263 : f32 to vector<8x128xf32>
    %764 = arith.maximumf %762, %763 : vector<8x128xf32>
    %765 = arith.truncf %764 : vector<8x128xf32> to vector<8x128xbf16>
    %c0_264 = arith.constant 0 : index
    %c0_265 = arith.constant 0 : index
    %766 = vector.load %arg6[%c0_264, %c0_265] : memref<128x128xbf16, #tpu.memory_space<vmem>>, vector<128x128xbf16>
    %cst_266 = arith.constant dense<0.000000e+00> : vector<8x128xf32>
    %767 = tpu.matmul %765, %766, %cst_266 {dimension_numbers = #tpu.dot_dimension_numbers<[1], [0], [0], [1], [0, 0, 1, 1], [], []>} : vector<8x128xbf16>, vector<128x128xbf16>, vector<8x128xf32> -> vector<8x128xf32>
    %768 = vector.broadcast %5 : vector<1x128xf32> to vector<8x128xf32>
    %769 = arith.addf %767, %768 : vector<8x128xf32>
    %cst_267 = arith.constant 0.000000e+00 : f32
    %770 = vector.broadcast %cst_267 : f32 to vector<8x128xf32>
    %771 = arith.maximumf %769, %770 : vector<8x128xf32>
    %772 = arith.truncf %771 : vector<8x128xf32> to vector<8x128xbf16>
    %c0_268 = arith.constant 0 : index
    %c0_269 = arith.constant 0 : index
    %773 = vector.load %arg8[%c0_268, %c0_269] : memref<128x128xbf16, #tpu.memory_space<vmem>>, vector<128x128xbf16>
    %cst_270 = arith.constant dense<0.000000e+00> : vector<8x128xf32>
    %774 = tpu.matmul %772, %773, %cst_270 {dimension_numbers = #tpu.dot_dimension_numbers<[1], [0], [0], [1], [0, 0, 1, 1], [], []>} : vector<8x128xbf16>, vector<128x128xbf16>, vector<8x128xf32> -> vector<8x128xf32>
    %775 = vector.broadcast %6 : vector<1x128xf32> to vector<8x128xf32>
    %776 = arith.addf %774, %775 : vector<8x128xf32>
    %cst_271 = arith.constant 0.000000e+00 : f32
    %777 = vector.broadcast %cst_271 : f32 to vector<8x128xf32>
    %778 = arith.maximumf %776, %777 : vector<8x128xf32>
    %779 = vector.broadcast %7 : vector<1x128xf32> to vector<8x128xf32>
    %780 = arith.mulf %778, %779 : vector<8x128xf32>
    %cst_272 = arith.constant dense<0.000000e+00> : vector<8xf32>
    %781 = vector.multi_reduction <add>, %780, %cst_272 [1] : vector<8x128xf32> to vector<8xf32>
    %782 = vector.shape_cast %781 : vector<8xf32> to vector<8x1xf32>
    %783 = vector.broadcast %8 : f32 to vector<8x1xf32>
    %784 = arith.addf %782, %783 : vector<8x1xf32>
    %785 = vector.broadcast %741 : f32 to vector<8x1xf32>
    %786 = arith.mulf %785, %784 : vector<8x1xf32>
    %cst_273 = arith.constant 3.000000e+00 : f32
    %787 = vector.broadcast %cst_273 : f32 to vector<8x1xf32>
    %788 = arith.divf %786, %787 : vector<8x1xf32>
    %789 = arith.addf %735, %788 : vector<8x1xf32>
    %790 = vector.broadcast %789 : vector<8x1xf32> to vector<8x128xf32>
    %791 = vector.broadcast %1 : vector<1x128xf32> to vector<8x128xf32>
    %792 = arith.mulf %790, %791 : vector<8x128xf32>
    %793 = vector.broadcast %745 : vector<8x1xf32> to vector<8x128xf32>
    %794 = vector.broadcast %2 : vector<1x128xf32> to vector<8x128xf32>
    %795 = arith.mulf %793, %794 : vector<8x128xf32>
    %796 = arith.addf %792, %795 : vector<8x128xf32>
    %797 = vector.broadcast %738 : f32 to vector<1x128xf32>
    %798 = arith.mulf %797, %3 : vector<1x128xf32>
    %799 = vector.broadcast %798 : vector<1x128xf32> to vector<8x128xf32>
    %800 = arith.addf %796, %799 : vector<8x128xf32>
    %801 = vector.broadcast %4 : vector<1x128xf32> to vector<8x128xf32>
    %802 = arith.addf %800, %801 : vector<8x128xf32>
    %cst_274 = arith.constant 0.000000e+00 : f32
    %803 = vector.broadcast %cst_274 : f32 to vector<8x128xf32>
    %804 = arith.maximumf %802, %803 : vector<8x128xf32>
    %805 = arith.truncf %804 : vector<8x128xf32> to vector<8x128xbf16>
    %c0_275 = arith.constant 0 : index
    %c0_276 = arith.constant 0 : index
    %806 = vector.load %arg6[%c0_275, %c0_276] : memref<128x128xbf16, #tpu.memory_space<vmem>>, vector<128x128xbf16>
    %cst_277 = arith.constant dense<0.000000e+00> : vector<8x128xf32>
    %807 = tpu.matmul %805, %806, %cst_277 {dimension_numbers = #tpu.dot_dimension_numbers<[1], [0], [0], [1], [0, 0, 1, 1], [], []>} : vector<8x128xbf16>, vector<128x128xbf16>, vector<8x128xf32> -> vector<8x128xf32>
    %808 = vector.broadcast %5 : vector<1x128xf32> to vector<8x128xf32>
    %809 = arith.addf %807, %808 : vector<8x128xf32>
    %cst_278 = arith.constant 0.000000e+00 : f32
    %810 = vector.broadcast %cst_278 : f32 to vector<8x128xf32>
    %811 = arith.maximumf %809, %810 : vector<8x128xf32>
    %812 = arith.truncf %811 : vector<8x128xf32> to vector<8x128xbf16>
    %c0_279 = arith.constant 0 : index
    %c0_280 = arith.constant 0 : index
    %813 = vector.load %arg8[%c0_279, %c0_280] : memref<128x128xbf16, #tpu.memory_space<vmem>>, vector<128x128xbf16>
    %cst_281 = arith.constant dense<0.000000e+00> : vector<8x128xf32>
    %814 = tpu.matmul %812, %813, %cst_281 {dimension_numbers = #tpu.dot_dimension_numbers<[1], [0], [0], [1], [0, 0, 1, 1], [], []>} : vector<8x128xbf16>, vector<128x128xbf16>, vector<8x128xf32> -> vector<8x128xf32>
    %815 = vector.broadcast %6 : vector<1x128xf32> to vector<8x128xf32>
    %816 = arith.addf %814, %815 : vector<8x128xf32>
    %cst_282 = arith.constant 0.000000e+00 : f32
    %817 = vector.broadcast %cst_282 : f32 to vector<8x128xf32>
    %818 = arith.maximumf %816, %817 : vector<8x128xf32>
    %819 = vector.broadcast %7 : vector<1x128xf32> to vector<8x128xf32>
    %820 = arith.mulf %818, %819 : vector<8x128xf32>
    %cst_283 = arith.constant dense<0.000000e+00> : vector<8xf32>
    %821 = vector.multi_reduction <add>, %820, %cst_283 [1] : vector<8x128xf32> to vector<8xf32>
    %822 = vector.shape_cast %821 : vector<8xf32> to vector<8x1xf32>
    %823 = vector.broadcast %8 : f32 to vector<8x1xf32>
    %824 = arith.addf %822, %823 : vector<8x1xf32>
    %cst_284 = arith.constant 3.000000e+00 : f32
    %825 = vector.broadcast %cst_284 : f32 to vector<8x1xf32>
    %826 = arith.divf %784, %825 : vector<8x1xf32>
    %827 = arith.subf %824, %826 : vector<8x1xf32>
    %828 = vector.broadcast %741 : f32 to vector<8x1xf32>
    %829 = arith.mulf %828, %827 : vector<8x1xf32>
    %830 = arith.addf %735, %829 : vector<8x1xf32>
    %831 = vector.broadcast %830 : vector<8x1xf32> to vector<8x128xf32>
    %832 = vector.broadcast %1 : vector<1x128xf32> to vector<8x128xf32>
    %833 = arith.mulf %831, %832 : vector<8x128xf32>
    %834 = vector.broadcast %747 : vector<8x1xf32> to vector<8x128xf32>
    %835 = vector.broadcast %2 : vector<1x128xf32> to vector<8x128xf32>
    %836 = arith.mulf %834, %835 : vector<8x128xf32>
    %837 = arith.addf %833, %836 : vector<8x128xf32>
    %838 = vector.broadcast %739 : f32 to vector<1x128xf32>
    %839 = arith.mulf %838, %3 : vector<1x128xf32>
    %840 = vector.broadcast %839 : vector<1x128xf32> to vector<8x128xf32>
    %841 = arith.addf %837, %840 : vector<8x128xf32>
    %842 = vector.broadcast %4 : vector<1x128xf32> to vector<8x128xf32>
    %843 = arith.addf %841, %842 : vector<8x128xf32>
    %cst_285 = arith.constant 0.000000e+00 : f32
    %844 = vector.broadcast %cst_285 : f32 to vector<8x128xf32>
    %845 = arith.maximumf %843, %844 : vector<8x128xf32>
    %846 = arith.truncf %845 : vector<8x128xf32> to vector<8x128xbf16>
    %c0_286 = arith.constant 0 : index
    %c0_287 = arith.constant 0 : index
    %847 = vector.load %arg6[%c0_286, %c0_287] : memref<128x128xbf16, #tpu.memory_space<vmem>>, vector<128x128xbf16>
    %cst_288 = arith.constant dense<0.000000e+00> : vector<8x128xf32>
    %848 = tpu.matmul %846, %847, %cst_288 {dimension_numbers = #tpu.dot_dimension_numbers<[1], [0], [0], [1], [0, 0, 1, 1], [], []>} : vector<8x128xbf16>, vector<128x128xbf16>, vector<8x128xf32> -> vector<8x128xf32>
    %849 = vector.broadcast %5 : vector<1x128xf32> to vector<8x128xf32>
    %850 = arith.addf %848, %849 : vector<8x128xf32>
    %cst_289 = arith.constant 0.000000e+00 : f32
    %851 = vector.broadcast %cst_289 : f32 to vector<8x128xf32>
    %852 = arith.maximumf %850, %851 : vector<8x128xf32>
    %853 = arith.truncf %852 : vector<8x128xf32> to vector<8x128xbf16>
    %c0_290 = arith.constant 0 : index
    %c0_291 = arith.constant 0 : index
    %854 = vector.load %arg8[%c0_290, %c0_291] : memref<128x128xbf16, #tpu.memory_space<vmem>>, vector<128x128xbf16>
    %cst_292 = arith.constant dense<0.000000e+00> : vector<8x128xf32>
    %855 = tpu.matmul %853, %854, %cst_292 {dimension_numbers = #tpu.dot_dimension_numbers<[1], [0], [0], [1], [0, 0, 1, 1], [], []>} : vector<8x128xbf16>, vector<128x128xbf16>, vector<8x128xf32> -> vector<8x128xf32>
    %856 = vector.broadcast %6 : vector<1x128xf32> to vector<8x128xf32>
    %857 = arith.addf %855, %856 : vector<8x128xf32>
    %cst_293 = arith.constant 0.000000e+00 : f32
    %858 = vector.broadcast %cst_293 : f32 to vector<8x128xf32>
    %859 = arith.maximumf %857, %858 : vector<8x128xf32>
    %860 = vector.broadcast %7 : vector<1x128xf32> to vector<8x128xf32>
    %861 = arith.mulf %859, %860 : vector<8x128xf32>
    %cst_294 = arith.constant dense<0.000000e+00> : vector<8xf32>
    %862 = vector.multi_reduction <add>, %861, %cst_294 [1] : vector<8x128xf32> to vector<8xf32>
    %863 = vector.shape_cast %862 : vector<8xf32> to vector<8x1xf32>
    %864 = vector.broadcast %8 : f32 to vector<8x1xf32>
    %865 = arith.addf %863, %864 : vector<8x1xf32>
    %866 = arith.subf %784, %824 : vector<8x1xf32>
    %867 = arith.addf %866, %865 : vector<8x1xf32>
    %868 = vector.broadcast %741 : f32 to vector<8x1xf32>
    %869 = arith.mulf %868, %867 : vector<8x1xf32>
    %870 = arith.addf %735, %869 : vector<8x1xf32>
    %871 = vector.broadcast %870 : vector<8x1xf32> to vector<8x128xf32>
    %872 = vector.broadcast %1 : vector<1x128xf32> to vector<8x128xf32>
    %873 = arith.mulf %871, %872 : vector<8x128xf32>
    %874 = vector.broadcast %749 : vector<8x1xf32> to vector<8x128xf32>
    %875 = vector.broadcast %2 : vector<1x128xf32> to vector<8x128xf32>
    %876 = arith.mulf %874, %875 : vector<8x128xf32>
    %877 = arith.addf %873, %876 : vector<8x128xf32>
    %878 = vector.broadcast %740 : f32 to vector<1x128xf32>
    %879 = arith.mulf %878, %3 : vector<1x128xf32>
    %880 = vector.broadcast %879 : vector<1x128xf32> to vector<8x128xf32>
    %881 = arith.addf %877, %880 : vector<8x128xf32>
    %882 = vector.broadcast %4 : vector<1x128xf32> to vector<8x128xf32>
    %883 = arith.addf %881, %882 : vector<8x128xf32>
    %cst_295 = arith.constant 0.000000e+00 : f32
    %884 = vector.broadcast %cst_295 : f32 to vector<8x128xf32>
    %885 = arith.maximumf %883, %884 : vector<8x128xf32>
    %886 = arith.truncf %885 : vector<8x128xf32> to vector<8x128xbf16>
    %c0_296 = arith.constant 0 : index
    %c0_297 = arith.constant 0 : index
    %887 = vector.load %arg6[%c0_296, %c0_297] : memref<128x128xbf16, #tpu.memory_space<vmem>>, vector<128x128xbf16>
    %cst_298 = arith.constant dense<0.000000e+00> : vector<8x128xf32>
    %888 = tpu.matmul %886, %887, %cst_298 {dimension_numbers = #tpu.dot_dimension_numbers<[1], [0], [0], [1], [0, 0, 1, 1], [], []>} : vector<8x128xbf16>, vector<128x128xbf16>, vector<8x128xf32> -> vector<8x128xf32>
    %889 = vector.broadcast %5 : vector<1x128xf32> to vector<8x128xf32>
    %890 = arith.addf %888, %889 : vector<8x128xf32>
    %cst_299 = arith.constant 0.000000e+00 : f32
    %891 = vector.broadcast %cst_299 : f32 to vector<8x128xf32>
    %892 = arith.maximumf %890, %891 : vector<8x128xf32>
    %893 = arith.truncf %892 : vector<8x128xf32> to vector<8x128xbf16>
    %c0_300 = arith.constant 0 : index
    %c0_301 = arith.constant 0 : index
    %894 = vector.load %arg8[%c0_300, %c0_301] : memref<128x128xbf16, #tpu.memory_space<vmem>>, vector<128x128xbf16>
    %cst_302 = arith.constant dense<0.000000e+00> : vector<8x128xf32>
    %895 = tpu.matmul %893, %894, %cst_302 {dimension_numbers = #tpu.dot_dimension_numbers<[1], [0], [0], [1], [0, 0, 1, 1], [], []>} : vector<8x128xbf16>, vector<128x128xbf16>, vector<8x128xf32> -> vector<8x128xf32>
    %896 = vector.broadcast %6 : vector<1x128xf32> to vector<8x128xf32>
    %897 = arith.addf %895, %896 : vector<8x128xf32>
    %cst_303 = arith.constant 0.000000e+00 : f32
    %898 = vector.broadcast %cst_303 : f32 to vector<8x128xf32>
    %899 = arith.maximumf %897, %898 : vector<8x128xf32>
    %900 = vector.broadcast %7 : vector<1x128xf32> to vector<8x128xf32>
    %901 = arith.mulf %899, %900 : vector<8x128xf32>
    %cst_304 = arith.constant dense<0.000000e+00> : vector<8xf32>
    %902 = vector.multi_reduction <add>, %901, %cst_304 [1] : vector<8x128xf32> to vector<8xf32>
    %903 = vector.shape_cast %902 : vector<8xf32> to vector<8x1xf32>
    %904 = vector.broadcast %8 : f32 to vector<8x1xf32>
    %905 = arith.addf %903, %904 : vector<8x1xf32>
    %906 = arith.addf %824, %865 : vector<8x1xf32>
    %cst_305 = arith.constant 3.000000e+00 : f32
    %907 = vector.broadcast %cst_305 : f32 to vector<8x1xf32>
    %908 = arith.mulf %907, %906 : vector<8x1xf32>
    %909 = arith.addf %784, %908 : vector<8x1xf32>
    %910 = arith.addf %909, %905 : vector<8x1xf32>
    %911 = vector.broadcast %741 : f32 to vector<8x1xf32>
    %912 = arith.mulf %911, %910 : vector<8x1xf32>
    %cst_306 = arith.constant 1.250000e-01 : f32
    %913 = vector.broadcast %cst_306 : f32 to vector<8x1xf32>
    %914 = arith.mulf %912, %913 : vector<8x1xf32>
    %915 = arith.addf %735, %914 : vector<8x1xf32>
    %c0_307 = arith.constant 0 : index
    %c5_308 = arith.constant 5 : index
    %916 = vector.load %arg11[%c0_307, %c5_308] : memref<8x128xf32, #tpu.memory_space<vmem>>, vector<8x1xf32>
    tpu.vector_store %arg11[%c0_307, %c5_308], %915 {strides = array<i32>} : memref<8x128xf32, #tpu.memory_space<vmem>>, vector<8x1xf32>,
    %c25 = arith.constant 25 : index
    %917 = memref.load %arg2[%c25] : memref<35xf32, #tpu.memory_space<smem>>
    %c26 = arith.constant 26 : index
    %918 = memref.load %arg2[%c26] : memref<35xf32, #tpu.memory_space<smem>>
    %c27 = arith.constant 27 : index
    %919 = memref.load %arg2[%c27] : memref<35xf32, #tpu.memory_space<smem>>
    %c28 = arith.constant 28 : index
    %920 = memref.load %arg2[%c28] : memref<35xf32, #tpu.memory_space<smem>>
    %c29 = arith.constant 29 : index
    %921 = memref.load %arg2[%c29] : memref<35xf32, #tpu.memory_space<smem>>
    %c0_309 = arith.constant 0 : index
    %c0_310 = arith.constant 0 : index
    %c5_311 = arith.constant 5 : index
    %922 = vector.load %arg1[%c0_309, %c0_310, %c5_311] : memref<4x8x128xf32, #tpu.memory_space<vmem>>, vector<1x8x1xf32>
    %923 = vector.shape_cast %922 : vector<1x8x1xf32> to vector<8x1xf32>
    %c1_312 = arith.constant 1 : index
    %c0_313 = arith.constant 0 : index
    %c5_314 = arith.constant 5 : index
    %924 = vector.load %arg1[%c1_312, %c0_313, %c5_314] : memref<4x8x128xf32, #tpu.memory_space<vmem>>, vector<1x8x1xf32>
    %925 = vector.shape_cast %924 : vector<1x8x1xf32> to vector<8x1xf32>
    %c2_315 = arith.constant 2 : index
    %c0_316 = arith.constant 0 : index
    %c5_317 = arith.constant 5 : index
    %926 = vector.load %arg1[%c2_315, %c0_316, %c5_317] : memref<4x8x128xf32, #tpu.memory_space<vmem>>, vector<1x8x1xf32>
    %927 = vector.shape_cast %926 : vector<1x8x1xf32> to vector<8x1xf32>
    %c3_318 = arith.constant 3 : index
    %c0_319 = arith.constant 0 : index
    %c5_320 = arith.constant 5 : index
    %928 = vector.load %arg1[%c3_318, %c0_319, %c5_320] : memref<4x8x128xf32, #tpu.memory_space<vmem>>, vector<1x8x1xf32>
    %929 = vector.shape_cast %928 : vector<1x8x1xf32> to vector<8x1xf32>
    %930 = vector.broadcast %915 : vector<8x1xf32> to vector<8x128xf32>
    %931 = vector.broadcast %1 : vector<1x128xf32> to vector<8x128xf32>
    %932 = arith.mulf %930, %931 : vector<8x128xf32>
    %933 = vector.broadcast %923 : vector<8x1xf32> to vector<8x128xf32>
    %934 = vector.broadcast %2 : vector<1x128xf32> to vector<8x128xf32>
    %935 = arith.mulf %933, %934 : vector<8x128xf32>
    %936 = arith.addf %932, %935 : vector<8x128xf32>
    %937 = vector.broadcast %917 : f32 to vector<1x128xf32>
    %938 = arith.mulf %937, %3 : vector<1x128xf32>
    %939 = vector.broadcast %938 : vector<1x128xf32> to vector<8x128xf32>
    %940 = arith.addf %936, %939 : vector<8x128xf32>
    %941 = vector.broadcast %4 : vector<1x128xf32> to vector<8x128xf32>
    %942 = arith.addf %940, %941 : vector<8x128xf32>
    %cst_321 = arith.constant 0.000000e+00 : f32
    %943 = vector.broadcast %cst_321 : f32 to vector<8x128xf32>
    %944 = arith.maximumf %942, %943 : vector<8x128xf32>
    %945 = arith.truncf %944 : vector<8x128xf32> to vector<8x128xbf16>
    %c0_322 = arith.constant 0 : index
    %c0_323 = arith.constant 0 : index
    %946 = vector.load %arg6[%c0_322, %c0_323] : memref<128x128xbf16, #tpu.memory_space<vmem>>, vector<128x128xbf16>
    %cst_324 = arith.constant dense<0.000000e+00> : vector<8x128xf32>
    %947 = tpu.matmul %945, %946, %cst_324 {dimension_numbers = #tpu.dot_dimension_numbers<[1], [0], [0], [1], [0, 0, 1, 1], [], []>} : vector<8x128xbf16>, vector<128x128xbf16>, vector<8x128xf32> -> vector<8x128xf32>
    %948 = vector.broadcast %5 : vector<1x128xf32> to vector<8x128xf32>
    %949 = arith.addf %947, %948 : vector<8x128xf32>
    %cst_325 = arith.constant 0.000000e+00 : f32
    %950 = vector.broadcast %cst_325 : f32 to vector<8x128xf32>
    %951 = arith.maximumf %949, %950 : vector<8x128xf32>
    %952 = arith.truncf %951 : vector<8x128xf32> to vector<8x128xbf16>
    %c0_326 = arith.constant 0 : index
    %c0_327 = arith.constant 0 : index
    %953 = vector.load %arg8[%c0_326, %c0_327] : memref<128x128xbf16, #tpu.memory_space<vmem>>, vector<128x128xbf16>
    %cst_328 = arith.constant dense<0.000000e+00> : vector<8x128xf32>
    %954 = tpu.matmul %952, %953, %cst_328 {dimension_numbers = #tpu.dot_dimension_numbers<[1], [0], [0], [1], [0, 0, 1, 1], [], []>} : vector<8x128xbf16>, vector<128x128xbf16>, vector<8x128xf32> -> vector<8x128xf32>
    %955 = vector.broadcast %6 : vector<1x128xf32> to vector<8x128xf32>
    %956 = arith.addf %954, %955 : vector<8x128xf32>
    %cst_329 = arith.constant 0.000000e+00 : f32
    %957 = vector.broadcast %cst_329 : f32 to vector<8x128xf32>
    %958 = arith.maximumf %956, %957 : vector<8x128xf32>
    %959 = vector.broadcast %7 : vector<1x128xf32> to vector<8x128xf32>
    %960 = arith.mulf %958, %959 : vector<8x128xf32>
    %cst_330 = arith.constant dense<0.000000e+00> : vector<8xf32>
    %961 = vector.multi_reduction <add>, %960, %cst_330 [1] : vector<8x128xf32> to vector<8xf32>
    %962 = vector.shape_cast %961 : vector<8xf32> to vector<8x1xf32>
    %963 = vector.broadcast %8 : f32 to vector<8x1xf32>
    %964 = arith.addf %962, %963 : vector<8x1xf32>
    %965 = vector.broadcast %921 : f32 to vector<8x1xf32>
    %966 = arith.mulf %965, %964 : vector<8x1xf32>
    %cst_331 = arith.constant 3.000000e+00 : f32
    %967 = vector.broadcast %cst_331 : f32 to vector<8x1xf32>
    %968 = arith.divf %966, %967 : vector<8x1xf32>
    %969 = arith.addf %915, %968 : vector<8x1xf32>
    %970 = vector.broadcast %969 : vector<8x1xf32> to vector<8x128xf32>
    %971 = vector.broadcast %1 : vector<1x128xf32> to vector<8x128xf32>
    %972 = arith.mulf %970, %971 : vector<8x128xf32>
    %973 = vector.broadcast %925 : vector<8x1xf32> to vector<8x128xf32>
    %974 = vector.broadcast %2 : vector<1x128xf32> to vector<8x128xf32>
    %975 = arith.mulf %973, %974 : vector<8x128xf32>
    %976 = arith.addf %972, %975 : vector<8x128xf32>
    %977 = vector.broadcast %918 : f32 to vector<1x128xf32>
    %978 = arith.mulf %977, %3 : vector<1x128xf32>
    %979 = vector.broadcast %978 : vector<1x128xf32> to vector<8x128xf32>
    %980 = arith.addf %976, %979 : vector<8x128xf32>
    %981 = vector.broadcast %4 : vector<1x128xf32> to vector<8x128xf32>
    %982 = arith.addf %980, %981 : vector<8x128xf32>
    %cst_332 = arith.constant 0.000000e+00 : f32
    %983 = vector.broadcast %cst_332 : f32 to vector<8x128xf32>
    %984 = arith.maximumf %982, %983 : vector<8x128xf32>
    %985 = arith.truncf %984 : vector<8x128xf32> to vector<8x128xbf16>
    %c0_333 = arith.constant 0 : index
    %c0_334 = arith.constant 0 : index
    %986 = vector.load %arg6[%c0_333, %c0_334] : memref<128x128xbf16, #tpu.memory_space<vmem>>, vector<128x128xbf16>
    %cst_335 = arith.constant dense<0.000000e+00> : vector<8x128xf32>
    %987 = tpu.matmul %985, %986, %cst_335 {dimension_numbers = #tpu.dot_dimension_numbers<[1], [0], [0], [1], [0, 0, 1, 1], [], []>} : vector<8x128xbf16>, vector<128x128xbf16>, vector<8x128xf32> -> vector<8x128xf32>
    %988 = vector.broadcast %5 : vector<1x128xf32> to vector<8x128xf32>
    %989 = arith.addf %987, %988 : vector<8x128xf32>
    %cst_336 = arith.constant 0.000000e+00 : f32
    %990 = vector.broadcast %cst_336 : f32 to vector<8x128xf32>
    %991 = arith.maximumf %989, %990 : vector<8x128xf32>
    %992 = arith.truncf %991 : vector<8x128xf32> to vector<8x128xbf16>
    %c0_337 = arith.constant 0 : index
    %c0_338 = arith.constant 0 : index
    %993 = vector.load %arg8[%c0_337, %c0_338] : memref<128x128xbf16, #tpu.memory_space<vmem>>, vector<128x128xbf16>
    %cst_339 = arith.constant dense<0.000000e+00> : vector<8x128xf32>
    %994 = tpu.matmul %992, %993, %cst_339 {dimension_numbers = #tpu.dot_dimension_numbers<[1], [0], [0], [1], [0, 0, 1, 1], [], []>} : vector<8x128xbf16>, vector<128x128xbf16>, vector<8x128xf32> -> vector<8x128xf32>
    %995 = vector.broadcast %6 : vector<1x128xf32> to vector<8x128xf32>
    %996 = arith.addf %994, %995 : vector<8x128xf32>
    %cst_340 = arith.constant 0.000000e+00 : f32
    %997 = vector.broadcast %cst_340 : f32 to vector<8x128xf32>
    %998 = arith.maximumf %996, %997 : vector<8x128xf32>
    %999 = vector.broadcast %7 : vector<1x128xf32> to vector<8x128xf32>
    %1000 = arith.mulf %998, %999 : vector<8x128xf32>
    %cst_341 = arith.constant dense<0.000000e+00> : vector<8xf32>
    %1001 = vector.multi_reduction <add>, %1000, %cst_341 [1] : vector<8x128xf32> to vector<8xf32>
    %1002 = vector.shape_cast %1001 : vector<8xf32> to vector<8x1xf32>
    %1003 = vector.broadcast %8 : f32 to vector<8x1xf32>
    %1004 = arith.addf %1002, %1003 : vector<8x1xf32>
    %cst_342 = arith.constant 3.000000e+00 : f32
    %1005 = vector.broadcast %cst_342 : f32 to vector<8x1xf32>
    %1006 = arith.divf %964, %1005 : vector<8x1xf32>
    %1007 = arith.subf %1004, %1006 : vector<8x1xf32>
    %1008 = vector.broadcast %921 : f32 to vector<8x1xf32>
    %1009 = arith.mulf %1008, %1007 : vector<8x1xf32>
    %1010 = arith.addf %915, %1009 : vector<8x1xf32>
    %1011 = vector.broadcast %1010 : vector<8x1xf32> to vector<8x128xf32>
    %1012 = vector.broadcast %1 : vector<1x128xf32> to vector<8x128xf32>
    %1013 = arith.mulf %1011, %1012 : vector<8x128xf32>
    %1014 = vector.broadcast %927 : vector<8x1xf32> to vector<8x128xf32>
    %1015 = vector.broadcast %2 : vector<1x128xf32> to vector<8x128xf32>
    %1016 = arith.mulf %1014, %1015 : vector<8x128xf32>
    %1017 = arith.addf %1013, %1016 : vector<8x128xf32>
    %1018 = vector.broadcast %919 : f32 to vector<1x128xf32>
    %1019 = arith.mulf %1018, %3 : vector<1x128xf32>
    %1020 = vector.broadcast %1019 : vector<1x128xf32> to vector<8x128xf32>
    %1021 = arith.addf %1017, %1020 : vector<8x128xf32>
    %1022 = vector.broadcast %4 : vector<1x128xf32> to vector<8x128xf32>
    %1023 = arith.addf %1021, %1022 : vector<8x128xf32>
    %cst_343 = arith.constant 0.000000e+00 : f32
    %1024 = vector.broadcast %cst_343 : f32 to vector<8x128xf32>
    %1025 = arith.maximumf %1023, %1024 : vector<8x128xf32>
    %1026 = arith.truncf %1025 : vector<8x128xf32> to vector<8x128xbf16>
    %c0_344 = arith.constant 0 : index
    %c0_345 = arith.constant 0 : index
    %1027 = vector.load %arg6[%c0_344, %c0_345] : memref<128x128xbf16, #tpu.memory_space<vmem>>, vector<128x128xbf16>
    %cst_346 = arith.constant dense<0.000000e+00> : vector<8x128xf32>
    %1028 = tpu.matmul %1026, %1027, %cst_346 {dimension_numbers = #tpu.dot_dimension_numbers<[1], [0], [0], [1], [0, 0, 1, 1], [], []>} : vector<8x128xbf16>, vector<128x128xbf16>, vector<8x128xf32> -> vector<8x128xf32>
    %1029 = vector.broadcast %5 : vector<1x128xf32> to vector<8x128xf32>
    %1030 = arith.addf %1028, %1029 : vector<8x128xf32>
    %cst_347 = arith.constant 0.000000e+00 : f32
    %1031 = vector.broadcast %cst_347 : f32 to vector<8x128xf32>
    %1032 = arith.maximumf %1030, %1031 : vector<8x128xf32>
    %1033 = arith.truncf %1032 : vector<8x128xf32> to vector<8x128xbf16>
    %c0_348 = arith.constant 0 : index
    %c0_349 = arith.constant 0 : index
    %1034 = vector.load %arg8[%c0_348, %c0_349] : memref<128x128xbf16, #tpu.memory_space<vmem>>, vector<128x128xbf16>
    %cst_350 = arith.constant dense<0.000000e+00> : vector<8x128xf32>
    %1035 = tpu.matmul %1033, %1034, %cst_350 {dimension_numbers = #tpu.dot_dimension_numbers<[1], [0], [0], [1], [0, 0, 1, 1], [], []>} : vector<8x128xbf16>, vector<128x128xbf16>, vector<8x128xf32> -> vector<8x128xf32>
    %1036 = vector.broadcast %6 : vector<1x128xf32> to vector<8x128xf32>
    %1037 = arith.addf %1035, %1036 : vector<8x128xf32>
    %cst_351 = arith.constant 0.000000e+00 : f32
    %1038 = vector.broadcast %cst_351 : f32 to vector<8x128xf32>
    %1039 = arith.maximumf %1037, %1038 : vector<8x128xf32>
    %1040 = vector.broadcast %7 : vector<1x128xf32> to vector<8x128xf32>
    %1041 = arith.mulf %1039, %1040 : vector<8x128xf32>
    %cst_352 = arith.constant dense<0.000000e+00> : vector<8xf32>
    %1042 = vector.multi_reduction <add>, %1041, %cst_352 [1] : vector<8x128xf32> to vector<8xf32>
    %1043 = vector.shape_cast %1042 : vector<8xf32> to vector<8x1xf32>
    %1044 = vector.broadcast %8 : f32 to vector<8x1xf32>
    %1045 = arith.addf %1043, %1044 : vector<8x1xf32>
    %1046 = arith.subf %964, %1004 : vector<8x1xf32>
    %1047 = arith.addf %1046, %1045 : vector<8x1xf32>
    %1048 = vector.broadcast %921 : f32 to vector<8x1xf32>
    %1049 = arith.mulf %1048, %1047 : vector<8x1xf32>
    %1050 = arith.addf %915, %1049 : vector<8x1xf32>
    %1051 = vector.broadcast %1050 : vector<8x1xf32> to vector<8x128xf32>
    %1052 = vector.broadcast %1 : vector<1x128xf32> to vector<8x128xf32>
    %1053 = arith.mulf %1051, %1052 : vector<8x128xf32>
    %1054 = vector.broadcast %929 : vector<8x1xf32> to vector<8x128xf32>
    %1055 = vector.broadcast %2 : vector<1x128xf32> to vector<8x128xf32>
    %1056 = arith.mulf %1054, %1055 : vector<8x128xf32>
    %1057 = arith.addf %1053, %1056 : vector<8x128xf32>
    %1058 = vector.broadcast %920 : f32 to vector<1x128xf32>
    %1059 = arith.mulf %1058, %3 : vector<1x128xf32>
    %1060 = vector.broadcast %1059 : vector<1x128xf32> to vector<8x128xf32>
    %1061 = arith.addf %1057, %1060 : vector<8x128xf32>
    %1062 = vector.broadcast %4 : vector<1x128xf32> to vector<8x128xf32>
    %1063 = arith.addf %1061, %1062 : vector<8x128xf32>
    %cst_353 = arith.constant 0.000000e+00 : f32
    %1064 = vector.broadcast %cst_353 : f32 to vector<8x128xf32>
    %1065 = arith.maximumf %1063, %1064 : vector<8x128xf32>
    %1066 = arith.truncf %1065 : vector<8x128xf32> to vector<8x128xbf16>
    %c0_354 = arith.constant 0 : index
    %c0_355 = arith.constant 0 : index
    %1067 = vector.load %arg6[%c0_354, %c0_355] : memref<128x128xbf16, #tpu.memory_space<vmem>>, vector<128x128xbf16>
    %cst_356 = arith.constant dense<0.000000e+00> : vector<8x128xf32>
    %1068 = tpu.matmul %1066, %1067, %cst_356 {dimension_numbers = #tpu.dot_dimension_numbers<[1], [0], [0], [1], [0, 0, 1, 1], [], []>} : vector<8x128xbf16>, vector<128x128xbf16>, vector<8x128xf32> -> vector<8x128xf32>
    %1069 = vector.broadcast %5 : vector<1x128xf32> to vector<8x128xf32>
    %1070 = arith.addf %1068, %1069 : vector<8x128xf32>
    %cst_357 = arith.constant 0.000000e+00 : f32
    %1071 = vector.broadcast %cst_357 : f32 to vector<8x128xf32>
    %1072 = arith.maximumf %1070, %1071 : vector<8x128xf32>
    %1073 = arith.truncf %1072 : vector<8x128xf32> to vector<8x128xbf16>
    %c0_358 = arith.constant 0 : index
    %c0_359 = arith.constant 0 : index
    %1074 = vector.load %arg8[%c0_358, %c0_359] : memref<128x128xbf16, #tpu.memory_space<vmem>>, vector<128x128xbf16>
    %cst_360 = arith.constant dense<0.000000e+00> : vector<8x128xf32>
    %1075 = tpu.matmul %1073, %1074, %cst_360 {dimension_numbers = #tpu.dot_dimension_numbers<[1], [0], [0], [1], [0, 0, 1, 1], [], []>} : vector<8x128xbf16>, vector<128x128xbf16>, vector<8x128xf32> -> vector<8x128xf32>
    %1076 = vector.broadcast %6 : vector<1x128xf32> to vector<8x128xf32>
    %1077 = arith.addf %1075, %1076 : vector<8x128xf32>
    %cst_361 = arith.constant 0.000000e+00 : f32
    %1078 = vector.broadcast %cst_361 : f32 to vector<8x128xf32>
    %1079 = arith.maximumf %1077, %1078 : vector<8x128xf32>
    %1080 = vector.broadcast %7 : vector<1x128xf32> to vector<8x128xf32>
    %1081 = arith.mulf %1079, %1080 : vector<8x128xf32>
    %cst_362 = arith.constant dense<0.000000e+00> : vector<8xf32>
    %1082 = vector.multi_reduction <add>, %1081, %cst_362 [1] : vector<8x128xf32> to vector<8xf32>
    %1083 = vector.shape_cast %1082 : vector<8xf32> to vector<8x1xf32>
    %1084 = vector.broadcast %8 : f32 to vector<8x1xf32>
    %1085 = arith.addf %1083, %1084 : vector<8x1xf32>
    %1086 = arith.addf %1004, %1045 : vector<8x1xf32>
    %cst_363 = arith.constant 3.000000e+00 : f32
    %1087 = vector.broadcast %cst_363 : f32 to vector<8x1xf32>
    %1088 = arith.mulf %1087, %1086 : vector<8x1xf32>
    %1089 = arith.addf %964, %1088 : vector<8x1xf32>
    %1090 = arith.addf %1089, %1085 : vector<8x1xf32>
    %1091 = vector.broadcast %921 : f32 to vector<8x1xf32>
    %1092 = arith.mulf %1091, %1090 : vector<8x1xf32>
    %cst_364 = arith.constant 1.250000e-01 : f32
    %1093 = vector.broadcast %cst_364 : f32 to vector<8x1xf32>
    %1094 = arith.mulf %1092, %1093 : vector<8x1xf32>
    %1095 = arith.addf %915, %1094 : vector<8x1xf32>
    %c0_365 = arith.constant 0 : index
    %c6_366 = arith.constant 6 : index
    %1096 = vector.load %arg11[%c0_365, %c6_366] : memref<8x128xf32, #tpu.memory_space<vmem>>, vector<8x1xf32>
    tpu.vector_store %arg11[%c0_365, %c6_366], %1095 {strides = array<i32>} : memref<8x128xf32, #tpu.memory_space<vmem>>, vector<8x1xf32>,
    %c30 = arith.constant 30 : index
    %1097 = memref.load %arg2[%c30] : memref<35xf32, #tpu.memory_space<smem>>
    %c31 = arith.constant 31 : index
    %1098 = memref.load %arg2[%c31] : memref<35xf32, #tpu.memory_space<smem>>
    %c32 = arith.constant 32 : index
    %1099 = memref.load %arg2[%c32] : memref<35xf32, #tpu.memory_space<smem>>
    %c33 = arith.constant 33 : index
    %1100 = memref.load %arg2[%c33] : memref<35xf32, #tpu.memory_space<smem>>
    %c34 = arith.constant 34 : index
    %1101 = memref.load %arg2[%c34] : memref<35xf32, #tpu.memory_space<smem>>
    %c0_367 = arith.constant 0 : index
    %c0_368 = arith.constant 0 : index
    %c6_369 = arith.constant 6 : index
    %1102 = vector.load %arg1[%c0_367, %c0_368, %c6_369] : memref<4x8x128xf32, #tpu.memory_space<vmem>>, vector<1x8x1xf32>
    %1103 = vector.shape_cast %1102 : vector<1x8x1xf32> to vector<8x1xf32>
    %c1_370 = arith.constant 1 : index
    %c0_371 = arith.constant 0 : index
    %c6_372 = arith.constant 6 : index
    %1104 = vector.load %arg1[%c1_370, %c0_371, %c6_372] : memref<4x8x128xf32, #tpu.memory_space<vmem>>, vector<1x8x1xf32>
    %1105 = vector.shape_cast %1104 : vector<1x8x1xf32> to vector<8x1xf32>
    %c2_373 = arith.constant 2 : index
    %c0_374 = arith.constant 0 : index
    %c6_375 = arith.constant 6 : index
    %1106 = vector.load %arg1[%c2_373, %c0_374, %c6_375] : memref<4x8x128xf32, #tpu.memory_space<vmem>>, vector<1x8x1xf32>
    %1107 = vector.shape_cast %1106 : vector<1x8x1xf32> to vector<8x1xf32>
    %c3_376 = arith.constant 3 : index
    %c0_377 = arith.constant 0 : index
    %c6_378 = arith.constant 6 : index
    %1108 = vector.load %arg1[%c3_376, %c0_377, %c6_378] : memref<4x8x128xf32, #tpu.memory_space<vmem>>, vector<1x8x1xf32>
    %1109 = vector.shape_cast %1108 : vector<1x8x1xf32> to vector<8x1xf32>
    %1110 = vector.broadcast %1095 : vector<8x1xf32> to vector<8x128xf32>
    %1111 = vector.broadcast %1 : vector<1x128xf32> to vector<8x128xf32>
    %1112 = arith.mulf %1110, %1111 : vector<8x128xf32>
    %1113 = vector.broadcast %1103 : vector<8x1xf32> to vector<8x128xf32>
    %1114 = vector.broadcast %2 : vector<1x128xf32> to vector<8x128xf32>
    %1115 = arith.mulf %1113, %1114 : vector<8x128xf32>
    %1116 = arith.addf %1112, %1115 : vector<8x128xf32>
    %1117 = vector.broadcast %1097 : f32 to vector<1x128xf32>
    %1118 = arith.mulf %1117, %3 : vector<1x128xf32>
    %1119 = vector.broadcast %1118 : vector<1x128xf32> to vector<8x128xf32>
    %1120 = arith.addf %1116, %1119 : vector<8x128xf32>
    %1121 = vector.broadcast %4 : vector<1x128xf32> to vector<8x128xf32>
    %1122 = arith.addf %1120, %1121 : vector<8x128xf32>
    %cst_379 = arith.constant 0.000000e+00 : f32
    %1123 = vector.broadcast %cst_379 : f32 to vector<8x128xf32>
    %1124 = arith.maximumf %1122, %1123 : vector<8x128xf32>
    %1125 = arith.truncf %1124 : vector<8x128xf32> to vector<8x128xbf16>
    %c0_380 = arith.constant 0 : index
    %c0_381 = arith.constant 0 : index
    %1126 = vector.load %arg6[%c0_380, %c0_381] : memref<128x128xbf16, #tpu.memory_space<vmem>>, vector<128x128xbf16>
    %cst_382 = arith.constant dense<0.000000e+00> : vector<8x128xf32>
    %1127 = tpu.matmul %1125, %1126, %cst_382 {dimension_numbers = #tpu.dot_dimension_numbers<[1], [0], [0], [1], [0, 0, 1, 1], [], []>} : vector<8x128xbf16>, vector<128x128xbf16>, vector<8x128xf32> -> vector<8x128xf32>
    %1128 = vector.broadcast %5 : vector<1x128xf32> to vector<8x128xf32>
    %1129 = arith.addf %1127, %1128 : vector<8x128xf32>
    %cst_383 = arith.constant 0.000000e+00 : f32
    %1130 = vector.broadcast %cst_383 : f32 to vector<8x128xf32>
    %1131 = arith.maximumf %1129, %1130 : vector<8x128xf32>
    %1132 = arith.truncf %1131 : vector<8x128xf32> to vector<8x128xbf16>
    %c0_384 = arith.constant 0 : index
    %c0_385 = arith.constant 0 : index
    %1133 = vector.load %arg8[%c0_384, %c0_385] : memref<128x128xbf16, #tpu.memory_space<vmem>>, vector<128x128xbf16>
    %cst_386 = arith.constant dense<0.000000e+00> : vector<8x128xf32>
    %1134 = tpu.matmul %1132, %1133, %cst_386 {dimension_numbers = #tpu.dot_dimension_numbers<[1], [0], [0], [1], [0, 0, 1, 1], [], []>} : vector<8x128xbf16>, vector<128x128xbf16>, vector<8x128xf32> -> vector<8x128xf32>
    %1135 = vector.broadcast %6 : vector<1x128xf32> to vector<8x128xf32>
    %1136 = arith.addf %1134, %1135 : vector<8x128xf32>
    %cst_387 = arith.constant 0.000000e+00 : f32
    %1137 = vector.broadcast %cst_387 : f32 to vector<8x128xf32>
    %1138 = arith.maximumf %1136, %1137 : vector<8x128xf32>
    %1139 = vector.broadcast %7 : vector<1x128xf32> to vector<8x128xf32>
    %1140 = arith.mulf %1138, %1139 : vector<8x128xf32>
    %cst_388 = arith.constant dense<0.000000e+00> : vector<8xf32>
    %1141 = vector.multi_reduction <add>, %1140, %cst_388 [1] : vector<8x128xf32> to vector<8xf32>
    %1142 = vector.shape_cast %1141 : vector<8xf32> to vector<8x1xf32>
    %1143 = vector.broadcast %8 : f32 to vector<8x1xf32>
    %1144 = arith.addf %1142, %1143 : vector<8x1xf32>
    %1145 = vector.broadcast %1101 : f32 to vector<8x1xf32>
    %1146 = arith.mulf %1145, %1144 : vector<8x1xf32>
    %cst_389 = arith.constant 3.000000e+00 : f32
    %1147 = vector.broadcast %cst_389 : f32 to vector<8x1xf32>
    %1148 = arith.divf %1146, %1147 : vector<8x1xf32>
    %1149 = arith.addf %1095, %1148 : vector<8x1xf32>
    %1150 = vector.broadcast %1149 : vector<8x1xf32> to vector<8x128xf32>
    %1151 = vector.broadcast %1 : vector<1x128xf32> to vector<8x128xf32>
    %1152 = arith.mulf %1150, %1151 : vector<8x128xf32>
    %1153 = vector.broadcast %1105 : vector<8x1xf32> to vector<8x128xf32>
    %1154 = vector.broadcast %2 : vector<1x128xf32> to vector<8x128xf32>
    %1155 = arith.mulf %1153, %1154 : vector<8x128xf32>
    %1156 = arith.addf %1152, %1155 : vector<8x128xf32>
    %1157 = vector.broadcast %1098 : f32 to vector<1x128xf32>
    %1158 = arith.mulf %1157, %3 : vector<1x128xf32>
    %1159 = vector.broadcast %1158 : vector<1x128xf32> to vector<8x128xf32>
    %1160 = arith.addf %1156, %1159 : vector<8x128xf32>
    %1161 = vector.broadcast %4 : vector<1x128xf32> to vector<8x128xf32>
    %1162 = arith.addf %1160, %1161 : vector<8x128xf32>
    %cst_390 = arith.constant 0.000000e+00 : f32
    %1163 = vector.broadcast %cst_390 : f32 to vector<8x128xf32>
    %1164 = arith.maximumf %1162, %1163 : vector<8x128xf32>
    %1165 = arith.truncf %1164 : vector<8x128xf32> to vector<8x128xbf16>
    %c0_391 = arith.constant 0 : index
    %c0_392 = arith.constant 0 : index
    %1166 = vector.load %arg6[%c0_391, %c0_392] : memref<128x128xbf16, #tpu.memory_space<vmem>>, vector<128x128xbf16>
    %cst_393 = arith.constant dense<0.000000e+00> : vector<8x128xf32>
    %1167 = tpu.matmul %1165, %1166, %cst_393 {dimension_numbers = #tpu.dot_dimension_numbers<[1], [0], [0], [1], [0, 0, 1, 1], [], []>} : vector<8x128xbf16>, vector<128x128xbf16>, vector<8x128xf32> -> vector<8x128xf32>
    %1168 = vector.broadcast %5 : vector<1x128xf32> to vector<8x128xf32>
    %1169 = arith.addf %1167, %1168 : vector<8x128xf32>
    %cst_394 = arith.constant 0.000000e+00 : f32
    %1170 = vector.broadcast %cst_394 : f32 to vector<8x128xf32>
    %1171 = arith.maximumf %1169, %1170 : vector<8x128xf32>
    %1172 = arith.truncf %1171 : vector<8x128xf32> to vector<8x128xbf16>
    %c0_395 = arith.constant 0 : index
    %c0_396 = arith.constant 0 : index
    %1173 = vector.load %arg8[%c0_395, %c0_396] : memref<128x128xbf16, #tpu.memory_space<vmem>>, vector<128x128xbf16>
    %cst_397 = arith.constant dense<0.000000e+00> : vector<8x128xf32>
    %1174 = tpu.matmul %1172, %1173, %cst_397 {dimension_numbers = #tpu.dot_dimension_numbers<[1], [0], [0], [1], [0, 0, 1, 1], [], []>} : vector<8x128xbf16>, vector<128x128xbf16>, vector<8x128xf32> -> vector<8x128xf32>
    %1175 = vector.broadcast %6 : vector<1x128xf32> to vector<8x128xf32>
    %1176 = arith.addf %1174, %1175 : vector<8x128xf32>
    %cst_398 = arith.constant 0.000000e+00 : f32
    %1177 = vector.broadcast %cst_398 : f32 to vector<8x128xf32>
    %1178 = arith.maximumf %1176, %1177 : vector<8x128xf32>
    %1179 = vector.broadcast %7 : vector<1x128xf32> to vector<8x128xf32>
    %1180 = arith.mulf %1178, %1179 : vector<8x128xf32>
    %cst_399 = arith.constant dense<0.000000e+00> : vector<8xf32>
    %1181 = vector.multi_reduction <add>, %1180, %cst_399 [1] : vector<8x128xf32> to vector<8xf32>
    %1182 = vector.shape_cast %1181 : vector<8xf32> to vector<8x1xf32>
    %1183 = vector.broadcast %8 : f32 to vector<8x1xf32>
    %1184 = arith.addf %1182, %1183 : vector<8x1xf32>
    %cst_400 = arith.constant 3.000000e+00 : f32
    %1185 = vector.broadcast %cst_400 : f32 to vector<8x1xf32>
    %1186 = arith.divf %1144, %1185 : vector<8x1xf32>
    %1187 = arith.subf %1184, %1186 : vector<8x1xf32>
    %1188 = vector.broadcast %1101 : f32 to vector<8x1xf32>
    %1189 = arith.mulf %1188, %1187 : vector<8x1xf32>
    %1190 = arith.addf %1095, %1189 : vector<8x1xf32>
    %1191 = vector.broadcast %1190 : vector<8x1xf32> to vector<8x128xf32>
    %1192 = vector.broadcast %1 : vector<1x128xf32> to vector<8x128xf32>
    %1193 = arith.mulf %1191, %1192 : vector<8x128xf32>
    %1194 = vector.broadcast %1107 : vector<8x1xf32> to vector<8x128xf32>
    %1195 = vector.broadcast %2 : vector<1x128xf32> to vector<8x128xf32>
    %1196 = arith.mulf %1194, %1195 : vector<8x128xf32>
    %1197 = arith.addf %1193, %1196 : vector<8x128xf32>
    %1198 = vector.broadcast %1099 : f32 to vector<1x128xf32>
    %1199 = arith.mulf %1198, %3 : vector<1x128xf32>
    %1200 = vector.broadcast %1199 : vector<1x128xf32> to vector<8x128xf32>
    %1201 = arith.addf %1197, %1200 : vector<8x128xf32>
    %1202 = vector.broadcast %4 : vector<1x128xf32> to vector<8x128xf32>
    %1203 = arith.addf %1201, %1202 : vector<8x128xf32>
    %cst_401 = arith.constant 0.000000e+00 : f32
    %1204 = vector.broadcast %cst_401 : f32 to vector<8x128xf32>
    %1205 = arith.maximumf %1203, %1204 : vector<8x128xf32>
    %1206 = arith.truncf %1205 : vector<8x128xf32> to vector<8x128xbf16>
    %c0_402 = arith.constant 0 : index
    %c0_403 = arith.constant 0 : index
    %1207 = vector.load %arg6[%c0_402, %c0_403] : memref<128x128xbf16, #tpu.memory_space<vmem>>, vector<128x128xbf16>
    %cst_404 = arith.constant dense<0.000000e+00> : vector<8x128xf32>
    %1208 = tpu.matmul %1206, %1207, %cst_404 {dimension_numbers = #tpu.dot_dimension_numbers<[1], [0], [0], [1], [0, 0, 1, 1], [], []>} : vector<8x128xbf16>, vector<128x128xbf16>, vector<8x128xf32> -> vector<8x128xf32>
    %1209 = vector.broadcast %5 : vector<1x128xf32> to vector<8x128xf32>
    %1210 = arith.addf %1208, %1209 : vector<8x128xf32>
    %cst_405 = arith.constant 0.000000e+00 : f32
    %1211 = vector.broadcast %cst_405 : f32 to vector<8x128xf32>
    %1212 = arith.maximumf %1210, %1211 : vector<8x128xf32>
    %1213 = arith.truncf %1212 : vector<8x128xf32> to vector<8x128xbf16>
    %c0_406 = arith.constant 0 : index
    %c0_407 = arith.constant 0 : index
    %1214 = vector.load %arg8[%c0_406, %c0_407] : memref<128x128xbf16, #tpu.memory_space<vmem>>, vector<128x128xbf16>
    %cst_408 = arith.constant dense<0.000000e+00> : vector<8x128xf32>
    %1215 = tpu.matmul %1213, %1214, %cst_408 {dimension_numbers = #tpu.dot_dimension_numbers<[1], [0], [0], [1], [0, 0, 1, 1], [], []>} : vector<8x128xbf16>, vector<128x128xbf16>, vector<8x128xf32> -> vector<8x128xf32>
    %1216 = vector.broadcast %6 : vector<1x128xf32> to vector<8x128xf32>
    %1217 = arith.addf %1215, %1216 : vector<8x128xf32>
    %cst_409 = arith.constant 0.000000e+00 : f32
    %1218 = vector.broadcast %cst_409 : f32 to vector<8x128xf32>
    %1219 = arith.maximumf %1217, %1218 : vector<8x128xf32>
    %1220 = vector.broadcast %7 : vector<1x128xf32> to vector<8x128xf32>
    %1221 = arith.mulf %1219, %1220 : vector<8x128xf32>
    %cst_410 = arith.constant dense<0.000000e+00> : vector<8xf32>
    %1222 = vector.multi_reduction <add>, %1221, %cst_410 [1] : vector<8x128xf32> to vector<8xf32>
    %1223 = vector.shape_cast %1222 : vector<8xf32> to vector<8x1xf32>
    %1224 = vector.broadcast %8 : f32 to vector<8x1xf32>
    %1225 = arith.addf %1223, %1224 : vector<8x1xf32>
    %1226 = arith.subf %1144, %1184 : vector<8x1xf32>
    %1227 = arith.addf %1226, %1225 : vector<8x1xf32>
    %1228 = vector.broadcast %1101 : f32 to vector<8x1xf32>
    %1229 = arith.mulf %1228, %1227 : vector<8x1xf32>
    %1230 = arith.addf %1095, %1229 : vector<8x1xf32>
    %1231 = vector.broadcast %1230 : vector<8x1xf32> to vector<8x128xf32>
    %1232 = vector.broadcast %1 : vector<1x128xf32> to vector<8x128xf32>
    %1233 = arith.mulf %1231, %1232 : vector<8x128xf32>
    %1234 = vector.broadcast %1109 : vector<8x1xf32> to vector<8x128xf32>
    %1235 = vector.broadcast %2 : vector<1x128xf32> to vector<8x128xf32>
    %1236 = arith.mulf %1234, %1235 : vector<8x128xf32>
    %1237 = arith.addf %1233, %1236 : vector<8x128xf32>
    %1238 = vector.broadcast %1100 : f32 to vector<1x128xf32>
    %1239 = arith.mulf %1238, %3 : vector<1x128xf32>
    %1240 = vector.broadcast %1239 : vector<1x128xf32> to vector<8x128xf32>
    %1241 = arith.addf %1237, %1240 : vector<8x128xf32>
    %1242 = vector.broadcast %4 : vector<1x128xf32> to vector<8x128xf32>
    %1243 = arith.addf %1241, %1242 : vector<8x128xf32>
    %cst_411 = arith.constant 0.000000e+00 : f32
    %1244 = vector.broadcast %cst_411 : f32 to vector<8x128xf32>
    %1245 = arith.maximumf %1243, %1244 : vector<8x128xf32>
    %1246 = arith.truncf %1245 : vector<8x128xf32> to vector<8x128xbf16>
    %c0_412 = arith.constant 0 : index
    %c0_413 = arith.constant 0 : index
    %1247 = vector.load %arg6[%c0_412, %c0_413] : memref<128x128xbf16, #tpu.memory_space<vmem>>, vector<128x128xbf16>
    %cst_414 = arith.constant dense<0.000000e+00> : vector<8x128xf32>
    %1248 = tpu.matmul %1246, %1247, %cst_414 {dimension_numbers = #tpu.dot_dimension_numbers<[1], [0], [0], [1], [0, 0, 1, 1], [], []>} : vector<8x128xbf16>, vector<128x128xbf16>, vector<8x128xf32> -> vector<8x128xf32>
    %1249 = vector.broadcast %5 : vector<1x128xf32> to vector<8x128xf32>
    %1250 = arith.addf %1248, %1249 : vector<8x128xf32>
    %cst_415 = arith.constant 0.000000e+00 : f32
    %1251 = vector.broadcast %cst_415 : f32 to vector<8x128xf32>
    %1252 = arith.maximumf %1250, %1251 : vector<8x128xf32>
    %1253 = arith.truncf %1252 : vector<8x128xf32> to vector<8x128xbf16>
    %c0_416 = arith.constant 0 : index
    %c0_417 = arith.constant 0 : index
    %1254 = vector.load %arg8[%c0_416, %c0_417] : memref<128x128xbf16, #tpu.memory_space<vmem>>, vector<128x128xbf16>
    %cst_418 = arith.constant dense<0.000000e+00> : vector<8x128xf32>
    %1255 = tpu.matmul %1253, %1254, %cst_418 {dimension_numbers = #tpu.dot_dimension_numbers<[1], [0], [0], [1], [0, 0, 1, 1], [], []>} : vector<8x128xbf16>, vector<128x128xbf16>, vector<8x128xf32> -> vector<8x128xf32>
    %1256 = vector.broadcast %6 : vector<1x128xf32> to vector<8x128xf32>
    %1257 = arith.addf %1255, %1256 : vector<8x128xf32>
    %cst_419 = arith.constant 0.000000e+00 : f32
    %1258 = vector.broadcast %cst_419 : f32 to vector<8x128xf32>
    %1259 = arith.maximumf %1257, %1258 : vector<8x128xf32>
    %1260 = vector.broadcast %7 : vector<1x128xf32> to vector<8x128xf32>
    %1261 = arith.mulf %1259, %1260 : vector<8x128xf32>
    %cst_420 = arith.constant dense<0.000000e+00> : vector<8xf32>
    %1262 = vector.multi_reduction <add>, %1261, %cst_420 [1] : vector<8x128xf32> to vector<8xf32>
    %1263 = vector.shape_cast %1262 : vector<8xf32> to vector<8x1xf32>
    %1264 = vector.broadcast %8 : f32 to vector<8x1xf32>
    %1265 = arith.addf %1263, %1264 : vector<8x1xf32>
    %1266 = arith.addf %1184, %1225 : vector<8x1xf32>
    %cst_421 = arith.constant 3.000000e+00 : f32
    %1267 = vector.broadcast %cst_421 : f32 to vector<8x1xf32>
    %1268 = arith.mulf %1267, %1266 : vector<8x1xf32>
    %1269 = arith.addf %1144, %1268 : vector<8x1xf32>
    %1270 = arith.addf %1269, %1265 : vector<8x1xf32>
    %1271 = vector.broadcast %1101 : f32 to vector<8x1xf32>
    %1272 = arith.mulf %1271, %1270 : vector<8x1xf32>
    %cst_422 = arith.constant 1.250000e-01 : f32
    %1273 = vector.broadcast %cst_422 : f32 to vector<8x1xf32>
    %1274 = arith.mulf %1272, %1273 : vector<8x1xf32>
    %1275 = arith.addf %1095, %1274 : vector<8x1xf32>
    %c0_423 = arith.constant 0 : index
    %c7_424 = arith.constant 7 : index
    %1276 = vector.load %arg11[%c0_423, %c7_424] : memref<8x128xf32, #tpu.memory_space<vmem>>, vector<8x1xf32>
    tpu.vector_store %arg11[%c0_423, %c7_424], %1275 {strides = array<i32>} : memref<8x128xf32, #tpu.memory_space<vmem>>, vector<8x1xf32>,
    return
  }
}

</mosaic_0001>

<llo_original>
// kernel: tpu_custom_call.1
$region0: #{tpu_custom_call.1}
  #allocation0 [shape = 'u32[]', space=smem, size = 0x4, offset = 0x4, fixed_abs, tag = 'smem constant byte address 0x4 - core index']
  #allocation1 [shape = 'u32[72,128]{1,0:T(1,128)}', space=vmem, size = 0x9000, scoped, tag = 'internal scratch']
  #allocation2 [shape = 'f32[1]{0:T(128)S(6)}', space=smem, size = 0x200, scoped, tag = 'scoped memory for tpu_custom_call.1']
  %s0 = inlined_call_operand.vmem [shape: f32[8,1], index: 0, kind: input, shape index: {}]
  %s1 = inlined_call_operand.hbm [shape: f32[4,8,128], index: 1, kind: input, shape index: {}]
  %s2 = inlined_call_operand.vmem [shape: f32[35], index: 2, kind: input, shape index: {}]
  %s3 = inlined_call_operand.<no memory space> [shape: f32[1], index: 3, kind: input, shape index: {}]
  %s4 = inlined_call_operand.vmem [shape: f32[8,128], index: 4, kind: input, shape index: {}]
  %s5 = inlined_call_operand.vmem [shape: f32[1,128], index: 5, kind: input, shape index: {}]
  %s6 = inlined_call_operand.hbm [shape: bf16[128,128], index: 6, kind: input, shape index: {}]
  %s7 = inlined_call_operand.vmem [shape: f32[1,128], index: 7, kind: input, shape index: {}]
  %s8 = inlined_call_operand.hbm [shape: bf16[128,128], index: 8, kind: input, shape index: {}]
  %s9 = inlined_call_operand.vmem [shape: f32[1,128], index: 9, kind: input, shape index: {}]
  %s10 = inlined_call_operand.vmem [shape: f32[1,128], index: 10, kind: input, shape index: {}]
  %s11 = inlined_call_operand.hbm [shape: f32[8,128], index: 11, kind: output, shape index: {}]
  %s12 = sld [smem:[#allocation0]]
  $region70: #{tpu_custom_call.1} parent=0
    _
  %s14 = ssub.s32 1, %s12
  %s15 = scalar_select 0, %s14, %s12
  %16 = sst [smem:[#allocation2]] %s3
  $region1: #{tpu_custom_call.1} parent=0
    #allocation3 [shape = 'u8[16384]{0}', space=vmem, size = 0x4000, scoped, tag = 'input window, operand 1, single buffered']
    #allocation4 [shape = 's32[1]{0}', space=sflag, size = 0x4, scoped, tag = 'scoped memory for tpu_custom_call.1']
    #allocation5 [shape = 's32[1]{0}', space=sflag, size = 0x4, scoped, tag = 'scoped memory for tpu_custom_call.1']
    #allocation6 [shape = 's32[1]{0}', space=sflag, size = 0x4, scoped, tag = 'scoped memory for tpu_custom_call.1']
    #allocation7 [shape = 'u8[512]{0}', space=smem, size = 0x200, scoped, tag = 'input window, operand 2, single buffered']
    #allocation8 [shape = 'u8[32768]{0}', space=vmem, size = 0x8000, scoped, tag = 'input window, operand 6, single buffered']
    #allocation9 [shape = 's32[1]{0}', space=sflag, size = 0x4, scoped, tag = 'scoped memory for tpu_custom_call.1']
    #allocation10 [shape = 'u8[32768]{0}', space=vmem, size = 0x8000, scoped, tag = 'input window, operand 8, single buffered']
    #allocation11 [shape = 'u8[4096]{0}', space=vmem, size = 0x1000, scoped, tag = 'output window, operand 0, single buffered']
    %17 = vsyncpa [#allocation4], 0
    %18 = vsyncpa [#allocation6], 0
    %19 = vsyncpa [#allocation9], 0
    %20 = vsyncpa [#allocation5], 0
    // Predicated region
    $region2: #{tpu_custom_call.1} parent=1 // pred_check
      _
    $region3: #{tpu_custom_call.1} parent=1 // pred_check_branch
      %22 = sbr.rel (0) target = $region5
    $region4: #{tpu_custom_call.1} parent=1 // pred_region
      _
    $region5: #{tpu_custom_call.1} parent=1 // pred_fallthru
      _
    // Predicated region
    $region6: #{tpu_custom_call.1} parent=1 // pred_check
      _
    $region7: #{tpu_custom_call.1} parent=1 // pred_check_branch
      %24 = sbr.rel (0) target = $region9
    $region8: #{tpu_custom_call.1} parent=1 // pred_region
      %26 = vsyncadd [#allocation4], 0
      %s27 = sshll.u32 %s1, 4
      %s28 = int_to_ptr.hbm [resolvable:$true] %s27
      %s29 = sshll.u32 [#allocation3], 4
      %s30 = int_to_ptr.vmem [resolvable:$true] %s29
      %35 = dma.hbm_to_vmem [thread:$0]  %s28, 512, %s30, [#allocation4], 128, 128, 8
    $region9: #{tpu_custom_call.1} parent=1 // pred_fallthru
      _
    // Predicated region
    $region10: #{tpu_custom_call.1} parent=1 // pred_check
      _
    $region11: #{tpu_custom_call.1} parent=1 // pred_check_branch
      %37 = sbr.rel (0) target = $region13
    $region12: #{tpu_custom_call.1} parent=1 // pred_region
      %39 = vsyncadd [#allocation6], 0
      %s41 = sshll.u32 %s2, 4
      %s42 = int_to_ptr.vmem [resolvable:$true] %s41
      %44 = dma.vmem_to_smem %s42, 16, [#allocation7], [#allocation6]
    $region13: #{tpu_custom_call.1} parent=1 // pred_fallthru
      _
    // Predicated region
    $region14: #{tpu_custom_call.1} parent=1 // pred_check
      _
    $region15: #{tpu_custom_call.1} parent=1 // pred_check_branch
      %46 = sbr.rel (0) target = $region17
    $region16: #{tpu_custom_call.1} parent=1 // pred_region
      _
    $region17: #{tpu_custom_call.1} parent=1 // pred_fallthru
      _
    // Predicated region
    $region18: #{tpu_custom_call.1} parent=1 // pred_check
      _
    $region19: #{tpu_custom_call.1} parent=1 // pred_check_branch
      %48 = sbr.rel (0) target = $region21
    $region20: #{tpu_custom_call.1} parent=1 // pred_region
      _
    $region21: #{tpu_custom_call.1} parent=1 // pred_fallthru
      _
    // Predicated region
    $region22: #{tpu_custom_call.1} parent=1 // pred_check
      _
    $region23: #{tpu_custom_call.1} parent=1 // pred_check_branch
      %50 = sbr.rel (0) target = $region25
    $region24: #{tpu_custom_call.1} parent=1 // pred_region
      _
    $region25: #{tpu_custom_call.1} parent=1 // pred_fallthru
      _
    // Predicated region
    $region26: #{tpu_custom_call.1} parent=1 // pred_check
      _
    $region27: #{tpu_custom_call.1} parent=1 // pred_check_branch
      %52 = sbr.rel (0) target = $region29
    $region28: #{tpu_custom_call.1} parent=1 // pred_region
      %54 = vsyncadd [#allocation9], 0
      %s55 = sshll.u32 %s6, 4
      %s56 = int_to_ptr.hbm [resolvable:$true] %s55
      %s57 = sshll.u32 [#allocation8], 4
      %s58 = int_to_ptr.vmem [resolvable:$true] %s57
      %63 = dma.hbm_to_vmem [thread:$0]  %s56, 1024, %s58, [#allocation9], 64, 64, 4
    $region29: #{tpu_custom_call.1} parent=1 // pred_fallthru
      _
    // Predicated region
    $region30: #{tpu_custom_call.1} parent=1 // pred_check
      _
    $region31: #{tpu_custom_call.1} parent=1 // pred_check_branch
      %65 = sbr.rel (0) target = $region33
    $region32: #{tpu_custom_call.1} parent=1 // pred_region
      _
    $region33: #{tpu_custom_call.1} parent=1 // pred_fallthru
      _
    // Predicated region
    $region34: #{tpu_custom_call.1} parent=1 // pred_check
      _
    $region35: #{tpu_custom_call.1} parent=1 // pred_check_branch
      %67 = sbr.rel (0) target = $region37
    $region36: #{tpu_custom_call.1} parent=1 // pred_region
      %69 = vsyncadd [#allocation9], 0
      %s70 = sshll.u32 %s8, 4
      %s71 = int_to_ptr.hbm [resolvable:$true] %s70
      %s72 = sshll.u32 [#allocation10], 4
      %s73 = int_to_ptr.vmem [resolvable:$true] %s72
      %78 = dma.hbm_to_vmem [thread:$0]  %s71, 1024, %s73, [#allocation9], 64, 64, 4
    $region37: #{tpu_custom_call.1} parent=1 // pred_fallthru
      _
    // Predicated region
    $region38: #{tpu_custom_call.1} parent=1 // pred_check
      _
    $region39: #{tpu_custom_call.1} parent=1 // pred_check_branch
      %80 = sbr.rel (0) target = $region41
    $region40: #{tpu_custom_call.1} parent=1 // pred_region
      _
    $region41: #{tpu_custom_call.1} parent=1 // pred_fallthru
      _
    // Predicated region
    $region42: #{tpu_custom_call.1} parent=1 // pred_check
      _
    $region43: #{tpu_custom_call.1} parent=1 // pred_check_branch
      %82 = sbr.rel (0) target = $region45
    $region44: #{tpu_custom_call.1} parent=1 // pred_region
      _
    $region45: #{tpu_custom_call.1} parent=1 // pred_fallthru
      _
    // Predicated region
    $region46: #{tpu_custom_call.1} parent=1 // pred_check
      _
    $region47: #{tpu_custom_call.1} parent=1 // pred_check_branch
      %84 = sbr.rel (0) target = $region49
    $region48: #{tpu_custom_call.1} parent=1 // pred_region
      %86 = dma.done [#allocation4], 512
    $region49: #{tpu_custom_call.1} parent=1 // pred_fallthru
      _
    // Predicated region
    $region50: #{tpu_custom_call.1} parent=1 // pred_check
      _
    $region51: #{tpu_custom_call.1} parent=1 // pred_check_branch
      %88 = sbr.rel (0) target = $region53
    $region52: #{tpu_custom_call.1} parent=1 // pred_region
      %90 = dma.done [#allocation6], 16
    $region53: #{tpu_custom_call.1} parent=1 // pred_fallthru
      _
    // Predicated region
    $region54: #{tpu_custom_call.1} parent=1 // pred_check
      _
    $region55: #{tpu_custom_call.1} parent=1 // pred_check_branch
      %92 = sbr.rel (0) target = $region57
    $region56: #{tpu_custom_call.1} parent=1 // pred_region
      %94 = dma.done [#allocation9], 1024
    $region57: #{tpu_custom_call.1} parent=1 // pred_fallthru
      _
    // Predicated region
    $region58: #{tpu_custom_call.1} parent=1 // pred_check
      _
    $region59: #{tpu_custom_call.1} parent=1 // pred_check_branch
      %96 = sbr.rel (0) target = $region61
    $region60: #{tpu_custom_call.1} parent=1 // pred_region
      %98 = dma.done [#allocation9], 1024
    $region61: #{tpu_custom_call.1} parent=1 // pred_fallthru
      _
    %99 = sfence
    %v100 = vlaneseq
    %v101 = vand.u32 %v100, 127
    %v102 = vld [vmem:[%s4] sm:$0x1]
    %v103 = vld [vmem:[%s4 + $0x1] sm:$0x1]
    %v104 = vld [vmem:[%s4 + $0x2] sm:$0x1]
    %v105 = vld [vmem:[%s5] sm:$0x1]
    %v106 = vld [vmem:[%s7] sm:$0x1]
    %v107 = vld [vmem:[%s9] sm:$0x1]
    %v108 = vld [vmem:[%s10] sm:$0x1]
    %s109 = sld [smem:[#allocation2]]
    %v110 = vld [vmem:[%s0] sm:$0xff]
    %vm111 = vcmp.eq.s32.totalorder %v101, 0
    %113 = vset.pattern.permute.xlu0 0
    %114 = vperm.xlu0 %113, %v110
    %v115 = vpop.permute.xlu0 %114
    %v117 = vsel %vm111, %v115, 0.0
    %118 = vst [vmem:[#allocation11] sm:$0xff] %v117
    %s119 = sld [smem:[#allocation7]]
    %s120 = sld [smem:[#allocation7 + $0x1]]
    %s121 = sld [smem:[#allocation7 + $0x2]]
    %s122 = sld [smem:[#allocation7 + $0x3]]
    %s123 = sld [smem:[#allocation7 + $0x4]]
    %v124 = vld [vmem:[#allocation3] sm:$0xff]
    %s125 = scalar_lea.vmem [#allocation3], 8
    %v126 = vld [vmem:[%s125] sm:$0xff]
    %s127 = scalar_lea.vmem [#allocation3], 16
    %v128 = vld [vmem:[%s127] sm:$0xff]
    %s129 = scalar_lea.vmem [#allocation3], 24
    %v130 = vld [vmem:[%s129] sm:$0xff]
    %v131 = vperm.slane %v102, 0
    %v132 = vmul.f32 %v115, %v131
    %134 = vset.pattern.permute.xlu0 0
    %135 = vperm.xlu0 %134, %v124
    %v136 = vpop.permute.xlu0 %135
    %v138 = vperm.slane %v103, 0
    %v139 = vmul.f32 %v136, %v138
    %v140 = vadd.f32 %v132, %v139
    %v141 = vstv %s119
    %v142 = vmul.f32 %v141, %v104
    %v143 = vperm.slane %v142, 0
    %v144 = vadd.f32 %v140, %v143
    %v146 = vperm.slane %v105, 0
    %v148 = vadd.f32 %v144, %v146
    %v149 = vmax.f32 %v148, 0.0
    %v150 = vpack.c.bf16 %v149, %v149
    %v151 = vld [vmem:[#allocation8] sm:$0xf]
    %v152 = vld [vmem:[#allocation8 + $0x4] sm:$0xf]
    %v153 = vld [vmem:[#allocation8 + $0x8] sm:$0xf]
    %v154 = vld [vmem:[#allocation8 + $0xc] sm:$0xf]
    %v155 = vld [vmem:[#allocation8 + $0x10] sm:$0xf]
    %v156 = vld [vmem:[#allocation8 + $0x14] sm:$0xf]
    %v157 = vld [vmem:[#allocation8 + $0x18] sm:$0xf]
    %v158 = vld [vmem:[#allocation8 + $0x1c] sm:$0xf]
    %v159 = vld [vmem:[#allocation8 + $0x20] sm:$0xf]
    %v160 = vld [vmem:[#allocation8 + $0x24] sm:$0xf]
    %v161 = vld [vmem:[#allocation8 + $0x28] sm:$0xf]
    %v162 = vld [vmem:[#allocation8 + $0x2c] sm:$0xf]
    %v163 = vld [vmem:[#allocation8 + $0x30] sm:$0xf]
    %v164 = vld [vmem:[#allocation8 + $0x34] sm:$0xf]
    %v165 = vld [vmem:[#allocation8 + $0x38] sm:$0xf]
    %v166 = vld [vmem:[#allocation8 + $0x3c] sm:$0xf]
    %v168 = vperm.slane %v106, 0
    %v186 = vunpack.c.l.b16 %v151
    %v187 = vunpack.c.l.b16 %v152
    %v188 = vunpack.c.l.b16 %v153
    %v189 = vunpack.c.l.b16 %v154
    %v190 = vunpack.c.l.b16 %v155
    %v191 = vunpack.c.l.b16 %v156
    %v192 = vunpack.c.l.b16 %v157
    %v193 = vunpack.c.l.b16 %v158
    %v194 = vunpack.c.l.b16 %v159
    %v195 = vunpack.c.l.b16 %v160
    %v196 = vunpack.c.l.b16 %v161
    %v197 = vunpack.c.l.b16 %v162
    %v198 = vunpack.c.l.b16 %v163
    %v199 = vunpack.c.l.b16 %v164
    %v200 = vunpack.c.l.b16 %v165
    %v201 = vunpack.c.l.b16 %v166
    %v202 = vpack.c.b16 %v187, %v186
    %v203 = vpack.c.b16 %v189, %v188
    %v204 = vpack.c.b16 %v191, %v190
    %v205 = vpack.c.b16 %v193, %v192
    %v206 = vpack.c.b16 %v195, %v194
    %v207 = vpack.c.b16 %v197, %v196
    %v208 = vpack.c.b16 %v199, %v198
    %v209 = vpack.c.b16 %v201, %v200
    %218 = vmatpush.bf16.msra.mxu0 %v209
    %219 = vmatpush.bf16.msra.mxu0 %v208
    %220 = vmatpush.bf16.msra.mxu0 %v207
    %221 = vmatpush.bf16.msra.mxu0 %v206
    %222 = vmatpush.bf16.msra.mxu0 %v205
    %223 = vmatpush.bf16.msra.mxu0 %v204
    %224 = vmatpush.bf16.msra.mxu0 %v203
    %225 = vmatpush.bf16.msra.mxu0 %v202
    %226 = vmatmul.bf16.gmra.mxu0 %v150
    %v227 = vpop.f32.mrf.mxu0
    %v228 = vadd.f32 %v168, %v227
    %v229 = vpop.f32.mrf.mxu0
    %230 = vdwg.mxu0
    %v231 = vmax.f32 %v228, 0.0
    %v232 = vpack.c.bf16 %v231, %v231
    %v233 = vld [vmem:[#allocation10] sm:$0xf]
    %v234 = vld [vmem:[#allocation10 + $0x4] sm:$0xf]
    %v235 = vld [vmem:[#allocation10 + $0x8] sm:$0xf]
    %v236 = vld [vmem:[#allocation10 + $0xc] sm:$0xf]
    %v237 = vld [vmem:[#allocation10 + $0x10] sm:$0xf]
    %v238 = vld [vmem:[#allocation10 + $0x14] sm:$0xf]
    %v239 = vld [vmem:[#allocation10 + $0x18] sm:$0xf]
    %v240 = vld [vmem:[#allocation10 + $0x1c] sm:$0xf]
    %v241 = vld [vmem:[#allocation10 + $0x20] sm:$0xf]
    %v242 = vld [vmem:[#allocation10 + $0x24] sm:$0xf]
    %v243 = vld [vmem:[#allocation10 + $0x28] sm:$0xf]
    %v244 = vld [vmem:[#allocation10 + $0x2c] sm:$0xf]
    %v245 = vld [vmem:[#allocation10 + $0x30] sm:$0xf]
    %v246 = vld [vmem:[#allocation10 + $0x34] sm:$0xf]
    %v247 = vld [vmem:[#allocation10 + $0x38] sm:$0xf]
    %v248 = vld [vmem:[#allocation10 + $0x3c] sm:$0xf]
    %v250 = vperm.slane %v107, 0
    %v268 = vunpack.c.l.b16 %v233
    %v269 = vunpack.c.l.b16 %v234
    %v270 = vunpack.c.l.b16 %v235
    %v271 = vunpack.c.l.b16 %v236
    %v272 = vunpack.c.l.b16 %v237
    %v273 = vunpack.c.l.b16 %v238
    %v274 = vunpack.c.l.b16 %v239
    %v275 = vunpack.c.l.b16 %v240
    %v276 = vunpack.c.l.b16 %v241
    %v277 = vunpack.c.l.b16 %v242
    %v278 = vunpack.c.l.b16 %v243
    %v279 = vunpack.c.l.b16 %v244
    %v280 = vunpack.c.l.b16 %v245
    %v281 = vunpack.c.l.b16 %v246
    %v282 = vunpack.c.l.b16 %v247
    %v283 = vunpack.c.l.b16 %v248
    %v284 = vpack.c.b16 %v269, %v268
    %v285 = vpack.c.b16 %v271, %v270
    %v286 = vpack.c.b16 %v273, %v272
    %v287 = vpack.c.b16 %v275, %v274
    %v288 = vpack.c.b16 %v277, %v276
    %v289 = vpack.c.b16 %v279, %v278
    %v290 = vpack.c.b16 %v281, %v280
    %v291 = vpack.c.b16 %v283, %v282
    %300 = vmatpush.bf16.msra.mxu0 %v291
    %301 = vmatpush.bf16.msra.mxu0 %v290
    %302 = vmatpush.bf16.msra.mxu0 %v289
    %303 = vmatpush.bf16.msra.mxu0 %v288
    %304 = vmatpush.bf16.msra.mxu0 %v287
    %305 = vmatpush.bf16.msra.mxu0 %v286
    %306 = vmatpush.bf16.msra.mxu0 %v285
    %307 = vmatpush.bf16.msra.mxu0 %v284
    %308 = vmatmul.bf16.gmra.mxu0 %v232
    %v309 = vpop.f32.mrf.mxu0
    %v310 = vadd.f32 %v250, %v309
    %v311 = vpop.f32.mrf.mxu0
    %312 = vdwg.mxu0
    %v313 = vmax.f32 %v310, 0.0
    %v315 = vperm.slane %v108, 0
    %v317 = vmul.f32 %v313, %v315
    %318 = vadd.xlane.f32.xlu0 %v317
    %v319 = vpop.xlane.xlu0 %318
    %v320 = vstv %s109
    %v321 = vadd.f32 %v319, %v320
    %v322 = vstv %s123
    %v323 = vmul.f32 %v322, %v321
    %v324 = vrcp.pop 3.0
    %v325 = vmul.f32 3.0, %v324
    %v326 = vsub.f32 1.0, %v325
    %v327 = vmul.f32 %v324, %v326
    %v328 = vadd.f32 %v324, %v327
    %vm329 = vweird.f32 %v324
    %v330 = vsel %vm329, %v324, %v328
    %v331 = vmul.f32 %v323, %v330
    %v332 = vadd.f32 %v110, %v331
    %334 = vset.pattern.permute.xlu0 0
    %335 = vperm.xlu0 %334, %v332
    %v336 = vpop.permute.xlu0 %335
    %v338 = vmul.f32 %v336, %v131
    %340 = vset.pattern.permute.xlu0 0
    %341 = vperm.xlu0 %340, %v126
    %v342 = vpop.permute.xlu0 %341
    %v344 = vmul.f32 %v342, %v138
    %v345 = vadd.f32 %v338, %v344
    %v346 = vstv %s120
    %v347 = vmul.f32 %v346, %v104
    %v348 = vperm.slane %v347, 0
    %v349 = vadd.f32 %v345, %v348
    %v350 = vadd.f32 %v349, %v146
    %v351 = vmax.f32 %v350, 0.0
    %v352 = vpack.c.bf16 %v351, %v351
    %353 = vmatpush.bf16.msra.mxu0 %v209
    %354 = vmatpush.bf16.msra.mxu0 %v208
    %355 = vmatpush.bf16.msra.mxu0 %v207
    %356 = vmatpush.bf16.msra.mxu0 %v206
    %357 = vmatpush.bf16.msra.mxu0 %v205
    %358 = vmatpush.bf16.msra.mxu0 %v204
    %359 = vmatpush.bf16.msra.mxu0 %v203
    %360 = vmatpush.bf16.msra.mxu0 %v202
    %361 = vmatmul.bf16.gmra.mxu0 %v352
    %v362 = vpop.f32.mrf.mxu0
    %v363 = vadd.f32 %v168, %v362
    %v364 = vpop.f32.mrf.mxu0
    %365 = vdwg.mxu0
    %v366 = vmax.f32 %v363, 0.0
    %v367 = vpack.c.bf16 %v366, %v366
    %368 = vmatpush.bf16.msra.mxu0 %v291
    %369 = vmatpush.bf16.msra.mxu0 %v290
    %370 = vmatpush.bf16.msra.mxu0 %v289
    %371 = vmatpush.bf16.msra.mxu0 %v288
    %372 = vmatpush.bf16.msra.mxu0 %v287
    %373 = vmatpush.bf16.msra.mxu0 %v286
    %374 = vmatpush.bf16.msra.mxu0 %v285
    %375 = vmatpush.bf16.msra.mxu0 %v284
    %376 = vmatmul.bf16.gmra.mxu0 %v367
    %v377 = vpop.f32.mrf.mxu0
    %v378 = vadd.f32 %v250, %v377
    %v379 = vpop.f32.mrf.mxu0
    %380 = vdwg.mxu0
    %v381 = vmax.f32 %v378, 0.0
    %v382 = vmul.f32 %v381, %v315
    %383 = vadd.xlane.f32.xlu0 %v382
    %v384 = vpop.xlane.xlu0 %383
    %v385 = vadd.f32 %v384, %v320
    %v386 = vmul.f32 %v321, %v330
    %v387 = vsub.f32 %v385, %v386
    %v388 = vmul.f32 %v322, %v387
    %v389 = vadd.f32 %v110, %v388
    %391 = vset.pattern.permute.xlu0 0
    %392 = vperm.xlu0 %391, %v389
    %v393 = vpop.permute.xlu0 %392
    %v395 = vmul.f32 %v393, %v131
    %397 = vset.pattern.permute.xlu0 0
    %398 = vperm.xlu0 %397, %v128
    %v399 = vpop.permute.xlu0 %398
    %v401 = vmul.f32 %v399, %v138
    %v402 = vadd.f32 %v395, %v401
    %v403 = vstv %s121
    %v404 = vmul.f32 %v403, %v104
    %v405 = vperm.slane %v404, 0
    %v406 = vadd.f32 %v402, %v405
    %v407 = vadd.f32 %v406, %v146
    %v408 = vmax.f32 %v407, 0.0
    %v409 = vpack.c.bf16 %v408, %v408
    %410 = vmatpush.bf16.msra.mxu0 %v209
    %411 = vmatpush.bf16.msra.mxu0 %v208
    %412 = vmatpush.bf16.msra.mxu0 %v207
    %413 = vmatpush.bf16.msra.mxu0 %v206
    %414 = vmatpush.bf16.msra.mxu0 %v205
    %415 = vmatpush.bf16.msra.mxu0 %v204
    %416 = vmatpush.bf16.msra.mxu0 %v203
    %417 = vmatpush.bf16.msra.mxu0 %v202
    %418 = vmatmul.bf16.gmra.mxu0 %v409
    %v419 = vpop.f32.mrf.mxu0
    %v420 = vadd.f32 %v168, %v419
    %v421 = vpop.f32.mrf.mxu0
    %422 = vdwg.mxu0
    %v423 = vmax.f32 %v420, 0.0
    %v424 = vpack.c.bf16 %v423, %v423
    %425 = vmatpush.bf16.msra.mxu0 %v291
    %426 = vmatpush.bf16.msra.mxu0 %v290
    %427 = vmatpush.bf16.msra.mxu0 %v289
    %428 = vmatpush.bf16.msra.mxu0 %v288
    %429 = vmatpush.bf16.msra.mxu0 %v287
    %430 = vmatpush.bf16.msra.mxu0 %v286
    %431 = vmatpush.bf16.msra.mxu0 %v285
    %432 = vmatpush.bf16.msra.mxu0 %v284
    %433 = vmatmul.bf16.gmra.mxu0 %v424
    %v434 = vpop.f32.mrf.mxu0
    %v435 = vadd.f32 %v250, %v434
    %v436 = vpop.f32.mrf.mxu0
    %437 = vdwg.mxu0
    %v438 = vmax.f32 %v435, 0.0
    %v439 = vmul.f32 %v438, %v315
    %440 = vadd.xlane.f32.xlu0 %v439
    %v441 = vpop.xlane.xlu0 %440
    %v442 = vadd.f32 %v441, %v320
    %v443 = vsub.f32 %v321, %v385
    %v444 = vadd.f32 %v443, %v442
    %v445 = vmul.f32 %v322, %v444
    %v446 = vadd.f32 %v110, %v445
    %448 = vset.pattern.permute.xlu0 0
    %449 = vperm.xlu0 %448, %v446
    %v450 = vpop.permute.xlu0 %449
    %v452 = vmul.f32 %v450, %v131
    %454 = vset.pattern.permute.xlu0 0
    %455 = vperm.xlu0 %454, %v130
    %v456 = vpop.permute.xlu0 %455
    %v458 = vmul.f32 %v456, %v138
    %v459 = vadd.f32 %v452, %v458
    %v460 = vstv %s122
    %v461 = vmul.f32 %v460, %v104
    %v462 = vperm.slane %v461, 0
    %v463 = vadd.f32 %v459, %v462
    %v464 = vadd.f32 %v463, %v146
    %v465 = vmax.f32 %v464, 0.0
    %v466 = vpack.c.bf16 %v465, %v465
    %467 = vmatpush.bf16.msra.mxu0 %v209
    %468 = vmatpush.bf16.msra.mxu0 %v208
    %469 = vmatpush.bf16.msra.mxu0 %v207
    %470 = vmatpush.bf16.msra.mxu0 %v206
    %471 = vmatpush.bf16.msra.mxu0 %v205
    %472 = vmatpush.bf16.msra.mxu0 %v204
    %473 = vmatpush.bf16.msra.mxu0 %v203
    %474 = vmatpush.bf16.msra.mxu0 %v202
    %475 = vmatmul.bf16.gmra.mxu0 %v466
    %v476 = vpop.f32.mrf.mxu0
    %v477 = vadd.f32 %v168, %v476
    %v478 = vpop.f32.mrf.mxu0
    %479 = vdwg.mxu0
    %v480 = vmax.f32 %v477, 0.0
    %v481 = vpack.c.bf16 %v480, %v480
    %482 = vmatpush.bf16.msra.mxu0 %v291
    %483 = vmatpush.bf16.msra.mxu0 %v290
    %484 = vmatpush.bf16.msra.mxu0 %v289
    %485 = vmatpush.bf16.msra.mxu0 %v288
    %486 = vmatpush.bf16.msra.mxu0 %v287
    %487 = vmatpush.bf16.msra.mxu0 %v286
    %488 = vmatpush.bf16.msra.mxu0 %v285
    %489 = vmatpush.bf16.msra.mxu0 %v284
    %490 = vmatmul.bf16.gmra.mxu0 %v481
    %v491 = vpop.f32.mrf.mxu0
    %v492 = vadd.f32 %v250, %v491
    %v493 = vpop.f32.mrf.mxu0
    %494 = vdwg.mxu0
    %v495 = vmax.f32 %v492, 0.0
    %v496 = vmul.f32 %v495, %v315
    %497 = vadd.xlane.f32.xlu0 %v496
    %v498 = vpop.xlane.xlu0 %497
    %v499 = vadd.f32 %v498, %v320
    %v500 = vadd.f32 %v385, %v442
    %v501 = vmul.f32 %v500, 3.0
    %v502 = vadd.f32 %v321, %v501
    %v503 = vadd.f32 %v502, %v499
    %v504 = vmul.f32 %v322, %v503
    %v505 = vmul.f32 %v504, 0.125
    %v506 = vadd.f32 %v110, %v505
    %508 = vrot.lane.b32.xlu0 %v506, 1
    %v509 = vpop.permute.xlu0 %508
    %vm511 = vcmask 15368
    %512 = vst.msk [vmem:[#allocation11] sm:$0xff] %vm511, %v509
    %s513 = sld [smem:[#allocation7 + $0x5]]
    %s514 = sld [smem:[#allocation7 + $0x6]]
    %s515 = sld [smem:[#allocation7 + $0x7]]
    %s516 = sld [smem:[#allocation7 + $0x8]]
    %s517 = sld [smem:[#allocation7 + $0x9]]
    %v518 = vld [vmem:[#allocation3] sm:$0xff]
    %v519 = vld [vmem:[%s125] sm:$0xff]
    %v520 = vld [vmem:[%s127] sm:$0xff]
    %v521 = vld [vmem:[%s129] sm:$0xff]
    %522 = vset.pattern.permute.xlu0 0
    %523 = vperm.xlu0 %522, %v506
    %v524 = vpop.permute.xlu0 %523
    %v526 = vmul.f32 %v524, %v131
    %528 = vset.pattern.permute.xlu0 1
    %529 = vperm.xlu0 %528, %v518
    %v530 = vpop.permute.xlu0 %529
    %v532 = vmul.f32 %v530, %v138
    %v533 = vadd.f32 %v526, %v532
    %v534 = vstv %s513
    %v535 = vmul.f32 %v534, %v104
    %v536 = vperm.slane %v535, 0
    %v537 = vadd.f32 %v533, %v536
    %v538 = vadd.f32 %v537, %v146
    %v539 = vmax.f32 %v538, 0.0
    %v540 = vpack.c.bf16 %v539, %v539
    %v541 = vld [vmem:[#allocation8] sm:$0xf]
    %v542 = vld [vmem:[#allocation8 + $0x4] sm:$0xf]
    %v543 = vld [vmem:[#allocation8 + $0x8] sm:$0xf]
    %v544 = vld [vmem:[#allocation8 + $0xc] sm:$0xf]
    %v545 = vld [vmem:[#allocation8 + $0x10] sm:$0xf]
    %v546 = vld [vmem:[#allocation8 + $0x14] sm:$0xf]
    %v547 = vld [vmem:[#allocation8 + $0x18] sm:$0xf]
    %v548 = vld [vmem:[#allocation8 + $0x1c] sm:$0xf]
    %v549 = vld [vmem:[#allocation8 + $0x20] sm:$0xf]
    %v550 = vld [vmem:[#allocation8 + $0x24] sm:$0xf]
    %v551 = vld [vmem:[#allocation8 + $0x28] sm:$0xf]
    %v552 = vld [vmem:[#allocation8 + $0x2c] sm:$0xf]
    %v553 = vld [vmem:[#allocation8 + $0x30] sm:$0xf]
    %v554 = vld [vmem:[#allocation8 + $0x34] sm:$0xf]
    %v555 = vld [vmem:[#allocation8 + $0x38] sm:$0xf]
    %v556 = vld [vmem:[#allocation8 + $0x3c] sm:$0xf]
    %v573 = vunpack.c.l.b16 %v541
    %v574 = vunpack.c.l.b16 %v542
    %v575 = vunpack.c.l.b16 %v543
    %v576 = vunpack.c.l.b16 %v544
    %v577 = vunpack.c.l.b16 %v545
    %v578 = vunpack.c.l.b16 %v546
    %v579 = vunpack.c.l.b16 %v547
    %v580 = vunpack.c.l.b16 %v548
    %v581 = vunpack.c.l.b16 %v549
    %v582 = vunpack.c.l.b16 %v550
    %v583 = vunpack.c.l.b16 %v551
    %v584 = vunpack.c.l.b16 %v552
    %v585 = vunpack.c.l.b16 %v553
    %v586 = vunpack.c.l.b16 %v554
    %v587 = vunpack.c.l.b16 %v555
    %v588 = vunpack.c.l.b16 %v556
    %v589 = vpack.c.b16 %v574, %v573
    %v590 = vpack.c.b16 %v576, %v575
    %v591 = vpack.c.b16 %v578, %v577
    %v592 = vpack.c.b16 %v580, %v579
    %v593 = vpack.c.b16 %v582, %v581
    %v594 = vpack.c.b16 %v584, %v583
    %v595 = vpack.c.b16 %v586, %v585
    %v596 = vpack.c.b16 %v588, %v587
    %605 = vmatpush.bf16.msra.mxu0 %v596
    %606 = vmatpush.bf16.msra.mxu0 %v595
    %607 = vmatpush.bf16.msra.mxu0 %v594
    %608 = vmatpush.bf16.msra.mxu0 %v593
    %609 = vmatpush.bf16.msra.mxu0 %v592
    %610 = vmatpush.bf16.msra.mxu0 %v591
    %611 = vmatpush.bf16.msra.mxu0 %v590
    %612 = vmatpush.bf16.msra.mxu0 %v589
    %613 = vmatmul.bf16.gmra.mxu0 %v540
    %v614 = vpop.f32.mrf.mxu0
    %v615 = vadd.f32 %v168, %v614
    %v616 = vpop.f32.mrf.mxu0
    %617 = vdwg.mxu0
    %v618 = vmax.f32 %v615, 0.0
    %v619 = vpack.c.bf16 %v618, %v618
    %v620 = vld [vmem:[#allocation10] sm:$0xf]
    %v621 = vld [vmem:[#allocation10 + $0x4] sm:$0xf]
    %v622 = vld [vmem:[#allocation10 + $0x8] sm:$0xf]
    %v623 = vld [vmem:[#allocation10 + $0xc] sm:$0xf]
    %v624 = vld [vmem:[#allocation10 + $0x10] sm:$0xf]
    %v625 = vld [vmem:[#allocation10 + $0x14] sm:$0xf]
    %v626 = vld [vmem:[#allocation10 + $0x18] sm:$0xf]
    %v627 = vld [vmem:[#allocation10 + $0x1c] sm:$0xf]
    %v628 = vld [vmem:[#allocation10 + $0x20] sm:$0xf]
    %v629 = vld [vmem:[#allocation10 + $0x24] sm:$0xf]
    %v630 = vld [vmem:[#allocation10 + $0x28] sm:$0xf]
    %v631 = vld [vmem:[#allocation10 + $0x2c] sm:$0xf]
    %v632 = vld [vmem:[#allocation10 + $0x30] sm:$0xf]
    %v633 = vld [vmem:[#allocation10 + $0x34] sm:$0xf]
    %v634 = vld [vmem:[#allocation10 + $0x38] sm:$0xf]
    %v635 = vld [vmem:[#allocation10 + $0x3c] sm:$0xf]
    %v652 = vunpack.c.l.b16 %v620
    %v653 = vunpack.c.l.b16 %v621
    %v654 = vunpack.c.l.b16 %v622
    %v655 = vunpack.c.l.b16 %v623
    %v656 = vunpack.c.l.b16 %v624
    %v657 = vunpack.c.l.b16 %v625
    %v658 = vunpack.c.l.b16 %v626
    %v659 = vunpack.c.l.b16 %v627
    %v660 = vunpack.c.l.b16 %v628
    %v661 = vunpack.c.l.b16 %v629
    %v662 = vunpack.c.l.b16 %v630
    %v663 = vunpack.c.l.b16 %v631
    %v664 = vunpack.c.l.b16 %v632
    %v665 = vunpack.c.l.b16 %v633
    %v666 = vunpack.c.l.b16 %v634
    %v667 = vunpack.c.l.b16 %v635
    %v668 = vpack.c.b16 %v653, %v652
    %v669 = vpack.c.b16 %v655, %v654
    %v670 = vpack.c.b16 %v657, %v656
    %v671 = vpack.c.b16 %v659, %v658
    %v672 = vpack.c.b16 %v661, %v660
    %v673 = vpack.c.b16 %v663, %v662
    %v674 = vpack.c.b16 %v665, %v664
    %v675 = vpack.c.b16 %v667, %v666
    %684 = vmatpush.bf16.msra.mxu0 %v675
    %685 = vmatpush.bf16.msra.mxu0 %v674
    %686 = vmatpush.bf16.msra.mxu0 %v673
    %687 = vmatpush.bf16.msra.mxu0 %v672
    %688 = vmatpush.bf16.msra.mxu0 %v671
    %689 = vmatpush.bf16.msra.mxu0 %v670
    %690 = vmatpush.bf16.msra.mxu0 %v669
    %691 = vmatpush.bf16.msra.mxu0 %v668
    %692 = vmatmul.bf16.gmra.mxu0 %v619
    %v693 = vpop.f32.mrf.mxu0
    %v694 = vadd.f32 %v250, %v693
    %v695 = vpop.f32.mrf.mxu0
    %696 = vdwg.mxu0
    %v697 = vmax.f32 %v694, 0.0
    %v698 = vmul.f32 %v697, %v315
    %699 = vadd.xlane.f32.xlu0 %v698
    %v700 = vpop.xlane.xlu0 %699
    %v701 = vadd.f32 %v700, %v320
    %v702 = vstv %s517
    %v703 = vmul.f32 %v702, %v701
    %v704 = vmul.f32 %v703, %v330
    %v705 = vadd.f32 %v506, %v704
    %707 = vset.pattern.permute.xlu0 0
    %708 = vperm.xlu0 %707, %v705
    %v709 = vpop.permute.xlu0 %708
    %v711 = vmul.f32 %v709, %v131
    %713 = vset.pattern.permute.xlu0 1
    %714 = vperm.xlu0 %713, %v519
    %v715 = vpop.permute.xlu0 %714
    %v717 = vmul.f32 %v715, %v138
    %v718 = vadd.f32 %v711, %v717
    %v719 = vstv %s514
    %v720 = vmul.f32 %v719, %v104
    %v721 = vperm.slane %v720, 0
    %v722 = vadd.f32 %v718, %v721
    %v723 = vadd.f32 %v722, %v146
    %v724 = vmax.f32 %v723, 0.0
    %v725 = vpack.c.bf16 %v724, %v724
    %726 = vmatpush.bf16.msra.mxu0 %v596
    %727 = vmatpush.bf16.msra.mxu0 %v595
    %728 = vmatpush.bf16.msra.mxu0 %v594
    %729 = vmatpush.bf16.msra.mxu0 %v593
    %730 = vmatpush.bf16.msra.mxu0 %v592
    %731 = vmatpush.bf16.msra.mxu0 %v591
    %732 = vmatpush.bf16.msra.mxu0 %v590
    %733 = vmatpush.bf16.msra.mxu0 %v589
    %734 = vmatmul.bf16.gmra.mxu0 %v725
    %v735 = vpop.f32.mrf.mxu0
    %v736 = vadd.f32 %v168, %v735
    %v737 = vpop.f32.mrf.mxu0
    %738 = vdwg.mxu0
    %v739 = vmax.f32 %v736, 0.0
    %v740 = vpack.c.bf16 %v739, %v739
    %741 = vmatpush.bf16.msra.mxu0 %v675
    %742 = vmatpush.bf16.msra.mxu0 %v674
    %743 = vmatpush.bf16.msra.mxu0 %v673
    %744 = vmatpush.bf16.msra.mxu0 %v672
    %745 = vmatpush.bf16.msra.mxu0 %v671
    %746 = vmatpush.bf16.msra.mxu0 %v670
    %747 = vmatpush.bf16.msra.mxu0 %v669
    %748 = vmatpush.bf16.msra.mxu0 %v668
    %749 = vmatmul.bf16.gmra.mxu0 %v740
    %v750 = vpop.f32.mrf.mxu0
    %v751 = vadd.f32 %v250, %v750
    %v752 = vpop.f32.mrf.mxu0
    %753 = vdwg.mxu0
    %v754 = vmax.f32 %v751, 0.0
    %v755 = vmul.f32 %v754, %v315
    %756 = vadd.xlane.f32.xlu0 %v755
    %v757 = vpop.xlane.xlu0 %756
    %v758 = vadd.f32 %v757, %v320
    %v759 = vmul.f32 %v701, %v330
    %v760 = vsub.f32 %v758, %v759
    %v761 = vmul.f32 %v702, %v760
    %v762 = vadd.f32 %v506, %v761
    %764 = vset.pattern.permute.xlu0 0
    %765 = vperm.xlu0 %764, %v762
    %v766 = vpop.permute.xlu0 %765
    %v768 = vmul.f32 %v766, %v131
    %770 = vset.pattern.permute.xlu0 1
    %771 = vperm.xlu0 %770, %v520
    %v772 = vpop.permute.xlu0 %771
    %v774 = vmul.f32 %v772, %v138
    %v775 = vadd.f32 %v768, %v774
    %v776 = vstv %s515
    %v777 = vmul.f32 %v776, %v104
    %v778 = vperm.slane %v777, 0
    %v779 = vadd.f32 %v775, %v778
    %v780 = vadd.f32 %v779, %v146
    %v781 = vmax.f32 %v780, 0.0
    %v782 = vpack.c.bf16 %v781, %v781
    %783 = vmatpush.bf16.msra.mxu0 %v596
    %784 = vmatpush.bf16.msra.mxu0 %v595
    %785 = vmatpush.bf16.msra.mxu0 %v594
    %786 = vmatpush.bf16.msra.mxu0 %v593
    %787 = vmatpush.bf16.msra.mxu0 %v592
    %788 = vmatpush.bf16.msra.mxu0 %v591
    %789 = vmatpush.bf16.msra.mxu0 %v590
    %790 = vmatpush.bf16.msra.mxu0 %v589
    %791 = vmatmul.bf16.gmra.mxu0 %v782
    %v792 = vpop.f32.mrf.mxu0
    %v793 = vadd.f32 %v168, %v792
    %v794 = vpop.f32.mrf.mxu0
    %795 = vdwg.mxu0
    %v796 = vmax.f32 %v793, 0.0
    %v797 = vpack.c.bf16 %v796, %v796
    %798 = vmatpush.bf16.msra.mxu0 %v675
    %799 = vmatpush.bf16.msra.mxu0 %v674
    %800 = vmatpush.bf16.msra.mxu0 %v673
    %801 = vmatpush.bf16.msra.mxu0 %v672
    %802 = vmatpush.bf16.msra.mxu0 %v671
    %803 = vmatpush.bf16.msra.mxu0 %v670
    %804 = vmatpush.bf16.msra.mxu0 %v669
    %805 = vmatpush.bf16.msra.mxu0 %v668
    %806 = vmatmul.bf16.gmra.mxu0 %v797
    %v807 = vpop.f32.mrf.mxu0
    %v808 = vadd.f32 %v250, %v807
    %v809 = vpop.f32.mrf.mxu0
    %810 = vdwg.mxu0
    %v811 = vmax.f32 %v808, 0.0
    %v812 = vmul.f32 %v811, %v315
    %813 = vadd.xlane.f32.xlu0 %v812
    %v814 = vpop.xlane.xlu0 %813
    %v815 = vadd.f32 %v814, %v320
    %v816 = vsub.f32 %v701, %v758
    %v817 = vadd.f32 %v816, %v815
    %v818 = vmul.f32 %v702, %v817
    %v819 = vadd.f32 %v506, %v818
    %821 = vset.pattern.permute.xlu0 0
    %822 = vperm.xlu0 %821, %v819
    %v823 = vpop.permute.xlu0 %822
    %v825 = vmul.f32 %v823, %v131
    %827 = vset.pattern.permute.xlu0 1
    %828 = vperm.xlu0 %827, %v521
    %v829 = vpop.permute.xlu0 %828
    %v831 = vmul.f32 %v829, %v138
    %v832 = vadd.f32 %v825, %v831
    %v833 = vstv %s516
    %v834 = vmul.f32 %v833, %v104
    %v835 = vperm.slane %v834, 0
    %v836 = vadd.f32 %v832, %v835
    %v837 = vadd.f32 %v836, %v146
    %v838 = vmax.f32 %v837, 0.0
    %v839 = vpack.c.bf16 %v838, %v838
    %840 = vmatpush.bf16.msra.mxu0 %v596
    %841 = vmatpush.bf16.msra.mxu0 %v595
    %842 = vmatpush.bf16.msra.mxu0 %v594
    %843 = vmatpush.bf16.msra.mxu0 %v593
    %844 = vmatpush.bf16.msra.mxu0 %v592
    %845 = vmatpush.bf16.msra.mxu0 %v591
    %846 = vmatpush.bf16.msra.mxu0 %v590
    %847 = vmatpush.bf16.msra.mxu0 %v589
    %848 = vmatmul.bf16.gmra.mxu0 %v839
    %v849 = vpop.f32.mrf.mxu0
    %v850 = vadd.f32 %v168, %v849
    %v851 = vpop.f32.mrf.mxu0
    %852 = vdwg.mxu0
    %v853 = vmax.f32 %v850, 0.0
    %v854 = vpack.c.bf16 %v853, %v853
    %855 = vmatpush.bf16.msra.mxu0 %v675
    %856 = vmatpush.bf16.msra.mxu0 %v674
    %857 = vmatpush.bf16.msra.mxu0 %v673
    %858 = vmatpush.bf16.msra.mxu0 %v672
    %859 = vmatpush.bf16.msra.mxu0 %v671
    %860 = vmatpush.bf16.msra.mxu0 %v670
    %861 = vmatpush.bf16.msra.mxu0 %v669
    %862 = vmatpush.bf16.msra.mxu0 %v668
    %863 = vmatmul.bf16.gmra.mxu0 %v854
    %v864 = vpop.f32.mrf.mxu0
    %v865 = vadd.f32 %v250, %v864
    %v866 = vpop.f32.mrf.mxu0
    %867 = vdwg.mxu0
    %v868 = vmax.f32 %v865, 0.0
    %v869 = vmul.f32 %v868, %v315
    %870 = vadd.xlane.f32.xlu0 %v869
    %v871 = vpop.xlane.xlu0 %870
    %v872 = vadd.f32 %v871, %v320
    %v873 = vadd.f32 %v758, %v815
    %v874 = vmul.f32 %v873, 3.0
    %v875 = vadd.f32 %v701, %v874
    %v876 = vadd.f32 %v875, %v872
    %v877 = vmul.f32 %v702, %v876
    %v878 = vmul.f32 %v877, 0.125
    %v879 = vadd.f32 %v506, %v878
    %881 = vrot.lane.b32.xlu0 %v879, 2
    %v882 = vpop.permute.xlu0 %881
    %vm884 = vcmask 23568
    %885 = vst.msk [vmem:[#allocation11] sm:$0xff] %vm884, %v882
    %s886 = sld [smem:[#allocation7 + $0xa]]
    %s887 = sld [smem:[#allocation7 + $0xb]]
    %s888 = sld [smem:[#allocation7 + $0xc]]
    %s889 = sld [smem:[#allocation7 + $0xd]]
    %s890 = sld [smem:[#allocation7 + $0xe]]
    %v891 = vld [vmem:[#allocation3] sm:$0xff]
    %v892 = vld [vmem:[%s125] sm:$0xff]
    %v893 = vld [vmem:[%s127] sm:$0xff]
    %v894 = vld [vmem:[%s129] sm:$0xff]
    %895 = vset.pattern.permute.xlu0 0
    %896 = vperm.xlu0 %895, %v879
    %v897 = vpop.permute.xlu0 %896
    %v899 = vmul.f32 %v897, %v131
    %901 = vset.pattern.permute.xlu0 2
    %902 = vperm.xlu0 %901, %v891
    %v903 = vpop.permute.xlu0 %902
    %v905 = vmul.f32 %v903, %v138
    %v906 = vadd.f32 %v899, %v905
    %v907 = vstv %s886
    %v908 = vmul.f32 %v907, %v104
    %v909 = vperm.slane %v908, 0
    %v910 = vadd.f32 %v906, %v909
    %v911 = vadd.f32 %v910, %v146
    %v912 = vmax.f32 %v911, 0.0
    %v913 = vpack.c.bf16 %v912, %v912
    %v914 = vld [vmem:[#allocation8] sm:$0xf]
    %v915 = vld [vmem:[#allocation8 + $0x4] sm:$0xf]
    %v916 = vld [vmem:[#allocation8 + $0x8] sm:$0xf]
    %v917 = vld [vmem:[#allocation8 + $0xc] sm:$0xf]
    %v918 = vld [vmem:[#allocation8 + $0x10] sm:$0xf]
    %v919 = vld [vmem:[#allocation8 + $0x14] sm:$0xf]
    %v920 = vld [vmem:[#allocation8 + $0x18] sm:$0xf]
    %v921 = vld [vmem:[#allocation8 + $0x1c] sm:$0xf]
    %v922 = vld [vmem:[#allocation8 + $0x20] sm:$0xf]
    %v923 = vld [vmem:[#allocation8 + $0x24] sm:$0xf]
    %v924 = vld [vmem:[#allocation8 + $0x28] sm:$0xf]
    %v925 = vld [vmem:[#allocation8 + $0x2c] sm:$0xf]
    %v926 = vld [vmem:[#allocation8 + $0x30] sm:$0xf]
    %v927 = vld [vmem:[#allocation8 + $0x34] sm:$0xf]
    %v928 = vld [vmem:[#allocation8 + $0x38] sm:$0xf]
    %v929 = vld [vmem:[#allocation8 + $0x3c] sm:$0xf]
    %v946 = vunpack.c.l.b16 %v914
    %v947 = vunpack.c.l.b16 %v915
    %v948 = vunpack.c.l.b16 %v916
    %v949 = vunpack.c.l.b16 %v917
    %v950 = vunpack.c.l.b16 %v918
    %v951 = vunpack.c.l.b16 %v919
    %v952 = vunpack.c.l.b16 %v920
    %v953 = vunpack.c.l.b16 %v921
    %v954 = vunpack.c.l.b16 %v922
    %v955 = vunpack.c.l.b16 %v923
    %v956 = vunpack.c.l.b16 %v924
    %v957 = vunpack.c.l.b16 %v925
    %v958 = vunpack.c.l.b16 %v926
    %v959 = vunpack.c.l.b16 %v927
    %v960 = vunpack.c.l.b16 %v928
    %v961 = vunpack.c.l.b16 %v929
    %v962 = vpack.c.b16 %v947, %v946
    %v963 = vpack.c.b16 %v949, %v948
    %v964 = vpack.c.b16 %v951, %v950
    %v965 = vpack.c.b16 %v953, %v952
    %v966 = vpack.c.b16 %v955, %v954
    %v967 = vpack.c.b16 %v957, %v956
    %v968 = vpack.c.b16 %v959, %v958
    %v969 = vpack.c.b16 %v961, %v960
    %978 = vmatpush.bf16.msra.mxu0 %v969
    %979 = vmatpush.bf16.msra.mxu0 %v968
    %980 = vmatpush.bf16.msra.mxu0 %v967
    %981 = vmatpush.bf16.msra.mxu0 %v966
    %982 = vmatpush.bf16.msra.mxu0 %v965
    %983 = vmatpush.bf16.msra.mxu0 %v964
    %984 = vmatpush.bf16.msra.mxu0 %v963
    %985 = vmatpush.bf16.msra.mxu0 %v962
    %986 = vmatmul.bf16.gmra.mxu0 %v913
    %v987 = vpop.f32.mrf.mxu0
    %v988 = vadd.f32 %v168, %v987
    %v989 = vpop.f32.mrf.mxu0
    %990 = vdwg.mxu0
    %v991 = vmax.f32 %v988, 0.0
    %v992 = vpack.c.bf16 %v991, %v991
    %v993 = vld [vmem:[#allocation10] sm:$0xf]
    %v994 = vld [vmem:[#allocation10 + $0x4] sm:$0xf]
    %v995 = vld [vmem:[#allocation10 + $0x8] sm:$0xf]
    %v996 = vld [vmem:[#allocation10 + $0xc] sm:$0xf]
    %v997 = vld [vmem:[#allocation10 + $0x10] sm:$0xf]
    %v998 = vld [vmem:[#allocation10 + $0x14] sm:$0xf]
    %v999 = vld [vmem:[#allocation10 + $0x18] sm:$0xf]
    %v1000 = vld [vmem:[#allocation10 + $0x1c] sm:$0xf]
    %v1001 = vld [vmem:[#allocation10 + $0x20] sm:$0xf]
    %v1002 = vld [vmem:[#allocation10 + $0x24] sm:$0xf]
    %v1003 = vld [vmem:[#allocation10 + $0x28] sm:$0xf]
    %v1004 = vld [vmem:[#allocation10 + $0x2c] sm:$0xf]
    %v1005 = vld [vmem:[#allocation10 + $0x30] sm:$0xf]
    %v1006 = vld [vmem:[#allocation10 + $0x34] sm:$0xf]
    %v1007 = vld [vmem:[#allocation10 + $0x38] sm:$0xf]
    %v1008 = vld [vmem:[#allocation10 + $0x3c] sm:$0xf]
    %v1025 = vunpack.c.l.b16 %v993
    %v1026 = vunpack.c.l.b16 %v994
    %v1027 = vunpack.c.l.b16 %v995
    %v1028 = vunpack.c.l.b16 %v996
    %v1029 = vunpack.c.l.b16 %v997
    %v1030 = vunpack.c.l.b16 %v998
    %v1031 = vunpack.c.l.b16 %v999
    %v1032 = vunpack.c.l.b16 %v1000
    %v1033 = vunpack.c.l.b16 %v1001
    %v1034 = vunpack.c.l.b16 %v1002
    %v1035 = vunpack.c.l.b16 %v1003
    %v1036 = vunpack.c.l.b16 %v1004
    %v1037 = vunpack.c.l.b16 %v1005
    %v1038 = vunpack.c.l.b16 %v1006
    %v1039 = vunpack.c.l.b16 %v1007
    %v1040 = vunpack.c.l.b16 %v1008
    %v1041 = vpack.c.b16 %v1026, %v1025
    %v1042 = vpack.c.b16 %v1028, %v1027
    %v1043 = vpack.c.b16 %v1030, %v1029
    %v1044 = vpack.c.b16 %v1032, %v1031
    %v1045 = vpack.c.b16 %v1034, %v1033
    %v1046 = vpack.c.b16 %v1036, %v1035
    %v1047 = vpack.c.b16 %v1038, %v1037
    %v1048 = vpack.c.b16 %v1040, %v1039
    %1057 = vmatpush.bf16.msra.mxu0 %v1048
    %1058 = vmatpush.bf16.msra.mxu0 %v1047
    %1059 = vmatpush.bf16.msra.mxu0 %v1046
    %1060 = vmatpush.bf16.msra.mxu0 %v1045
    %1061 = vmatpush.bf16.msra.mxu0 %v1044
    %1062 = vmatpush.bf16.msra.mxu0 %v1043
    %1063 = vmatpush.bf16.msra.mxu0 %v1042
    %1064 = vmatpush.bf16.msra.mxu0 %v1041
    %1065 = vmatmul.bf16.gmra.mxu0 %v992
    %v1066 = vpop.f32.mrf.mxu0
    %v1067 = vadd.f32 %v250, %v1066
    %v1068 = vpop.f32.mrf.mxu0
    %1069 = vdwg.mxu0
    %v1070 = vmax.f32 %v1067, 0.0
    %v1071 = vmul.f32 %v1070, %v315
    %1072 = vadd.xlane.f32.xlu0 %v1071
    %v1073 = vpop.xlane.xlu0 %1072
    %v1074 = vadd.f32 %v1073, %v320
    %v1075 = vstv %s890
    %v1076 = vmul.f32 %v1075, %v1074
    %v1077 = vmul.f32 %v1076, %v330
    %v1078 = vadd.f32 %v879, %v1077
    %1080 = vset.pattern.permute.xlu0 0
    %1081 = vperm.xlu0 %1080, %v1078
    %v1082 = vpop.permute.xlu0 %1081
    %v1084 = vmul.f32 %v1082, %v131
    %1086 = vset.pattern.permute.xlu0 2
    %1087 = vperm.xlu0 %1086, %v892
    %v1088 = vpop.permute.xlu0 %1087
    %v1090 = vmul.f32 %v1088, %v138
    %v1091 = vadd.f32 %v1084, %v1090
    %v1092 = vstv %s887
    %v1093 = vmul.f32 %v1092, %v104
    %v1094 = vperm.slane %v1093, 0
    %v1095 = vadd.f32 %v1091, %v1094
    %v1096 = vadd.f32 %v1095, %v146
    %v1097 = vmax.f32 %v1096, 0.0
    %v1098 = vpack.c.bf16 %v1097, %v1097
    %1099 = vmatpush.bf16.msra.mxu0 %v969
    %1100 = vmatpush.bf16.msra.mxu0 %v968
    %1101 = vmatpush.bf16.msra.mxu0 %v967
    %1102 = vmatpush.bf16.msra.mxu0 %v966
    %1103 = vmatpush.bf16.msra.mxu0 %v965
    %1104 = vmatpush.bf16.msra.mxu0 %v964
    %1105 = vmatpush.bf16.msra.mxu0 %v963
    %1106 = vmatpush.bf16.msra.mxu0 %v962
    %1107 = vmatmul.bf16.gmra.mxu0 %v1098
    %v1108 = vpop.f32.mrf.mxu0
    %v1109 = vadd.f32 %v168, %v1108
    %v1110 = vpop.f32.mrf.mxu0
    %1111 = vdwg.mxu0
    %v1112 = vmax.f32 %v1109, 0.0
    %v1113 = vpack.c.bf16 %v1112, %v1112
    %1114 = vmatpush.bf16.msra.mxu0 %v1048
    %1115 = vmatpush.bf16.msra.mxu0 %v1047
    %1116 = vmatpush.bf16.msra.mxu0 %v1046
    %1117 = vmatpush.bf16.msra.mxu0 %v1045
    %1118 = vmatpush.bf16.msra.mxu0 %v1044
    %1119 = vmatpush.bf16.msra.mxu0 %v1043
    %1120 = vmatpush.bf16.msra.mxu0 %v1042
    %1121 = vmatpush.bf16.msra.mxu0 %v1041
    %1122 = vmatmul.bf16.gmra.mxu0 %v1113
    %v1123 = vpop.f32.mrf.mxu0
    %v1124 = vadd.f32 %v250, %v1123
    %v1125 = vpop.f32.mrf.mxu0
    %1126 = vdwg.mxu0
    %v1127 = vmax.f32 %v1124, 0.0
    %v1128 = vmul.f32 %v1127, %v315
    %1129 = vadd.xlane.f32.xlu0 %v1128
    %v1130 = vpop.xlane.xlu0 %1129
    %v1131 = vadd.f32 %v1130, %v320
    %v1132 = vmul.f32 %v1074, %v330
    %v1133 = vsub.f32 %v1131, %v1132
    %v1134 = vmul.f32 %v1075, %v1133
    %v1135 = vadd.f32 %v879, %v1134
    %1137 = vset.pattern.permute.xlu0 0
    %1138 = vperm.xlu0 %1137, %v1135
    %v1139 = vpop.permute.xlu0 %1138
    %v1141 = vmul.f32 %v1139, %v131
    %1143 = vset.pattern.permute.xlu0 2
    %1144 = vperm.xlu0 %1143, %v893
    %v1145 = vpop.permute.xlu0 %1144
    %v1147 = vmul.f32 %v1145, %v138
    %v1148 = vadd.f32 %v1141, %v1147
    %v1149 = vstv %s888
    %v1150 = vmul.f32 %v1149, %v104
    %v1151 = vperm.slane %v1150, 0
    %v1152 = vadd.f32 %v1148, %v1151
    %v1153 = vadd.f32 %v1152, %v146
    %v1154 = vmax.f32 %v1153, 0.0
    %v1155 = vpack.c.bf16 %v1154, %v1154
    %1156 = vmatpush.bf16.msra.mxu0 %v969
    %1157 = vmatpush.bf16.msra.mxu0 %v968
    %1158 = vmatpush.bf16.msra.mxu0 %v967
    %1159 = vmatpush.bf16.msra.mxu0 %v966
    %1160 = vmatpush.bf16.msra.mxu0 %v965
    %1161 = vmatpush.bf16.msra.mxu0 %v964
    %1162 = vmatpush.bf16.msra.mxu0 %v963
    %1163 = vmatpush.bf16.msra.mxu0 %v962
    %1164 = vmatmul.bf16.gmra.mxu0 %v1155
    %v1165 = vpop.f32.mrf.mxu0
    %v1166 = vadd.f32 %v168, %v1165
    %v1167 = vpop.f32.mrf.mxu0
    %1168 = vdwg.mxu0
    %v1169 = vmax.f32 %v1166, 0.0
    %v1170 = vpack.c.bf16 %v1169, %v1169
    %1171 = vmatpush.bf16.msra.mxu0 %v1048
    %1172 = vmatpush.bf16.msra.mxu0 %v1047
    %1173 = vmatpush.bf16.msra.mxu0 %v1046
    %1174 = vmatpush.bf16.msra.mxu0 %v1045
    %1175 = vmatpush.bf16.msra.mxu0 %v1044
    %1176 = vmatpush.bf16.msra.mxu0 %v1043
    %1177 = vmatpush.bf16.msra.mxu0 %v1042
    %1178 = vmatpush.bf16.msra.mxu0 %v1041
    %1179 = vmatmul.bf16.gmra.mxu0 %v1170
    %v1180 = vpop.f32.mrf.mxu0
    %v1181 = vadd.f32 %v250, %v1180
    %v1182 = vpop.f32.mrf.mxu0
    %1183 = vdwg.mxu0
    %v1184 = vmax.f32 %v1181, 0.0
    %v1185 = vmul.f32 %v1184, %v315
    %1186 = vadd.xlane.f32.xlu0 %v1185
    %v1187 = vpop.xlane.xlu0 %1186
    %v1188 = vadd.f32 %v1187, %v320
    %v1189 = vsub.f32 %v1074, %v1131
    %v1190 = vadd.f32 %v1189, %v1188
    %v1191 = vmul.f32 %v1075, %v1190
    %v1192 = vadd.f32 %v879, %v1191
    %1194 = vset.pattern.permute.xlu0 0
    %1195 = vperm.xlu0 %1194, %v1192
    %v1196 = vpop.permute.xlu0 %1195
    %v1198 = vmul.f32 %v1196, %v131
    %1200 = vset.pattern.permute.xlu0 2
    %1201 = vperm.xlu0 %1200, %v894
    %v1202 = vpop.permute.xlu0 %1201
    %v1204 = vmul.f32 %v1202, %v138
    %v1205 = vadd.f32 %v1198, %v1204
    %v1206 = vstv %s889
    %v1207 = vmul.f32 %v1206, %v104
    %v1208 = vperm.slane %v1207, 0
    %v1209 = vadd.f32 %v1205, %v1208
    %v1210 = vadd.f32 %v1209, %v146
    %v1211 = vmax.f32 %v1210, 0.0
    %v1212 = vpack.c.bf16 %v1211, %v1211
    %1213 = vmatpush.bf16.msra.mxu0 %v969
    %1214 = vmatpush.bf16.msra.mxu0 %v968
    %1215 = vmatpush.bf16.msra.mxu0 %v967
    %1216 = vmatpush.bf16.msra.mxu0 %v966
    %1217 = vmatpush.bf16.msra.mxu0 %v965
    %1218 = vmatpush.bf16.msra.mxu0 %v964
    %1219 = vmatpush.bf16.msra.mxu0 %v963
    %1220 = vmatpush.bf16.msra.mxu0 %v962
    %1221 = vmatmul.bf16.gmra.mxu0 %v1212
    %v1222 = vpop.f32.mrf.mxu0
    %v1223 = vadd.f32 %v168, %v1222
    %v1224 = vpop.f32.mrf.mxu0
    %1225 = vdwg.mxu0
    %v1226 = vmax.f32 %v1223, 0.0
    %v1227 = vpack.c.bf16 %v1226, %v1226
    %1228 = vmatpush.bf16.msra.mxu0 %v1048
    %1229 = vmatpush.bf16.msra.mxu0 %v1047
    %1230 = vmatpush.bf16.msra.mxu0 %v1046
    %1231 = vmatpush.bf16.msra.mxu0 %v1045
    %1232 = vmatpush.bf16.msra.mxu0 %v1044
    %1233 = vmatpush.bf16.msra.mxu0 %v1043
    %1234 = vmatpush.bf16.msra.mxu0 %v1042
    %1235 = vmatpush.bf16.msra.mxu0 %v1041
    %1236 = vmatmul.bf16.gmra.mxu0 %v1227
    %v1237 = vpop.f32.mrf.mxu0
    %v1238 = vadd.f32 %v250, %v1237
    %v1239 = vpop.f32.mrf.mxu0
    %1240 = vdwg.mxu0
    %v1241 = vmax.f32 %v1238, 0.0
    %v1242 = vmul.f32 %v1241, %v315
    %1243 = vadd.xlane.f32.xlu0 %v1242
    %v1244 = vpop.xlane.xlu0 %1243
    %v1245 = vadd.f32 %v1244, %v320
    %v1246 = vadd.f32 %v1131, %v1188
    %v1247 = vmul.f32 %v1246, 3.0
    %v1248 = vadd.f32 %v1074, %v1247
    %v1249 = vadd.f32 %v1248, %v1245
    %v1250 = vmul.f32 %v1075, %v1249
    %v1251 = vmul.f32 %v1250, 0.125
    %v1252 = vadd.f32 %v879, %v1251
    %1254 = vrot.lane.b32.xlu0 %v1252, 3
    %v1255 = vpop.permute.xlu0 %1254
    %vm1257 = vcmask 31768
    %1258 = vst.msk [vmem:[#allocation11] sm:$0xff] %vm1257, %v1255
    %s1259 = sld [smem:[#allocation7 + $0xf]]
    %s1260 = sld [smem:[#allocation7 + $0x10]]
    %s1261 = sld [smem:[#allocation7 + $0x11]]
    %s1262 = sld [smem:[#allocation7 + $0x12]]
    %s1263 = sld [smem:[#allocation7 + $0x13]]
    %v1264 = vld [vmem:[#allocation3] sm:$0xff]
    %v1265 = vld [vmem:[%s125] sm:$0xff]
    %v1266 = vld [vmem:[%s127] sm:$0xff]
    %v1267 = vld [vmem:[%s129] sm:$0xff]
    %1268 = vset.pattern.permute.xlu0 0
    %1269 = vperm.xlu0 %1268, %v1252
    %v1270 = vpop.permute.xlu0 %1269
    %v1272 = vmul.f32 %v1270, %v131
    %1274 = vset.pattern.permute.xlu0 3
    %1275 = vperm.xlu0 %1274, %v1264
    %v1276 = vpop.permute.xlu0 %1275
    %v1278 = vmul.f32 %v1276, %v138
    %v1279 = vadd.f32 %v1272, %v1278
    %v1280 = vstv %s1259
    %v1281 = vmul.f32 %v1280, %v104
    %v1282 = vperm.slane %v1281, 0
    %v1283 = vadd.f32 %v1279, %v1282
    %v1284 = vadd.f32 %v1283, %v146
    %v1285 = vmax.f32 %v1284, 0.0
    %v1286 = vpack.c.bf16 %v1285, %v1285
    %v1287 = vld [vmem:[#allocation8] sm:$0xf]
    %v1288 = vld [vmem:[#allocation8 + $0x4] sm:$0xf]
    %v1289 = vld [vmem:[#allocation8 + $0x8] sm:$0xf]
    %v1290 = vld [vmem:[#allocation8 + $0xc] sm:$0xf]
    %v1291 = vld [vmem:[#allocation8 + $0x10] sm:$0xf]
    %v1292 = vld [vmem:[#allocation8 + $0x14] sm:$0xf]
    %v1293 = vld [vmem:[#allocation8 + $0x18] sm:$0xf]
    %v1294 = vld [vmem:[#allocation8 + $0x1c] sm:$0xf]
    %v1295 = vld [vmem:[#allocation8 + $0x20] sm:$0xf]
    %v1296 = vld [vmem:[#allocation8 + $0x24] sm:$0xf]
    %v1297 = vld [vmem:[#allocation8 + $0x28] sm:$0xf]
    %v1298 = vld [vmem:[#allocation8 + $0x2c] sm:$0xf]
    %v1299 = vld [vmem:[#allocation8 + $0x30] sm:$0xf]
    %v1300 = vld [vmem:[#allocation8 + $0x34] sm:$0xf]
    %v1301 = vld [vmem:[#allocation8 + $0x38] sm:$0xf]
    %v1302 = vld [vmem:[#allocation8 + $0x3c] sm:$0xf]
    %v1319 = vunpack.c.l.b16 %v1287
    %v1320 = vunpack.c.l.b16 %v1288
    %v1321 = vunpack.c.l.b16 %v1289
    %v1322 = vunpack.c.l.b16 %v1290
    %v1323 = vunpack.c.l.b16 %v1291
    %v1324 = vunpack.c.l.b16 %v1292
    %v1325 = vunpack.c.l.b16 %v1293
    %v1326 = vunpack.c.l.b16 %v1294
    %v1327 = vunpack.c.l.b16 %v1295
    %v1328 = vunpack.c.l.b16 %v1296
    %v1329 = vunpack.c.l.b16 %v1297
    %v1330 = vunpack.c.l.b16 %v1298
    %v1331 = vunpack.c.l.b16 %v1299
    %v1332 = vunpack.c.l.b16 %v1300
    %v1333 = vunpack.c.l.b16 %v1301
    %v1334 = vunpack.c.l.b16 %v1302
    %v1335 = vpack.c.b16 %v1320, %v1319
    %v1336 = vpack.c.b16 %v1322, %v1321
    %v1337 = vpack.c.b16 %v1324, %v1323
    %v1338 = vpack.c.b16 %v1326, %v1325
    %v1339 = vpack.c.b16 %v1328, %v1327
    %v1340 = vpack.c.b16 %v1330, %v1329
    %v1341 = vpack.c.b16 %v1332, %v1331
    %v1342 = vpack.c.b16 %v1334, %v1333
    %1351 = vmatpush.bf16.msra.mxu0 %v1342
    %1352 = vmatpush.bf16.msra.mxu0 %v1341
    %1353 = vmatpush.bf16.msra.mxu0 %v1340
    %1354 = vmatpush.bf16.msra.mxu0 %v1339
    %1355 = vmatpush.bf16.msra.mxu0 %v1338
    %1356 = vmatpush.bf16.msra.mxu0 %v1337
    %1357 = vmatpush.bf16.msra.mxu0 %v1336
    %1358 = vmatpush.bf16.msra.mxu0 %v1335
    %1359 = vmatmul.bf16.gmra.mxu0 %v1286
    %v1360 = vpop.f32.mrf.mxu0
    %v1361 = vadd.f32 %v168, %v1360
    %v1362 = vpop.f32.mrf.mxu0
    %1363 = vdwg.mxu0
    %v1364 = vmax.f32 %v1361, 0.0
    %v1365 = vpack.c.bf16 %v1364, %v1364
    %v1366 = vld [vmem:[#allocation10] sm:$0xf]
    %v1367 = vld [vmem:[#allocation10 + $0x4] sm:$0xf]
    %v1368 = vld [vmem:[#allocation10 + $0x8] sm:$0xf]
    %v1369 = vld [vmem:[#allocation10 + $0xc] sm:$0xf]
    %v1370 = vld [vmem:[#allocation10 + $0x10] sm:$0xf]
    %v1371 = vld [vmem:[#allocation10 + $0x14] sm:$0xf]
    %v1372 = vld [vmem:[#allocation10 + $0x18] sm:$0xf]
    %v1373 = vld [vmem:[#allocation10 + $0x1c] sm:$0xf]
    %v1374 = vld [vmem:[#allocation10 + $0x20] sm:$0xf]
    %v1375 = vld [vmem:[#allocation10 + $0x24] sm:$0xf]
    %v1376 = vld [vmem:[#allocation10 + $0x28] sm:$0xf]
    %v1377 = vld [vmem:[#allocation10 + $0x2c] sm:$0xf]
    %v1378 = vld [vmem:[#allocation10 + $0x30] sm:$0xf]
    %v1379 = vld [vmem:[#allocation10 + $0x34] sm:$0xf]
    %v1380 = vld [vmem:[#allocation10 + $0x38] sm:$0xf]
    %v1381 = vld [vmem:[#allocation10 + $0x3c] sm:$0xf]
    %v1398 = vunpack.c.l.b16 %v1366
    %v1399 = vunpack.c.l.b16 %v1367
    %v1400 = vunpack.c.l.b16 %v1368
    %v1401 = vunpack.c.l.b16 %v1369
    %v1402 = vunpack.c.l.b16 %v1370
    %v1403 = vunpack.c.l.b16 %v1371
    %v1404 = vunpack.c.l.b16 %v1372
    %v1405 = vunpack.c.l.b16 %v1373
    %v1406 = vunpack.c.l.b16 %v1374
    %v1407 = vunpack.c.l.b16 %v1375
    %v1408 = vunpack.c.l.b16 %v1376
    %v1409 = vunpack.c.l.b16 %v1377
    %v1410 = vunpack.c.l.b16 %v1378
    %v1411 = vunpack.c.l.b16 %v1379
    %v1412 = vunpack.c.l.b16 %v1380
    %v1413 = vunpack.c.l.b16 %v1381
    %v1414 = vpack.c.b16 %v1399, %v1398
    %v1415 = vpack.c.b16 %v1401, %v1400
    %v1416 = vpack.c.b16 %v1403, %v1402
    %v1417 = vpack.c.b16 %v1405, %v1404
    %v1418 = vpack.c.b16 %v1407, %v1406
    %v1419 = vpack.c.b16 %v1409, %v1408
    %v1420 = vpack.c.b16 %v1411, %v1410
    %v1421 = vpack.c.b16 %v1413, %v1412
    %1430 = vmatpush.bf16.msra.mxu0 %v1421
    %1431 = vmatpush.bf16.msra.mxu0 %v1420
    %1432 = vmatpush.bf16.msra.mxu0 %v1419
    %1433 = vmatpush.bf16.msra.mxu0 %v1418
    %1434 = vmatpush.bf16.msra.mxu0 %v1417
    %1435 = vmatpush.bf16.msra.mxu0 %v1416
    %1436 = vmatpush.bf16.msra.mxu0 %v1415
    %1437 = vmatpush.bf16.msra.mxu0 %v1414
    %1438 = vmatmul.bf16.gmra.mxu0 %v1365
    %v1439 = vpop.f32.mrf.mxu0
    %v1440 = vadd.f32 %v250, %v1439
    %v1441 = vpop.f32.mrf.mxu0
    %1442 = vdwg.mxu0
    %v1443 = vmax.f32 %v1440, 0.0
    %v1444 = vmul.f32 %v1443, %v315
    %1445 = vadd.xlane.f32.xlu0 %v1444
    %v1446 = vpop.xlane.xlu0 %1445
    %v1447 = vadd.f32 %v1446, %v320
    %v1448 = vstv %s1263
    %v1449 = vmul.f32 %v1448, %v1447
    %v1450 = vmul.f32 %v1449, %v330
    %v1451 = vadd.f32 %v1252, %v1450
    %1453 = vset.pattern.permute.xlu0 0
    %1454 = vperm.xlu0 %1453, %v1451
    %v1455 = vpop.permute.xlu0 %1454
    %v1457 = vmul.f32 %v1455, %v131
    %1459 = vset.pattern.permute.xlu0 3
    %1460 = vperm.xlu0 %1459, %v1265
    %v1461 = vpop.permute.xlu0 %1460
    %v1463 = vmul.f32 %v1461, %v138
    %v1464 = vadd.f32 %v1457, %v1463
    %v1465 = vstv %s1260
    %v1466 = vmul.f32 %v1465, %v104
    %v1467 = vperm.slane %v1466, 0
    %v1468 = vadd.f32 %v1464, %v1467
    %v1469 = vadd.f32 %v1468, %v146
    %v1470 = vmax.f32 %v1469, 0.0
    %v1471 = vpack.c.bf16 %v1470, %v1470
    %1472 = vmatpush.bf16.msra.mxu0 %v1342
    %1473 = vmatpush.bf16.msra.mxu0 %v1341
    %1474 = vmatpush.bf16.msra.mxu0 %v1340
    %1475 = vmatpush.bf16.msra.mxu0 %v1339
    %1476 = vmatpush.bf16.msra.mxu0 %v1338
    %1477 = vmatpush.bf16.msra.mxu0 %v1337
    %1478 = vmatpush.bf16.msra.mxu0 %v1336
    %1479 = vmatpush.bf16.msra.mxu0 %v1335
    %1480 = vmatmul.bf16.gmra.mxu0 %v1471
    %v1481 = vpop.f32.mrf.mxu0
    %v1482 = vadd.f32 %v168, %v1481
    %v1483 = vpop.f32.mrf.mxu0
    %1484 = vdwg.mxu0
    %v1485 = vmax.f32 %v1482, 0.0
    %v1486 = vpack.c.bf16 %v1485, %v1485
    %1487 = vmatpush.bf16.msra.mxu0 %v1421
    %1488 = vmatpush.bf16.msra.mxu0 %v1420
    %1489 = vmatpush.bf16.msra.mxu0 %v1419
    %1490 = vmatpush.bf16.msra.mxu0 %v1418
    %1491 = vmatpush.bf16.msra.mxu0 %v1417
    %1492 = vmatpush.bf16.msra.mxu0 %v1416
    %1493 = vmatpush.bf16.msra.mxu0 %v1415
    %1494 = vmatpush.bf16.msra.mxu0 %v1414
    %1495 = vmatmul.bf16.gmra.mxu0 %v1486
    %v1496 = vpop.f32.mrf.mxu0
    %v1497 = vadd.f32 %v250, %v1496
    %v1498 = vpop.f32.mrf.mxu0
    %1499 = vdwg.mxu0
    %v1500 = vmax.f32 %v1497, 0.0
    %v1501 = vmul.f32 %v1500, %v315
    %1502 = vadd.xlane.f32.xlu0 %v1501
    %v1503 = vpop.xlane.xlu0 %1502
    %v1504 = vadd.f32 %v1503, %v320
    %v1505 = vmul.f32 %v1447, %v330
    %v1506 = vsub.f32 %v1504, %v1505
    %v1507 = vmul.f32 %v1448, %v1506
    %v1508 = vadd.f32 %v1252, %v1507
    %1510 = vset.pattern.permute.xlu0 0
    %1511 = vperm.xlu0 %1510, %v1508
    %v1512 = vpop.permute.xlu0 %1511
    %v1514 = vmul.f32 %v1512, %v131
    %1516 = vset.pattern.permute.xlu0 3
    %1517 = vperm.xlu0 %1516, %v1266
    %v1518 = vpop.permute.xlu0 %1517
    %v1520 = vmul.f32 %v1518, %v138
    %v1521 = vadd.f32 %v1514, %v1520
    %v1522 = vstv %s1261
    %v1523 = vmul.f32 %v1522, %v104
    %v1524 = vperm.slane %v1523, 0
    %v1525 = vadd.f32 %v1521, %v1524
    %v1526 = vadd.f32 %v1525, %v146
    %v1527 = vmax.f32 %v1526, 0.0
    %v1528 = vpack.c.bf16 %v1527, %v1527
    %1529 = vmatpush.bf16.msra.mxu0 %v1342
    %1530 = vmatpush.bf16.msra.mxu0 %v1341
    %1531 = vmatpush.bf16.msra.mxu0 %v1340
    %1532 = vmatpush.bf16.msra.mxu0 %v1339
    %1533 = vmatpush.bf16.msra.mxu0 %v1338
    %1534 = vmatpush.bf16.msra.mxu0 %v1337
    %1535 = vmatpush.bf16.msra.mxu0 %v1336
    %1536 = vmatpush.bf16.msra.mxu0 %v1335
    %1537 = vmatmul.bf16.gmra.mxu0 %v1528
    %v1538 = vpop.f32.mrf.mxu0
    %v1539 = vadd.f32 %v168, %v1538
    %v1540 = vpop.f32.mrf.mxu0
    %1541 = vdwg.mxu0
    %v1542 = vmax.f32 %v1539, 0.0
    %v1543 = vpack.c.bf16 %v1542, %v1542
    %1544 = vmatpush.bf16.msra.mxu0 %v1421
    %1545 = vmatpush.bf16.msra.mxu0 %v1420
    %1546 = vmatpush.bf16.msra.mxu0 %v1419
    %1547 = vmatpush.bf16.msra.mxu0 %v1418
    %1548 = vmatpush.bf16.msra.mxu0 %v1417
    %1549 = vmatpush.bf16.msra.mxu0 %v1416
    %1550 = vmatpush.bf16.msra.mxu0 %v1415
    %1551 = vmatpush.bf16.msra.mxu0 %v1414
    %1552 = vmatmul.bf16.gmra.mxu0 %v1543
    %v1553 = vpop.f32.mrf.mxu0
    %v1554 = vadd.f32 %v250, %v1553
    %v1555 = vpop.f32.mrf.mxu0
    %1556 = vdwg.mxu0
    %v1557 = vmax.f32 %v1554, 0.0
    %v1558 = vmul.f32 %v1557, %v315
    %1559 = vadd.xlane.f32.xlu0 %v1558
    %v1560 = vpop.xlane.xlu0 %1559
    %v1561 = vadd.f32 %v1560, %v320
    %v1562 = vsub.f32 %v1447, %v1504
    %v1563 = vadd.f32 %v1562, %v1561
    %v1564 = vmul.f32 %v1448, %v1563
    %v1565 = vadd.f32 %v1252, %v1564
    %1567 = vset.pattern.permute.xlu0 0
    %1568 = vperm.xlu0 %1567, %v1565
    %v1569 = vpop.permute.xlu0 %1568
    %v1571 = vmul.f32 %v1569, %v131
    %1573 = vset.pattern.permute.xlu0 3
    %1574 = vperm.xlu0 %1573, %v1267
    %v1575 = vpop.permute.xlu0 %1574
    %v1577 = vmul.f32 %v1575, %v138
    %v1578 = vadd.f32 %v1571, %v1577
    %v1579 = vstv %s1262
    %v1580 = vmul.f32 %v1579, %v104
    %v1581 = vperm.slane %v1580, 0
    %v1582 = vadd.f32 %v1578, %v1581
    %v1583 = vadd.f32 %v1582, %v146
    %v1584 = vmax.f32 %v1583, 0.0
    %v1585 = vpack.c.bf16 %v1584, %v1584
    %1586 = vmatpush.bf16.msra.mxu0 %v1342
    %1587 = vmatpush.bf16.msra.mxu0 %v1341
    %1588 = vmatpush.bf16.msra.mxu0 %v1340
    %1589 = vmatpush.bf16.msra.mxu0 %v1339
    %1590 = vmatpush.bf16.msra.mxu0 %v1338
    %1591 = vmatpush.bf16.msra.mxu0 %v1337
    %1592 = vmatpush.bf16.msra.mxu0 %v1336
    %1593 = vmatpush.bf16.msra.mxu0 %v1335
    %1594 = vmatmul.bf16.gmra.mxu0 %v1585
    %v1595 = vpop.f32.mrf.mxu0
    %v1596 = vadd.f32 %v168, %v1595
    %v1597 = vpop.f32.mrf.mxu0
    %1598 = vdwg.mxu0
    %v1599 = vmax.f32 %v1596, 0.0
    %v1600 = vpack.c.bf16 %v1599, %v1599
    %1601 = vmatpush.bf16.msra.mxu0 %v1421
    %1602 = vmatpush.bf16.msra.mxu0 %v1420
    %1603 = vmatpush.bf16.msra.mxu0 %v1419
    %1604 = vmatpush.bf16.msra.mxu0 %v1418
    %1605 = vmatpush.bf16.msra.mxu0 %v1417
    %1606 = vmatpush.bf16.msra.mxu0 %v1416
    %1607 = vmatpush.bf16.msra.mxu0 %v1415
    %1608 = vmatpush.bf16.msra.mxu0 %v1414
    %1609 = vmatmul.bf16.gmra.mxu0 %v1600
    %v1610 = vpop.f32.mrf.mxu0
    %v1611 = vadd.f32 %v250, %v1610
    %v1612 = vpop.f32.mrf.mxu0
    %1613 = vdwg.mxu0
    %v1614 = vmax.f32 %v1611, 0.0
    %v1615 = vmul.f32 %v1614, %v315
    %1616 = vadd.xlane.f32.xlu0 %v1615
    %v1617 = vpop.xlane.xlu0 %1616
    %v1618 = vadd.f32 %v1617, %v320
    %v1619 = vadd.f32 %v1504, %v1561
    %v1620 = vmul.f32 %v1619, 3.0
    %v1621 = vadd.f32 %v1447, %v1620
    %v1622 = vadd.f32 %v1621, %v1618
    %v1623 = vmul.f32 %v1448, %v1622
    %v1624 = vmul.f32 %v1623, 0.125
    %v1625 = vadd.f32 %v1252, %v1624
    %1627 = vrot.lane.b32.xlu0 %v1625, 4
    %v1628 = vpop.permute.xlu0 %1627
    %vm1630 = vcmask 39968
    %1631 = vst.msk [vmem:[#allocation11] sm:$0xff] %vm1630, %v1628
    %s1632 = sld [smem:[#allocation7 + $0x14]]
    %s1633 = sld [smem:[#allocation7 + $0x15]]
    %s1634 = sld [smem:[#allocation7 + $0x16]]
    %s1635 = sld [smem:[#allocation7 + $0x17]]
    %s1636 = sld [smem:[#allocation7 + $0x18]]
    %v1637 = vld [vmem:[#allocation3] sm:$0xff]
    %v1638 = vld [vmem:[%s125] sm:$0xff]
    %v1639 = vld [vmem:[%s127] sm:$0xff]
    %v1640 = vld [vmem:[%s129] sm:$0xff]
    %1641 = vset.pattern.permute.xlu0 0
    %1642 = vperm.xlu0 %1641, %v1625
    %v1643 = vpop.permute.xlu0 %1642
    %v1645 = vmul.f32 %v1643, %v131
    %1647 = vset.pattern.permute.xlu0 4
    %1648 = vperm.xlu0 %1647, %v1637
    %v1649 = vpop.permute.xlu0 %1648
    %v1651 = vmul.f32 %v1649, %v138
    %v1652 = vadd.f32 %v1645, %v1651
    %v1653 = vstv %s1632
    %v1654 = vmul.f32 %v1653, %v104
    %v1655 = vperm.slane %v1654, 0
    %v1656 = vadd.f32 %v1652, %v1655
    %v1657 = vadd.f32 %v1656, %v146
    %v1658 = vmax.f32 %v1657, 0.0
    %v1659 = vpack.c.bf16 %v1658, %v1658
    %v1660 = vld [vmem:[#allocation8] sm:$0xf]
    %v1661 = vld [vmem:[#allocation8 + $0x4] sm:$0xf]
    %v1662 = vld [vmem:[#allocation8 + $0x8] sm:$0xf]
    %v1663 = vld [vmem:[#allocation8 + $0xc] sm:$0xf]
    %v1664 = vld [vmem:[#allocation8 + $0x10] sm:$0xf]
    %v1665 = vld [vmem:[#allocation8 + $0x14] sm:$0xf]
    %v1666 = vld [vmem:[#allocation8 + $0x18] sm:$0xf]
    %v1667 = vld [vmem:[#allocation8 + $0x1c] sm:$0xf]
    %v1668 = vld [vmem:[#allocation8 + $0x20] sm:$0xf]
    %v1669 = vld [vmem:[#allocation8 + $0x24] sm:$0xf]
    %v1670 = vld [vmem:[#allocation8 + $0x28] sm:$0xf]
    %v1671 = vld [vmem:[#allocation8 + $0x2c] sm:$0xf]
    %v1672 = vld [vmem:[#allocation8 + $0x30] sm:$0xf]
    %v1673 = vld [vmem:[#allocation8 + $0x34] sm:$0xf]
    %v1674 = vld [vmem:[#allocation8 + $0x38] sm:$0xf]
    %v1675 = vld [vmem:[#allocation8 + $0x3c] sm:$0xf]
    %v1692 = vunpack.c.l.b16 %v1660
    %v1693 = vunpack.c.l.b16 %v1661
    %v1694 = vunpack.c.l.b16 %v1662
    %v1695 = vunpack.c.l.b16 %v1663
    %v1696 = vunpack.c.l.b16 %v1664
    %v1697 = vunpack.c.l.b16 %v1665
    %v1698 = vunpack.c.l.b16 %v1666
    %v1699 = vunpack.c.l.b16 %v1667
    %v1700 = vunpack.c.l.b16 %v1668
    %v1701 = vunpack.c.l.b16 %v1669
    %v1702 = vunpack.c.l.b16 %v1670
    %v1703 = vunpack.c.l.b16 %v1671
    %v1704 = vunpack.c.l.b16 %v1672
    %v1705 = vunpack.c.l.b16 %v1673
    %v1706 = vunpack.c.l.b16 %v1674
    %v1707 = vunpack.c.l.b16 %v1675
    %v1708 = vpack.c.b16 %v1693, %v1692
    %v1709 = vpack.c.b16 %v1695, %v1694
    %v1710 = vpack.c.b16 %v1697, %v1696
    %v1711 = vpack.c.b16 %v1699, %v1698
    %v1712 = vpack.c.b16 %v1701, %v1700
    %v1713 = vpack.c.b16 %v1703, %v1702
    %v1714 = vpack.c.b16 %v1705, %v1704
    %v1715 = vpack.c.b16 %v1707, %v1706
    %1724 = vmatpush.bf16.msra.mxu0 %v1715
    %1725 = vmatpush.bf16.msra.mxu0 %v1714
    %1726 = vmatpush.bf16.msra.mxu0 %v1713
    %1727 = vmatpush.bf16.msra.mxu0 %v1712
    %1728 = vmatpush.bf16.msra.mxu0 %v1711
    %1729 = vmatpush.bf16.msra.mxu0 %v1710
    %1730 = vmatpush.bf16.msra.mxu0 %v1709
    %1731 = vmatpush.bf16.msra.mxu0 %v1708
    %1732 = vmatmul.bf16.gmra.mxu0 %v1659
    %v1733 = vpop.f32.mrf.mxu0
    %v1734 = vadd.f32 %v168, %v1733
    %v1735 = vpop.f32.mrf.mxu0
    %1736 = vdwg.mxu0
    %v1737 = vmax.f32 %v1734, 0.0
    %v1738 = vpack.c.bf16 %v1737, %v1737
    %v1739 = vld [vmem:[#allocation10] sm:$0xf]
    %v1740 = vld [vmem:[#allocation10 + $0x4] sm:$0xf]
    %v1741 = vld [vmem:[#allocation10 + $0x8] sm:$0xf]
    %v1742 = vld [vmem:[#allocation10 + $0xc] sm:$0xf]
    %v1743 = vld [vmem:[#allocation10 + $0x10] sm:$0xf]
    %v1744 = vld [vmem:[#allocation10 + $0x14] sm:$0xf]
    %v1745 = vld [vmem:[#allocation10 + $0x18] sm:$0xf]
    %v1746 = vld [vmem:[#allocation10 + $0x1c] sm:$0xf]
    %v1747 = vld [vmem:[#allocation10 + $0x20] sm:$0xf]
    %v1748 = vld [vmem:[#allocation10 + $0x24] sm:$0xf]
    %v1749 = vld [vmem:[#allocation10 + $0x28] sm:$0xf]
    %v1750 = vld [vmem:[#allocation10 + $0x2c] sm:$0xf]
    %v1751 = vld [vmem:[#allocation10 + $0x30] sm:$0xf]
    %v1752 = vld [vmem:[#allocation10 + $0x34] sm:$0xf]
    %v1753 = vld [vmem:[#allocation10 + $0x38] sm:$0xf]
    %v1754 = vld [vmem:[#allocation10 + $0x3c] sm:$0xf]
    %v1771 = vunpack.c.l.b16 %v1739
    %v1772 = vunpack.c.l.b16 %v1740
    %v1773 = vunpack.c.l.b16 %v1741
    %v1774 = vunpack.c.l.b16 %v1742
    %v1775 = vunpack.c.l.b16 %v1743
    %v1776 = vunpack.c.l.b16 %v1744
    %v1777 = vunpack.c.l.b16 %v1745
    %v1778 = vunpack.c.l.b16 %v1746
    %v1779 = vunpack.c.l.b16 %v1747
    %v1780 = vunpack.c.l.b16 %v1748
    %v1781 = vunpack.c.l.b16 %v1749
    %v1782 = vunpack.c.l.b16 %v1750
    %v1783 = vunpack.c.l.b16 %v1751
    %v1784 = vunpack.c.l.b16 %v1752
    %v1785 = vunpack.c.l.b16 %v1753
    %v1786 = vunpack.c.l.b16 %v1754
    %v1787 = vpack.c.b16 %v1772, %v1771
    %v1788 = vpack.c.b16 %v1774, %v1773
    %v1789 = vpack.c.b16 %v1776, %v1775
    %v1790 = vpack.c.b16 %v1778, %v1777
    %v1791 = vpack.c.b16 %v1780, %v1779
    %v1792 = vpack.c.b16 %v1782, %v1781
    %v1793 = vpack.c.b16 %v1784, %v1783
    %v1794 = vpack.c.b16 %v1786, %v1785
    %1803 = vmatpush.bf16.msra.mxu0 %v1794
    %1804 = vmatpush.bf16.msra.mxu0 %v1793
    %1805 = vmatpush.bf16.msra.mxu0 %v1792
    %1806 = vmatpush.bf16.msra.mxu0 %v1791
    %1807 = vmatpush.bf16.msra.mxu0 %v1790
    %1808 = vmatpush.bf16.msra.mxu0 %v1789
    %1809 = vmatpush.bf16.msra.mxu0 %v1788
    %1810 = vmatpush.bf16.msra.mxu0 %v1787
    %1811 = vmatmul.bf16.gmra.mxu0 %v1738
    %v1812 = vpop.f32.mrf.mxu0
    %v1813 = vadd.f32 %v250, %v1812
    %v1814 = vpop.f32.mrf.mxu0
    %1815 = vdwg.mxu0
    %v1816 = vmax.f32 %v1813, 0.0
    %v1817 = vmul.f32 %v1816, %v315
    %1818 = vadd.xlane.f32.xlu0 %v1817
    %v1819 = vpop.xlane.xlu0 %1818
    %v1820 = vadd.f32 %v1819, %v320
    %v1821 = vstv %s1636
    %v1822 = vmul.f32 %v1821, %v1820
    %v1823 = vmul.f32 %v1822, %v330
    %v1824 = vadd.f32 %v1625, %v1823
    %1826 = vset.pattern.permute.xlu0 0
    %1827 = vperm.xlu0 %1826, %v1824
    %v1828 = vpop.permute.xlu0 %1827
    %v1830 = vmul.f32 %v1828, %v131
    %1832 = vset.pattern.permute.xlu0 4
    %1833 = vperm.xlu0 %1832, %v1638
    %v1834 = vpop.permute.xlu0 %1833
    %v1836 = vmul.f32 %v1834, %v138
    %v1837 = vadd.f32 %v1830, %v1836
    %v1838 = vstv %s1633
    %v1839 = vmul.f32 %v1838, %v104
    %v1840 = vperm.slane %v1839, 0
    %v1841 = vadd.f32 %v1837, %v1840
    %v1842 = vadd.f32 %v1841, %v146
    %v1843 = vmax.f32 %v1842, 0.0
    %v1844 = vpack.c.bf16 %v1843, %v1843
    %1845 = vmatpush.bf16.msra.mxu0 %v1715
    %1846 = vmatpush.bf16.msra.mxu0 %v1714
    %1847 = vmatpush.bf16.msra.mxu0 %v1713
    %1848 = vmatpush.bf16.msra.mxu0 %v1712
    %1849 = vmatpush.bf16.msra.mxu0 %v1711
    %1850 = vmatpush.bf16.msra.mxu0 %v1710
    %1851 = vmatpush.bf16.msra.mxu0 %v1709
    %1852 = vmatpush.bf16.msra.mxu0 %v1708
    %1853 = vmatmul.bf16.gmra.mxu0 %v1844
    %v1854 = vpop.f32.mrf.mxu0
    %v1855 = vadd.f32 %v168, %v1854
    %v1856 = vpop.f32.mrf.mxu0
    %1857 = vdwg.mxu0
    %v1858 = vmax.f32 %v1855, 0.0
    %v1859 = vpack.c.bf16 %v1858, %v1858
    %1860 = vmatpush.bf16.msra.mxu0 %v1794
    %1861 = vmatpush.bf16.msra.mxu0 %v1793
    %1862 = vmatpush.bf16.msra.mxu0 %v1792
    %1863 = vmatpush.bf16.msra.mxu0 %v1791
    %1864 = vmatpush.bf16.msra.mxu0 %v1790
    %1865 = vmatpush.bf16.msra.mxu0 %v1789
    %1866 = vmatpush.bf16.msra.mxu0 %v1788
    %1867 = vmatpush.bf16.msra.mxu0 %v1787
    %1868 = vmatmul.bf16.gmra.mxu0 %v1859
    %v1869 = vpop.f32.mrf.mxu0
    %v1870 = vadd.f32 %v250, %v1869
    %v1871 = vpop.f32.mrf.mxu0
    %1872 = vdwg.mxu0
    %v1873 = vmax.f32 %v1870, 0.0
    %v1874 = vmul.f32 %v1873, %v315
    %1875 = vadd.xlane.f32.xlu0 %v1874
    %v1876 = vpop.xlane.xlu0 %1875
    %v1877 = vadd.f32 %v1876, %v320
    %v1878 = vmul.f32 %v1820, %v330
    %v1879 = vsub.f32 %v1877, %v1878
    %v1880 = vmul.f32 %v1821, %v1879
    %v1881 = vadd.f32 %v1625, %v1880
    %1883 = vset.pattern.permute.xlu0 0
    %1884 = vperm.xlu0 %1883, %v1881
    %v1885 = vpop.permute.xlu0 %1884
    %v1887 = vmul.f32 %v1885, %v131
    %1889 = vset.pattern.permute.xlu0 4
    %1890 = vperm.xlu0 %1889, %v1639
    %v1891 = vpop.permute.xlu0 %1890
    %v1893 = vmul.f32 %v1891, %v138
    %v1894 = vadd.f32 %v1887, %v1893
    %v1895 = vstv %s1634
    %v1896 = vmul.f32 %v1895, %v104
    %v1897 = vperm.slane %v1896, 0
    %v1898 = vadd.f32 %v1894, %v1897
    %v1899 = vadd.f32 %v1898, %v146
    %v1900 = vmax.f32 %v1899, 0.0
    %v1901 = vpack.c.bf16 %v1900, %v1900
    %1902 = vmatpush.bf16.msra.mxu0 %v1715
    %1903 = vmatpush.bf16.msra.mxu0 %v1714
    %1904 = vmatpush.bf16.msra.mxu0 %v1713
    %1905 = vmatpush.bf16.msra.mxu0 %v1712
    %1906 = vmatpush.bf16.msra.mxu0 %v1711
    %1907 = vmatpush.bf16.msra.mxu0 %v1710
    %1908 = vmatpush.bf16.msra.mxu0 %v1709
    %1909 = vmatpush.bf16.msra.mxu0 %v1708
    %1910 = vmatmul.bf16.gmra.mxu0 %v1901
    %v1911 = vpop.f32.mrf.mxu0
    %v1912 = vadd.f32 %v168, %v1911
    %v1913 = vpop.f32.mrf.mxu0
    %1914 = vdwg.mxu0
    %v1915 = vmax.f32 %v1912, 0.0
    %v1916 = vpack.c.bf16 %v1915, %v1915
    %1917 = vmatpush.bf16.msra.mxu0 %v1794
    %1918 = vmatpush.bf16.msra.mxu0 %v1793
    %1919 = vmatpush.bf16.msra.mxu0 %v1792
    %1920 = vmatpush.bf16.msra.mxu0 %v1791
    %1921 = vmatpush.bf16.msra.mxu0 %v1790
    %1922 = vmatpush.bf16.msra.mxu0 %v1789
    %1923 = vmatpush.bf16.msra.mxu0 %v1788
    %1924 = vmatpush.bf16.msra.mxu0 %v1787
    %1925 = vmatmul.bf16.gmra.mxu0 %v1916
    %v1926 = vpop.f32.mrf.mxu0
    %v1927 = vadd.f32 %v250, %v1926
    %v1928 = vpop.f32.mrf.mxu0
    %1929 = vdwg.mxu0
    %v1930 = vmax.f32 %v1927, 0.0
    %v1931 = vmul.f32 %v1930, %v315
    %1932 = vadd.xlane.f32.xlu0 %v1931
    %v1933 = vpop.xlane.xlu0 %1932
    %v1934 = vadd.f32 %v1933, %v320
    %v1935 = vsub.f32 %v1820, %v1877
    %v1936 = vadd.f32 %v1935, %v1934
    %v1937 = vmul.f32 %v1821, %v1936
    %v1938 = vadd.f32 %v1625, %v1937
    %1940 = vset.pattern.permute.xlu0 0
    %1941 = vperm.xlu0 %1940, %v1938
    %v1942 = vpop.permute.xlu0 %1941
    %v1944 = vmul.f32 %v1942, %v131
    %1946 = vset.pattern.permute.xlu0 4
    %1947 = vperm.xlu0 %1946, %v1640
    %v1948 = vpop.permute.xlu0 %1947
    %v1950 = vmul.f32 %v1948, %v138
    %v1951 = vadd.f32 %v1944, %v1950
    %v1952 = vstv %s1635
    %v1953 = vmul.f32 %v1952, %v104
    %v1954 = vperm.slane %v1953, 0
    %v1955 = vadd.f32 %v1951, %v1954
    %v1956 = vadd.f32 %v1955, %v146
    %v1957 = vmax.f32 %v1956, 0.0
    %v1958 = vpack.c.bf16 %v1957, %v1957
    %1959 = vmatpush.bf16.msra.mxu0 %v1715
    %1960 = vmatpush.bf16.msra.mxu0 %v1714
    %1961 = vmatpush.bf16.msra.mxu0 %v1713
    %1962 = vmatpush.bf16.msra.mxu0 %v1712
    %1963 = vmatpush.bf16.msra.mxu0 %v1711
    %1964 = vmatpush.bf16.msra.mxu0 %v1710
    %1965 = vmatpush.bf16.msra.mxu0 %v1709
    %1966 = vmatpush.bf16.msra.mxu0 %v1708
    %1967 = vmatmul.bf16.gmra.mxu0 %v1958
    %v1968 = vpop.f32.mrf.mxu0
    %v1969 = vadd.f32 %v168, %v1968
    %v1970 = vpop.f32.mrf.mxu0
    %1971 = vdwg.mxu0
    %v1972 = vmax.f32 %v1969, 0.0
    %v1973 = vpack.c.bf16 %v1972, %v1972
    %1974 = vmatpush.bf16.msra.mxu0 %v1794
    %1975 = vmatpush.bf16.msra.mxu0 %v1793
    %1976 = vmatpush.bf16.msra.mxu0 %v1792
    %1977 = vmatpush.bf16.msra.mxu0 %v1791
    %1978 = vmatpush.bf16.msra.mxu0 %v1790
    %1979 = vmatpush.bf16.msra.mxu0 %v1789
    %1980 = vmatpush.bf16.msra.mxu0 %v1788
    %1981 = vmatpush.bf16.msra.mxu0 %v1787
    %1982 = vmatmul.bf16.gmra.mxu0 %v1973
    %v1983 = vpop.f32.mrf.mxu0
    %v1984 = vadd.f32 %v250, %v1983
    %v1985 = vpop.f32.mrf.mxu0
    %1986 = vdwg.mxu0
    %v1987 = vmax.f32 %v1984, 0.0
    %v1988 = vmul.f32 %v1987, %v315
    %1989 = vadd.xlane.f32.xlu0 %v1988
    %v1990 = vpop.xlane.xlu0 %1989
    %v1991 = vadd.f32 %v1990, %v320
    %v1992 = vadd.f32 %v1877, %v1934
    %v1993 = vmul.f32 %v1992, 3.0
    %v1994 = vadd.f32 %v1820, %v1993
    %v1995 = vadd.f32 %v1994, %v1991
    %v1996 = vmul.f32 %v1821, %v1995
    %v1997 = vmul.f32 %v1996, 0.125
    %v1998 = vadd.f32 %v1625, %v1997
    %2000 = vrot.lane.b32.xlu0 %v1998, 5
    %v2001 = vpop.permute.xlu0 %2000
    %vm2003 = vcmask 48168
    %2004 = vst.msk [vmem:[#allocation11] sm:$0xff] %vm2003, %v2001
    %s2005 = sld [smem:[#allocation7 + $0x19]]
    %s2006 = sld [smem:[#allocation7 + $0x1a]]
    %s2007 = sld [smem:[#allocation7 + $0x1b]]
    %s2008 = sld [smem:[#allocation7 + $0x1c]]
    %s2009 = sld [smem:[#allocation7 + $0x1d]]
    %v2010 = vld [vmem:[#allocation3] sm:$0xff]
    %v2011 = vld [vmem:[%s125] sm:$0xff]
    %v2012 = vld [vmem:[%s127] sm:$0xff]
    %v2013 = vld [vmem:[%s129] sm:$0xff]
    %2014 = vset.pattern.permute.xlu0 0
    %2015 = vperm.xlu0 %2014, %v1998
    %v2016 = vpop.permute.xlu0 %2015
    %v2018 = vmul.f32 %v2016, %v131
    %2020 = vset.pattern.permute.xlu0 5
    %2021 = vperm.xlu0 %2020, %v2010
    %v2022 = vpop.permute.xlu0 %2021
    %v2024 = vmul.f32 %v2022, %v138
    %v2025 = vadd.f32 %v2018, %v2024
    %v2026 = vstv %s2005
    %v2027 = vmul.f32 %v2026, %v104
    %v2028 = vperm.slane %v2027, 0
    %v2029 = vadd.f32 %v2025, %v2028
    %v2030 = vadd.f32 %v2029, %v146
    %v2031 = vmax.f32 %v2030, 0.0
    %v2032 = vpack.c.bf16 %v2031, %v2031
    %v2033 = vld [vmem:[#allocation8] sm:$0xf]
    %v2034 = vld [vmem:[#allocation8 + $0x4] sm:$0xf]
    %v2035 = vld [vmem:[#allocation8 + $0x8] sm:$0xf]
    %v2036 = vld [vmem:[#allocation8 + $0xc] sm:$0xf]
    %v2037 = vld [vmem:[#allocation8 + $0x10] sm:$0xf]
    %v2038 = vld [vmem:[#allocation8 + $0x14] sm:$0xf]
    %v2039 = vld [vmem:[#allocation8 + $0x18] sm:$0xf]
    %v2040 = vld [vmem:[#allocation8 + $0x1c] sm:$0xf]
    %v2041 = vld [vmem:[#allocation8 + $0x20] sm:$0xf]
    %v2042 = vld [vmem:[#allocation8 + $0x24] sm:$0xf]
    %v2043 = vld [vmem:[#allocation8 + $0x28] sm:$0xf]
    %v2044 = vld [vmem:[#allocation8 + $0x2c] sm:$0xf]
    %v2045 = vld [vmem:[#allocation8 + $0x30] sm:$0xf]
    %v2046 = vld [vmem:[#allocation8 + $0x34] sm:$0xf]
    %v2047 = vld [vmem:[#allocation8 + $0x38] sm:$0xf]
    %v2048 = vld [vmem:[#allocation8 + $0x3c] sm:$0xf]
    %v2065 = vunpack.c.l.b16 %v2033
    %v2066 = vunpack.c.l.b16 %v2034
    %v2067 = vunpack.c.l.b16 %v2035
    %v2068 = vunpack.c.l.b16 %v2036
    %v2069 = vunpack.c.l.b16 %v2037
    %v2070 = vunpack.c.l.b16 %v2038
    %v2071 = vunpack.c.l.b16 %v2039
    %v2072 = vunpack.c.l.b16 %v2040
    %v2073 = vunpack.c.l.b16 %v2041
    %v2074 = vunpack.c.l.b16 %v2042
    %v2075 = vunpack.c.l.b16 %v2043
    %v2076 = vunpack.c.l.b16 %v2044
    %v2077 = vunpack.c.l.b16 %v2045
    %v2078 = vunpack.c.l.b16 %v2046
    %v2079 = vunpack.c.l.b16 %v2047
    %v2080 = vunpack.c.l.b16 %v2048
    %v2081 = vpack.c.b16 %v2066, %v2065
    %v2082 = vpack.c.b16 %v2068, %v2067
    %v2083 = vpack.c.b16 %v2070, %v2069
    %v2084 = vpack.c.b16 %v2072, %v2071
    %v2085 = vpack.c.b16 %v2074, %v2073
    %v2086 = vpack.c.b16 %v2076, %v2075
    %v2087 = vpack.c.b16 %v2078, %v2077
    %v2088 = vpack.c.b16 %v2080, %v2079
    %2097 = vmatpush.bf16.msra.mxu0 %v2088
    %2098 = vmatpush.bf16.msra.mxu0 %v2087
    %2099 = vmatpush.bf16.msra.mxu0 %v2086
    %2100 = vmatpush.bf16.msra.mxu0 %v2085
    %2101 = vmatpush.bf16.msra.mxu0 %v2084
    %2102 = vmatpush.bf16.msra.mxu0 %v2083
    %2103 = vmatpush.bf16.msra.mxu0 %v2082
    %2104 = vmatpush.bf16.msra.mxu0 %v2081
    %2105 = vmatmul.bf16.gmra.mxu0 %v2032
    %v2106 = vpop.f32.mrf.mxu0
    %v2107 = vadd.f32 %v168, %v2106
    %v2108 = vpop.f32.mrf.mxu0
    %2109 = vdwg.mxu0
    %v2110 = vmax.f32 %v2107, 0.0
    %v2111 = vpack.c.bf16 %v2110, %v2110
    %v2112 = vld [vmem:[#allocation10] sm:$0xf]
    %v2113 = vld [vmem:[#allocation10 + $0x4] sm:$0xf]
    %v2114 = vld [vmem:[#allocation10 + $0x8] sm:$0xf]
    %v2115 = vld [vmem:[#allocation10 + $0xc] sm:$0xf]
    %v2116 = vld [vmem:[#allocation10 + $0x10] sm:$0xf]
    %v2117 = vld [vmem:[#allocation10 + $0x14] sm:$0xf]
    %v2118 = vld [vmem:[#allocation10 + $0x18] sm:$0xf]
    %v2119 = vld [vmem:[#allocation10 + $0x1c] sm:$0xf]
    %v2120 = vld [vmem:[#allocation10 + $0x20] sm:$0xf]
    %v2121 = vld [vmem:[#allocation10 + $0x24] sm:$0xf]
    %v2122 = vld [vmem:[#allocation10 + $0x28] sm:$0xf]
    %v2123 = vld [vmem:[#allocation10 + $0x2c] sm:$0xf]
    %v2124 = vld [vmem:[#allocation10 + $0x30] sm:$0xf]
    %v2125 = vld [vmem:[#allocation10 + $0x34] sm:$0xf]
    %v2126 = vld [vmem:[#allocation10 + $0x38] sm:$0xf]
    %v2127 = vld [vmem:[#allocation10 + $0x3c] sm:$0xf]
    %v2144 = vunpack.c.l.b16 %v2112
    %v2145 = vunpack.c.l.b16 %v2113
    %v2146 = vunpack.c.l.b16 %v2114
    %v2147 = vunpack.c.l.b16 %v2115
    %v2148 = vunpack.c.l.b16 %v2116
    %v2149 = vunpack.c.l.b16 %v2117
    %v2150 = vunpack.c.l.b16 %v2118
    %v2151 = vunpack.c.l.b16 %v2119
    %v2152 = vunpack.c.l.b16 %v2120
    %v2153 = vunpack.c.l.b16 %v2121
    %v2154 = vunpack.c.l.b16 %v2122
    %v2155 = vunpack.c.l.b16 %v2123
    %v2156 = vunpack.c.l.b16 %v2124
    %v2157 = vunpack.c.l.b16 %v2125
    %v2158 = vunpack.c.l.b16 %v2126
    %v2159 = vunpack.c.l.b16 %v2127
    %v2160 = vpack.c.b16 %v2145, %v2144
    %v2161 = vpack.c.b16 %v2147, %v2146
    %v2162 = vpack.c.b16 %v2149, %v2148
    %v2163 = vpack.c.b16 %v2151, %v2150
    %v2164 = vpack.c.b16 %v2153, %v2152
    %v2165 = vpack.c.b16 %v2155, %v2154
    %v2166 = vpack.c.b16 %v2157, %v2156
    %v2167 = vpack.c.b16 %v2159, %v2158
    %2176 = vmatpush.bf16.msra.mxu0 %v2167
    %2177 = vmatpush.bf16.msra.mxu0 %v2166
    %2178 = vmatpush.bf16.msra.mxu0 %v2165
    %2179 = vmatpush.bf16.msra.mxu0 %v2164
    %2180 = vmatpush.bf16.msra.mxu0 %v2163
    %2181 = vmatpush.bf16.msra.mxu0 %v2162
    %2182 = vmatpush.bf16.msra.mxu0 %v2161
    %2183 = vmatpush.bf16.msra.mxu0 %v2160
    %2184 = vmatmul.bf16.gmra.mxu0 %v2111
    %v2185 = vpop.f32.mrf.mxu0
    %v2186 = vadd.f32 %v250, %v2185
    %v2187 = vpop.f32.mrf.mxu0
    %2188 = vdwg.mxu0
    %v2189 = vmax.f32 %v2186, 0.0
    %v2190 = vmul.f32 %v2189, %v315
    %2191 = vadd.xlane.f32.xlu0 %v2190
    %v2192 = vpop.xlane.xlu0 %2191
    %v2193 = vadd.f32 %v2192, %v320
    %v2194 = vstv %s2009
    %v2195 = vmul.f32 %v2194, %v2193
    %v2196 = vmul.f32 %v2195, %v330
    %v2197 = vadd.f32 %v1998, %v2196
    %2199 = vset.pattern.permute.xlu0 0
    %2200 = vperm.xlu0 %2199, %v2197
    %v2201 = vpop.permute.xlu0 %2200
    %v2203 = vmul.f32 %v2201, %v131
    %2205 = vset.pattern.permute.xlu0 5
    %2206 = vperm.xlu0 %2205, %v2011
    %v2207 = vpop.permute.xlu0 %2206
    %v2209 = vmul.f32 %v2207, %v138
    %v2210 = vadd.f32 %v2203, %v2209
    %v2211 = vstv %s2006
    %v2212 = vmul.f32 %v2211, %v104
    %v2213 = vperm.slane %v2212, 0
    %v2214 = vadd.f32 %v2210, %v2213
    %v2215 = vadd.f32 %v2214, %v146
    %v2216 = vmax.f32 %v2215, 0.0
    %v2217 = vpack.c.bf16 %v2216, %v2216
    %2218 = vmatpush.bf16.msra.mxu0 %v2088
    %2219 = vmatpush.bf16.msra.mxu0 %v2087
    %2220 = vmatpush.bf16.msra.mxu0 %v2086
    %2221 = vmatpush.bf16.msra.mxu0 %v2085
    %2222 = vmatpush.bf16.msra.mxu0 %v2084
    %2223 = vmatpush.bf16.msra.mxu0 %v2083
    %2224 = vmatpush.bf16.msra.mxu0 %v2082
    %2225 = vmatpush.bf16.msra.mxu0 %v2081
    %2226 = vmatmul.bf16.gmra.mxu0 %v2217
    %v2227 = vpop.f32.mrf.mxu0
    %v2228 = vadd.f32 %v168, %v2227
    %v2229 = vpop.f32.mrf.mxu0
    %2230 = vdwg.mxu0
    %v2231 = vmax.f32 %v2228, 0.0
    %v2232 = vpack.c.bf16 %v2231, %v2231
    %2233 = vmatpush.bf16.msra.mxu0 %v2167
    %2234 = vmatpush.bf16.msra.mxu0 %v2166
    %2235 = vmatpush.bf16.msra.mxu0 %v2165
    %2236 = vmatpush.bf16.msra.mxu0 %v2164
    %2237 = vmatpush.bf16.msra.mxu0 %v2163
    %2238 = vmatpush.bf16.msra.mxu0 %v2162
    %2239 = vmatpush.bf16.msra.mxu0 %v2161
    %2240 = vmatpush.bf16.msra.mxu0 %v2160
    %2241 = vmatmul.bf16.gmra.mxu0 %v2232
    %v2242 = vpop.f32.mrf.mxu0
    %v2243 = vadd.f32 %v250, %v2242
    %v2244 = vpop.f32.mrf.mxu0
    %2245 = vdwg.mxu0
    %v2246 = vmax.f32 %v2243, 0.0
    %v2247 = vmul.f32 %v2246, %v315
    %2248 = vadd.xlane.f32.xlu0 %v2247
    %v2249 = vpop.xlane.xlu0 %2248
    %v2250 = vadd.f32 %v2249, %v320
    %v2251 = vmul.f32 %v2193, %v330
    %v2252 = vsub.f32 %v2250, %v2251
    %v2253 = vmul.f32 %v2194, %v2252
    %v2254 = vadd.f32 %v1998, %v2253
    %2256 = vset.pattern.permute.xlu0 0
    %2257 = vperm.xlu0 %2256, %v2254
    %v2258 = vpop.permute.xlu0 %2257
    %v2260 = vmul.f32 %v2258, %v131
    %2262 = vset.pattern.permute.xlu0 5
    %2263 = vperm.xlu0 %2262, %v2012
    %v2264 = vpop.permute.xlu0 %2263
    %v2266 = vmul.f32 %v2264, %v138
    %v2267 = vadd.f32 %v2260, %v2266
    %v2268 = vstv %s2007
    %v2269 = vmul.f32 %v2268, %v104
    %v2270 = vperm.slane %v2269, 0
    %v2271 = vadd.f32 %v2267, %v2270
    %v2272 = vadd.f32 %v2271, %v146
    %v2273 = vmax.f32 %v2272, 0.0
    %v2274 = vpack.c.bf16 %v2273, %v2273
    %2275 = vmatpush.bf16.msra.mxu0 %v2088
    %2276 = vmatpush.bf16.msra.mxu0 %v2087
    %2277 = vmatpush.bf16.msra.mxu0 %v2086
    %2278 = vmatpush.bf16.msra.mxu0 %v2085
    %2279 = vmatpush.bf16.msra.mxu0 %v2084
    %2280 = vmatpush.bf16.msra.mxu0 %v2083
    %2281 = vmatpush.bf16.msra.mxu0 %v2082
    %2282 = vmatpush.bf16.msra.mxu0 %v2081
    %2283 = vmatmul.bf16.gmra.mxu0 %v2274
    %v2284 = vpop.f32.mrf.mxu0
    %v2285 = vadd.f32 %v168, %v2284
    %v2286 = vpop.f32.mrf.mxu0
    %2287 = vdwg.mxu0
    %v2288 = vmax.f32 %v2285, 0.0
    %v2289 = vpack.c.bf16 %v2288, %v2288
    %2290 = vmatpush.bf16.msra.mxu0 %v2167
    %2291 = vmatpush.bf16.msra.mxu0 %v2166
    %2292 = vmatpush.bf16.msra.mxu0 %v2165
    %2293 = vmatpush.bf16.msra.mxu0 %v2164
    %2294 = vmatpush.bf16.msra.mxu0 %v2163
    %2295 = vmatpush.bf16.msra.mxu0 %v2162
    %2296 = vmatpush.bf16.msra.mxu0 %v2161
    %2297 = vmatpush.bf16.msra.mxu0 %v2160
    %2298 = vmatmul.bf16.gmra.mxu0 %v2289
    %v2299 = vpop.f32.mrf.mxu0
    %v2300 = vadd.f32 %v250, %v2299
    %v2301 = vpop.f32.mrf.mxu0
    %2302 = vdwg.mxu0
    %v2303 = vmax.f32 %v2300, 0.0
    %v2304 = vmul.f32 %v2303, %v315
    %2305 = vadd.xlane.f32.xlu0 %v2304
    %v2306 = vpop.xlane.xlu0 %2305
    %v2307 = vadd.f32 %v2306, %v320
    %v2308 = vsub.f32 %v2193, %v2250
    %v2309 = vadd.f32 %v2308, %v2307
    %v2310 = vmul.f32 %v2194, %v2309
    %v2311 = vadd.f32 %v1998, %v2310
    %2313 = vset.pattern.permute.xlu0 0
    %2314 = vperm.xlu0 %2313, %v2311
    %v2315 = vpop.permute.xlu0 %2314
    %v2317 = vmul.f32 %v2315, %v131
    %2319 = vset.pattern.permute.xlu0 5
    %2320 = vperm.xlu0 %2319, %v2013
    %v2321 = vpop.permute.xlu0 %2320
    %v2323 = vmul.f32 %v2321, %v138
    %v2324 = vadd.f32 %v2317, %v2323
    %v2325 = vstv %s2008
    %v2326 = vmul.f32 %v2325, %v104
    %v2327 = vperm.slane %v2326, 0
    %v2328 = vadd.f32 %v2324, %v2327
    %v2329 = vadd.f32 %v2328, %v146
    %v2330 = vmax.f32 %v2329, 0.0
    %v2331 = vpack.c.bf16 %v2330, %v2330
    %2332 = vmatpush.bf16.msra.mxu0 %v2088
    %2333 = vmatpush.bf16.msra.mxu0 %v2087
    %2334 = vmatpush.bf16.msra.mxu0 %v2086
    %2335 = vmatpush.bf16.msra.mxu0 %v2085
    %2336 = vmatpush.bf16.msra.mxu0 %v2084
    %2337 = vmatpush.bf16.msra.mxu0 %v2083
    %2338 = vmatpush.bf16.msra.mxu0 %v2082
    %2339 = vmatpush.bf16.msra.mxu0 %v2081
    %2340 = vmatmul.bf16.gmra.mxu0 %v2331
    %v2341 = vpop.f32.mrf.mxu0
    %v2342 = vadd.f32 %v168, %v2341
    %v2343 = vpop.f32.mrf.mxu0
    %2344 = vdwg.mxu0
    %v2345 = vmax.f32 %v2342, 0.0
    %v2346 = vpack.c.bf16 %v2345, %v2345
    %2347 = vmatpush.bf16.msra.mxu0 %v2167
    %2348 = vmatpush.bf16.msra.mxu0 %v2166
    %2349 = vmatpush.bf16.msra.mxu0 %v2165
    %2350 = vmatpush.bf16.msra.mxu0 %v2164
    %2351 = vmatpush.bf16.msra.mxu0 %v2163
    %2352 = vmatpush.bf16.msra.mxu0 %v2162
    %2353 = vmatpush.bf16.msra.mxu0 %v2161
    %2354 = vmatpush.bf16.msra.mxu0 %v2160
    %2355 = vmatmul.bf16.gmra.mxu0 %v2346
    %v2356 = vpop.f32.mrf.mxu0
    %v2357 = vadd.f32 %v250, %v2356
    %v2358 = vpop.f32.mrf.mxu0
    %2359 = vdwg.mxu0
    %v2360 = vmax.f32 %v2357, 0.0
    %v2361 = vmul.f32 %v2360, %v315
    %2362 = vadd.xlane.f32.xlu0 %v2361
    %v2363 = vpop.xlane.xlu0 %2362
    %v2364 = vadd.f32 %v2363, %v320
    %v2365 = vadd.f32 %v2250, %v2307
    %v2366 = vmul.f32 %v2365, 3.0
    %v2367 = vadd.f32 %v2193, %v2366
    %v2368 = vadd.f32 %v2367, %v2364
    %v2369 = vmul.f32 %v2194, %v2368
    %v2370 = vmul.f32 %v2369, 0.125
    %v2371 = vadd.f32 %v1998, %v2370
    %2373 = vrot.lane.b32.xlu0 %v2371, 6
    %v2374 = vpop.permute.xlu0 %2373
    %vm2376 = vcmask 56368
    %2377 = vst.msk [vmem:[#allocation11] sm:$0xff] %vm2376, %v2374
    %s2378 = sld [smem:[#allocation7 + $0x1e]]
    %s2379 = sld [smem:[#allocation7 + $0x1f]]
    %s2380 = sld [smem:[#allocation7 + $0x20]]
    %s2381 = sld [smem:[#allocation7 + $0x21]]
    %s2382 = sld [smem:[#allocation7 + $0x22]]
    %v2383 = vld [vmem:[#allocation3] sm:$0xff]
    %v2384 = vld [vmem:[%s125] sm:$0xff]
    %v2385 = vld [vmem:[%s127] sm:$0xff]
    %v2386 = vld [vmem:[%s129] sm:$0xff]
    %2387 = vset.pattern.permute.xlu0 0
    %2388 = vperm.xlu0 %2387, %v2371
    %v2389 = vpop.permute.xlu0 %2388
    %v2391 = vmul.f32 %v2389, %v131
    %2393 = vset.pattern.permute.xlu0 6
    %2394 = vperm.xlu0 %2393, %v2383
    %v2395 = vpop.permute.xlu0 %2394
    %v2397 = vmul.f32 %v2395, %v138
    %v2398 = vadd.f32 %v2391, %v2397
    %v2399 = vstv %s2378
    %v2400 = vmul.f32 %v2399, %v104
    %v2401 = vperm.slane %v2400, 0
    %v2402 = vadd.f32 %v2398, %v2401
    %v2403 = vadd.f32 %v2402, %v146
    %v2404 = vmax.f32 %v2403, 0.0
    %v2405 = vpack.c.bf16 %v2404, %v2404
    %v2406 = vld [vmem:[#allocation8] sm:$0xf]
    %v2407 = vld [vmem:[#allocation8 + $0x4] sm:$0xf]
    %v2408 = vld [vmem:[#allocation8 + $0x8] sm:$0xf]
    %v2409 = vld [vmem:[#allocation8 + $0xc] sm:$0xf]
    %v2410 = vld [vmem:[#allocation8 + $0x10] sm:$0xf]
    %v2411 = vld [vmem:[#allocation8 + $0x14] sm:$0xf]
    %v2412 = vld [vmem:[#allocation8 + $0x18] sm:$0xf]
    %v2413 = vld [vmem:[#allocation8 + $0x1c] sm:$0xf]
    %v2414 = vld [vmem:[#allocation8 + $0x20] sm:$0xf]
    %v2415 = vld [vmem:[#allocation8 + $0x24] sm:$0xf]
    %v2416 = vld [vmem:[#allocation8 + $0x28] sm:$0xf]
    %v2417 = vld [vmem:[#allocation8 + $0x2c] sm:$0xf]
    %v2418 = vld [vmem:[#allocation8 + $0x30] sm:$0xf]
    %v2419 = vld [vmem:[#allocation8 + $0x34] sm:$0xf]
    %v2420 = vld [vmem:[#allocation8 + $0x38] sm:$0xf]
    %v2421 = vld [vmem:[#allocation8 + $0x3c] sm:$0xf]
    %v2438 = vunpack.c.l.b16 %v2406
    %v2439 = vunpack.c.l.b16 %v2407
    %v2440 = vunpack.c.l.b16 %v2408
    %v2441 = vunpack.c.l.b16 %v2409
    %v2442 = vunpack.c.l.b16 %v2410
    %v2443 = vunpack.c.l.b16 %v2411
    %v2444 = vunpack.c.l.b16 %v2412
    %v2445 = vunpack.c.l.b16 %v2413
    %v2446 = vunpack.c.l.b16 %v2414
    %v2447 = vunpack.c.l.b16 %v2415
    %v2448 = vunpack.c.l.b16 %v2416
    %v2449 = vunpack.c.l.b16 %v2417
    %v2450 = vunpack.c.l.b16 %v2418
    %v2451 = vunpack.c.l.b16 %v2419
    %v2452 = vunpack.c.l.b16 %v2420
    %v2453 = vunpack.c.l.b16 %v2421
    %v2454 = vpack.c.b16 %v2439, %v2438
    %v2455 = vpack.c.b16 %v2441, %v2440
    %v2456 = vpack.c.b16 %v2443, %v2442
    %v2457 = vpack.c.b16 %v2445, %v2444
    %v2458 = vpack.c.b16 %v2447, %v2446
    %v2459 = vpack.c.b16 %v2449, %v2448
    %v2460 = vpack.c.b16 %v2451, %v2450
    %v2461 = vpack.c.b16 %v2453, %v2452
    %2470 = vmatpush.bf16.msra.mxu0 %v2461
    %2471 = vmatpush.bf16.msra.mxu0 %v2460
    %2472 = vmatpush.bf16.msra.mxu0 %v2459
    %2473 = vmatpush.bf16.msra.mxu0 %v2458
    %2474 = vmatpush.bf16.msra.mxu0 %v2457
    %2475 = vmatpush.bf16.msra.mxu0 %v2456
    %2476 = vmatpush.bf16.msra.mxu0 %v2455
    %2477 = vmatpush.bf16.msra.mxu0 %v2454
    %2478 = vmatmul.bf16.gmra.mxu0 %v2405
    %v2479 = vpop.f32.mrf.mxu0
    %v2480 = vadd.f32 %v168, %v2479
    %v2481 = vpop.f32.mrf.mxu0
    %2482 = vdwg.mxu0
    %v2483 = vmax.f32 %v2480, 0.0
    %v2484 = vpack.c.bf16 %v2483, %v2483
    %v2485 = vld [vmem:[#allocation10] sm:$0xf]
    %v2486 = vld [vmem:[#allocation10 + $0x4] sm:$0xf]
    %v2487 = vld [vmem:[#allocation10 + $0x8] sm:$0xf]
    %v2488 = vld [vmem:[#allocation10 + $0xc] sm:$0xf]
    %v2489 = vld [vmem:[#allocation10 + $0x10] sm:$0xf]
    %v2490 = vld [vmem:[#allocation10 + $0x14] sm:$0xf]
    %v2491 = vld [vmem:[#allocation10 + $0x18] sm:$0xf]
    %v2492 = vld [vmem:[#allocation10 + $0x1c] sm:$0xf]
    %v2493 = vld [vmem:[#allocation10 + $0x20] sm:$0xf]
    %v2494 = vld [vmem:[#allocation10 + $0x24] sm:$0xf]
    %v2495 = vld [vmem:[#allocation10 + $0x28] sm:$0xf]
    %v2496 = vld [vmem:[#allocation10 + $0x2c] sm:$0xf]
    %v2497 = vld [vmem:[#allocation10 + $0x30] sm:$0xf]
    %v2498 = vld [vmem:[#allocation10 + $0x34] sm:$0xf]
    %v2499 = vld [vmem:[#allocation10 + $0x38] sm:$0xf]
    %v2500 = vld [vmem:[#allocation10 + $0x3c] sm:$0xf]
    %v2517 = vunpack.c.l.b16 %v2485
    %v2518 = vunpack.c.l.b16 %v2486
    %v2519 = vunpack.c.l.b16 %v2487
    %v2520 = vunpack.c.l.b16 %v2488
    %v2521 = vunpack.c.l.b16 %v2489
    %v2522 = vunpack.c.l.b16 %v2490
    %v2523 = vunpack.c.l.b16 %v2491
    %v2524 = vunpack.c.l.b16 %v2492
    %v2525 = vunpack.c.l.b16 %v2493
    %v2526 = vunpack.c.l.b16 %v2494
    %v2527 = vunpack.c.l.b16 %v2495
    %v2528 = vunpack.c.l.b16 %v2496
    %v2529 = vunpack.c.l.b16 %v2497
    %v2530 = vunpack.c.l.b16 %v2498
    %v2531 = vunpack.c.l.b16 %v2499
    %v2532 = vunpack.c.l.b16 %v2500
    %v2533 = vpack.c.b16 %v2518, %v2517
    %v2534 = vpack.c.b16 %v2520, %v2519
    %v2535 = vpack.c.b16 %v2522, %v2521
    %v2536 = vpack.c.b16 %v2524, %v2523
    %v2537 = vpack.c.b16 %v2526, %v2525
    %v2538 = vpack.c.b16 %v2528, %v2527
    %v2539 = vpack.c.b16 %v2530, %v2529
    %v2540 = vpack.c.b16 %v2532, %v2531
    %2549 = vmatpush.bf16.msra.mxu0 %v2540
    %2550 = vmatpush.bf16.msra.mxu0 %v2539
    %2551 = vmatpush.bf16.msra.mxu0 %v2538
    %2552 = vmatpush.bf16.msra.mxu0 %v2537
    %2553 = vmatpush.bf16.msra.mxu0 %v2536
    %2554 = vmatpush.bf16.msra.mxu0 %v2535
    %2555 = vmatpush.bf16.msra.mxu0 %v2534
    %2556 = vmatpush.bf16.msra.mxu0 %v2533
    %2557 = vmatmul.bf16.gmra.mxu0 %v2484
    %v2558 = vpop.f32.mrf.mxu0
    %v2559 = vadd.f32 %v250, %v2558
    %v2560 = vpop.f32.mrf.mxu0
    %2561 = vdwg.mxu0
    %v2562 = vmax.f32 %v2559, 0.0
    %v2563 = vmul.f32 %v2562, %v315
    %2564 = vadd.xlane.f32.xlu0 %v2563
    %v2565 = vpop.xlane.xlu0 %2564
    %v2566 = vadd.f32 %v2565, %v320
    %v2567 = vstv %s2382
    %v2568 = vmul.f32 %v2567, %v2566
    %v2569 = vmul.f32 %v2568, %v330
    %v2570 = vadd.f32 %v2371, %v2569
    %2572 = vset.pattern.permute.xlu0 0
    %2573 = vperm.xlu0 %2572, %v2570
    %v2574 = vpop.permute.xlu0 %2573
    %v2576 = vmul.f32 %v2574, %v131
    %2578 = vset.pattern.permute.xlu0 6
    %2579 = vperm.xlu0 %2578, %v2384
    %v2580 = vpop.permute.xlu0 %2579
    %v2582 = vmul.f32 %v2580, %v138
    %v2583 = vadd.f32 %v2576, %v2582
    %v2584 = vstv %s2379
    %v2585 = vmul.f32 %v2584, %v104
    %v2586 = vperm.slane %v2585, 0
    %v2587 = vadd.f32 %v2583, %v2586
    %v2588 = vadd.f32 %v2587, %v146
    %v2589 = vmax.f32 %v2588, 0.0
    %v2590 = vpack.c.bf16 %v2589, %v2589
    %2591 = vmatpush.bf16.msra.mxu0 %v2461
    %2592 = vmatpush.bf16.msra.mxu0 %v2460
    %2593 = vmatpush.bf16.msra.mxu0 %v2459
    %2594 = vmatpush.bf16.msra.mxu0 %v2458
    %2595 = vmatpush.bf16.msra.mxu0 %v2457
    %2596 = vmatpush.bf16.msra.mxu0 %v2456
    %2597 = vmatpush.bf16.msra.mxu0 %v2455
    %2598 = vmatpush.bf16.msra.mxu0 %v2454
    %2599 = vmatmul.bf16.gmra.mxu0 %v2590
    %v2600 = vpop.f32.mrf.mxu0
    %v2601 = vadd.f32 %v168, %v2600
    %v2602 = vpop.f32.mrf.mxu0
    %2603 = vdwg.mxu0
    %v2604 = vmax.f32 %v2601, 0.0
    %v2605 = vpack.c.bf16 %v2604, %v2604
    %2606 = vmatpush.bf16.msra.mxu0 %v2540
    %2607 = vmatpush.bf16.msra.mxu0 %v2539
    %2608 = vmatpush.bf16.msra.mxu0 %v2538
    %2609 = vmatpush.bf16.msra.mxu0 %v2537
    %2610 = vmatpush.bf16.msra.mxu0 %v2536
    %2611 = vmatpush.bf16.msra.mxu0 %v2535
    %2612 = vmatpush.bf16.msra.mxu0 %v2534
    %2613 = vmatpush.bf16.msra.mxu0 %v2533
    %2614 = vmatmul.bf16.gmra.mxu0 %v2605
    %v2615 = vpop.f32.mrf.mxu0
    %v2616 = vadd.f32 %v250, %v2615
    %v2617 = vpop.f32.mrf.mxu0
    %2618 = vdwg.mxu0
    %v2619 = vmax.f32 %v2616, 0.0
    %v2620 = vmul.f32 %v2619, %v315
    %2621 = vadd.xlane.f32.xlu0 %v2620
    %v2622 = vpop.xlane.xlu0 %2621
    %v2623 = vadd.f32 %v2622, %v320
    %v2624 = vmul.f32 %v2566, %v330
    %v2625 = vsub.f32 %v2623, %v2624
    %v2626 = vmul.f32 %v2567, %v2625
    %v2627 = vadd.f32 %v2371, %v2626
    %2629 = vset.pattern.permute.xlu0 0
    %2630 = vperm.xlu0 %2629, %v2627
    %v2631 = vpop.permute.xlu0 %2630
    %v2633 = vmul.f32 %v2631, %v131
    %2635 = vset.pattern.permute.xlu0 6
    %2636 = vperm.xlu0 %2635, %v2385
    %v2637 = vpop.permute.xlu0 %2636
    %v2639 = vmul.f32 %v2637, %v138
    %v2640 = vadd.f32 %v2633, %v2639
    %v2641 = vstv %s2380
    %v2642 = vmul.f32 %v2641, %v104
    %v2643 = vperm.slane %v2642, 0
    %v2644 = vadd.f32 %v2640, %v2643
    %v2645 = vadd.f32 %v2644, %v146
    %v2646 = vmax.f32 %v2645, 0.0
    %v2647 = vpack.c.bf16 %v2646, %v2646
    %2648 = vmatpush.bf16.msra.mxu0 %v2461
    %2649 = vmatpush.bf16.msra.mxu0 %v2460
    %2650 = vmatpush.bf16.msra.mxu0 %v2459
    %2651 = vmatpush.bf16.msra.mxu0 %v2458
    %2652 = vmatpush.bf16.msra.mxu0 %v2457
    %2653 = vmatpush.bf16.msra.mxu0 %v2456
    %2654 = vmatpush.bf16.msra.mxu0 %v2455
    %2655 = vmatpush.bf16.msra.mxu0 %v2454
    %2656 = vmatmul.bf16.gmra.mxu0 %v2647
    %v2657 = vpop.f32.mrf.mxu0
    %v2658 = vadd.f32 %v168, %v2657
    %v2659 = vpop.f32.mrf.mxu0
    %2660 = vdwg.mxu0
    %v2661 = vmax.f32 %v2658, 0.0
    %v2662 = vpack.c.bf16 %v2661, %v2661
    %2663 = vmatpush.bf16.msra.mxu0 %v2540
    %2664 = vmatpush.bf16.msra.mxu0 %v2539
    %2665 = vmatpush.bf16.msra.mxu0 %v2538
    %2666 = vmatpush.bf16.msra.mxu0 %v2537
    %2667 = vmatpush.bf16.msra.mxu0 %v2536
    %2668 = vmatpush.bf16.msra.mxu0 %v2535
    %2669 = vmatpush.bf16.msra.mxu0 %v2534
    %2670 = vmatpush.bf16.msra.mxu0 %v2533
    %2671 = vmatmul.bf16.gmra.mxu0 %v2662
    %v2672 = vpop.f32.mrf.mxu0
    %v2673 = vadd.f32 %v250, %v2672
    %v2674 = vpop.f32.mrf.mxu0
    %2675 = vdwg.mxu0
    %v2676 = vmax.f32 %v2673, 0.0
    %v2677 = vmul.f32 %v2676, %v315
    %2678 = vadd.xlane.f32.xlu0 %v2677
    %v2679 = vpop.xlane.xlu0 %2678
    %v2680 = vadd.f32 %v2679, %v320
    %v2681 = vsub.f32 %v2566, %v2623
    %v2682 = vadd.f32 %v2681, %v2680
    %v2683 = vmul.f32 %v2567, %v2682
    %v2684 = vadd.f32 %v2371, %v2683
    %2686 = vset.pattern.permute.xlu0 0
    %2687 = vperm.xlu0 %2686, %v2684
    %v2688 = vpop.permute.xlu0 %2687
    %v2690 = vmul.f32 %v2688, %v131
    %2692 = vset.pattern.permute.xlu0 6
    %2693 = vperm.xlu0 %2692, %v2386
    %v2694 = vpop.permute.xlu0 %2693
    %v2696 = vmul.f32 %v2694, %v138
    %v2697 = vadd.f32 %v2690, %v2696
    %v2698 = vstv %s2381
    %v2699 = vmul.f32 %v2698, %v104
    %v2700 = vperm.slane %v2699, 0
    %v2701 = vadd.f32 %v2697, %v2700
    %v2702 = vadd.f32 %v2701, %v146
    %v2703 = vmax.f32 %v2702, 0.0
    %v2704 = vpack.c.bf16 %v2703, %v2703
    %2705 = vmatpush.bf16.msra.mxu0 %v2461
    %2706 = vmatpush.bf16.msra.mxu0 %v2460
    %2707 = vmatpush.bf16.msra.mxu0 %v2459
    %2708 = vmatpush.bf16.msra.mxu0 %v2458
    %2709 = vmatpush.bf16.msra.mxu0 %v2457
    %2710 = vmatpush.bf16.msra.mxu0 %v2456
    %2711 = vmatpush.bf16.msra.mxu0 %v2455
    %2712 = vmatpush.bf16.msra.mxu0 %v2454
    %2713 = vmatmul.bf16.gmra.mxu0 %v2704
    %v2714 = vpop.f32.mrf.mxu0
    %v2715 = vadd.f32 %v168, %v2714
    %v2716 = vpop.f32.mrf.mxu0
    %2717 = vdwg.mxu0
    %v2718 = vmax.f32 %v2715, 0.0
    %v2719 = vpack.c.bf16 %v2718, %v2718
    %2720 = vmatpush.bf16.msra.mxu0 %v2540
    %2721 = vmatpush.bf16.msra.mxu0 %v2539
    %2722 = vmatpush.bf16.msra.mxu0 %v2538
    %2723 = vmatpush.bf16.msra.mxu0 %v2537
    %2724 = vmatpush.bf16.msra.mxu0 %v2536
    %2725 = vmatpush.bf16.msra.mxu0 %v2535
    %2726 = vmatpush.bf16.msra.mxu0 %v2534
    %2727 = vmatpush.bf16.msra.mxu0 %v2533
    %2728 = vmatmul.bf16.gmra.mxu0 %v2719
    %v2729 = vpop.f32.mrf.mxu0
    %v2730 = vadd.f32 %v250, %v2729
    %v2731 = vpop.f32.mrf.mxu0
    %2732 = vdwg.mxu0
    %v2733 = vmax.f32 %v2730, 0.0
    %v2734 = vmul.f32 %v2733, %v315
    %2735 = vadd.xlane.f32.xlu0 %v2734
    %v2736 = vpop.xlane.xlu0 %2735
    %v2737 = vadd.f32 %v2736, %v320
    %v2738 = vadd.f32 %v2623, %v2680
    %v2739 = vmul.f32 %v2738, 3.0
    %v2740 = vadd.f32 %v2566, %v2739
    %v2741 = vadd.f32 %v2740, %v2737
    %v2742 = vmul.f32 %v2567, %v2741
    %v2743 = vmul.f32 %v2742, 0.125
    %v2744 = vadd.f32 %v2371, %v2743
    %2746 = vrot.lane.b32.xlu0 %v2744, 7
    %v2747 = vpop.permute.xlu0 %2746
    %vm2749 = vcmask 64568
    %2750 = vst.msk [vmem:[#allocation11] sm:$0xff] %vm2749, %v2747
    // Predicated region
    $region62: #{tpu_custom_call.1} parent=1 // pred_check
      _
    $region63: #{tpu_custom_call.1} parent=1 // pred_check_branch
      %2752 = sbr.rel (0) target = $region65
    $region64: #{tpu_custom_call.1} parent=1 // pred_region
      %2754 = vsyncadd [#allocation5], 0
      %s2756 = sshll.u32 [#allocation11], 4
      %s2757 = int_to_ptr.vmem [resolvable:$true] %s2756
      %s2758 = sshll.u32 %s11, 4
      %s2759 = int_to_ptr.hbm [resolvable:$true] %s2758
      %2761 = dma.vmem_to_hbm [thread:$0]  %s2757, 128, %s2759, [#allocation5]
    $region65: #{tpu_custom_call.1} parent=1 // pred_fallthru
      _
    // Predicated region
    $region66: #{tpu_custom_call.1} parent=1 // pred_check
      _
    $region67: #{tpu_custom_call.1} parent=1 // pred_check_branch
      %2763 = sbr.rel (0) target = $region69
    $region68: #{tpu_custom_call.1} parent=1 // pred_region
      %2765 = dma.done [#allocation5], 128
    $region69: #{tpu_custom_call.1} parent=1 // pred_fallthru
      _
    %2766 = vsyncpa [#allocation4], 1
    %2767 = vsyncpa [#allocation9], 1
    %2768 = vsyncpa [#allocation5], 1
    %2769 = vsyncpa [#allocation6], 1

</llo_original>
